<compile_context>
chip_gen: v7x
topology: tpu7x:2x2x1
jax: 0.10.0
libtpu: 0.0.40
codegen_flags: <defaults>
</compile_context>

<pallas_src>
import functools

import jax
import jax.numpy as jnp
from jax.experimental import pallas as pl
from jax.experimental.pallas import tpu as pltpu


LANE = 128
SUBLANE = 8
N_SPLIT = 2   # hidden-dim split: 2 independent partial-sum blocks (one per v7x TensorCore)


def _round_up(x, m):
    return (x + m - 1) // m * m


def fc_kernel(x_ref, w1_ref, b1_ref, w2_ref, o_ref):
    # x_ref : (B_pad, K_pad)      bf16, resident across both grid steps
    # w1_ref: (K_pad, TILE_H)     bf16, this step's hidden-column half (streamed)
    # b1_ref: (1, TILE_H)         f32
    # w2_ref: (TILE_H, OUT_pad)   f32  (kept f32 for fidelity; tiny)
    # o_ref : (B_pad, OUT_pad)    f32 partial logits for this hidden half
    h = jnp.dot(x_ref[...], w1_ref[...], preferred_element_type=jnp.float32)
    h = jnp.maximum(h + b1_ref[...], 0.0)                       # bias + ReLU (exact per half)
    o_ref[...] = jnp.dot(h, w2_ref[...], preferred_element_type=jnp.float32)


def prepare_params(w1, b1, w2, b2):
    """One-time offline prep: pad to MXU/vreg-friendly shapes, store w1 as bf16."""
    K, H = w1.shape
    OUT = w2.shape[1]
    k_pad = _round_up(K, LANE)                 # 1260 -> 1280
    h_pad = _round_up(H, N_SPLIT * LANE)       # 2000 -> 2048 (each half lane-aligned)
    out_pad = _round_up(OUT, SUBLANE)          # 6 -> 8 (NOT 128: don't stream zero cols)
    w1_p = jnp.pad(w1, ((0, k_pad - K), (0, h_pad - H))).astype(jnp.bfloat16)
    b1_p = jnp.pad(b1.reshape(1, -1), ((0, 0), (0, h_pad - H))).astype(jnp.float32)
    w2_p = jnp.pad(w2, ((0, h_pad - H), (0, out_pad - OUT))).astype(jnp.float32)
    b2_p = b2.reshape(1, -1).astype(jnp.float32)
    return w1_p, b1_p, w2_p, b2_p


@functools.partial(jax.jit, static_argnames=("out_features",))
def fc_forward(x, w1_p, b1_p, w2_p, b2_p, *, out_features):
    B, K = x.shape
    k_pad, h_pad = w1_p.shape
    out_pad = w2_p.shape[1]
    tile_h = h_pad // N_SPLIT
    b_pad = _round_up(max(B, SUBLANE), SUBLANE)    # full f32 sublanes -> unmasked ld/st

    x_p = jnp.pad(x, ((0, b_pad - B), (0, k_pad - K))).astype(jnp.bfloat16)

    partials = pl.pallas_call(
        fc_kernel,
        out_shape=jax.ShapeDtypeStruct((N_SPLIT, b_pad, out_pad), jnp.float32),
        grid_spec=pltpu.PrefetchScalarGridSpec(
            num_scalar_prefetch=0,
            grid=(N_SPLIT,),
            in_specs=[
                pl.BlockSpec((b_pad, k_pad), lambda i: (0, 0)),      # x: resident
                pl.BlockSpec((k_pad, tile_h), lambda i: (0, i)),     # w1 half (bf16, streamed)
                pl.BlockSpec((1, tile_h), lambda i: (0, i)),         # b1 half
                pl.BlockSpec((tile_h, out_pad), lambda i: (i, 0)),   # w2 half (f32, tiny)
            ],
            out_specs=pl.BlockSpec((None, b_pad, out_pad), lambda i: (i, 0, 0)),
        ),
        compiler_params=pltpu.CompilerParams(
            dimension_semantics=("parallel",),     # independent partials -> megacore-safe
            vmem_limit_bytes=32 << 20,             # actual footprint ~5 MiB; v7x-safe
        ),
    )(x_p, w1_p, b1_p, w2_p)

    # Tiny epilogue in the wrapper: sum the two hidden-half partials, bias, sigmoid.
    logits = jnp.sum(partials, axis=0)[:B, :out_features] + b2_p[:, :out_features]
    return jax.nn.sigmoid(logits)


def init_params(key, in_features=1260, hidden=2000, out_features=6):
    # Mimics PyTorch nn.Linear default init: U(-1/sqrt(fan_in), 1/sqrt(fan_in)).
    k1, k2, k3, k4 = jax.random.split(key, 4)
    lim1 = 1.0 / jnp.sqrt(jnp.float32(in_features))
    lim2 = 1.0 / jnp.sqrt(jnp.float32(hidden))
    w1 = jax.random.uniform(k1, (in_features, hidden), jnp.float32, -lim1, lim1)
    b1 = jax.random.uniform(k2, (1, hidden), jnp.float32, -lim1, lim1)
    w2 = jax.random.uniform(k3, (hidden, out_features), jnp.float32, -lim2, lim2)
    b2 = jax.random.uniform(k4, (1, out_features), jnp.float32, -lim2, lim2)
    return w1, b1, w2, b2


if __name__ == "__main__":
    key = jax.random.PRNGKey(0)
    kx, kp = jax.random.split(key)

    B, IN_F, HIDDEN, OUT_F = 8, 1260, 2000, 6
    x = jax.random.normal(kx, (B, IN_F), jnp.float32)
    w1, b1, w2, b2 = init_params(kp, IN_F, HIDDEN, OUT_F)

    params = prepare_params(w1, b1, w2, b2)
    out = fc_forward(x, *params, out_features=OUT_F)
    out = jax.block_until_ready(out)
    assert out.shape == (B, OUT_F)

    # Reference with the same mixed precision as the kernel (bf16 layer-1, f32 layer-2).
    h_ref = jnp.maximum(
        jnp.dot(x.astype(jnp.bfloat16), w1.astype(jnp.bfloat16),
                preferred_element_type=jnp.float32) + b1, 0.0)
    ref_mixed = jax.nn.sigmoid(
        jnp.dot(h_ref, w2, preferred_element_type=jnp.float32) + b2)
    assert jnp.allclose(out, ref_mixed, atol=2e-3, rtol=2e-3), "mismatch vs mixed-precision reference"

    # Sanity check against exact f32 module semantics.
    ref_f32 = jax.nn.sigmoid(jnp.maximum(x @ w1 + b1, 0.0) @ w2 + b2)
    assert jnp.allclose(out, ref_f32, atol=2e-2), "mismatch vs f32 reference"

    print("KERNEL_OK")
</pallas_src>

<mosaic_0001>
module attributes {stable_mosaic.version = 11 : i64} {
  func.func @fc_kernel(%arg0: i32, %arg1: memref<8x1280xbf16, #tpu.memory_space<vmem>>, %arg2: memref<1280x1024xbf16, #tpu.memory_space<vmem>>, %arg3: memref<1x1024xf32, #tpu.memory_space<vmem>>, %arg4: memref<1024x8xf32, #tpu.memory_space<vmem>>, %arg5: memref<1x8x8xf32, #tpu.memory_space<vmem>>) attributes {dimension_semantics = [#tpu.dimension_semantics<parallel>], iteration_bounds = array<i64: 2>, scalar_prefetch = 0 : i64, scratch_operands = 0 : i64, tpu.core_type = #tpu.core_type<tc>, window_params = [{pipeline_mode = #tpu.pipeline_mode<synchronous>, transform_indices = @transform_0, window_bounds = array<i64: 8, 1280>}, {transform_indices = @transform_1, window_bounds = array<i64: 1280, 1024>}, {transform_indices = @transform_2, window_bounds = array<i64: 1, 1024>}, {transform_indices = @transform_3, window_bounds = array<i64: 1024, 8>}, {transform_indices = @transform_4, window_bounds = array<i64: 1, 8, 8>}]} {
    %c0 = arith.constant 0 : index
    %c0_0 = arith.constant 0 : index
    %0 = vector.load %arg1[%c0, %c0_0] : memref<8x1280xbf16, #tpu.memory_space<vmem>>, vector<8x1280xbf16>
    %c0_1 = arith.constant 0 : index
    %c0_2 = arith.constant 0 : index
    %1 = vector.load %arg2[%c0_1, %c0_2] : memref<1280x1024xbf16, #tpu.memory_space<vmem>>, vector<1280x1024xbf16>
    %cst = arith.constant dense<0.000000e+00> : vector<8x1024xf32>
    %2 = tpu.matmul %0, %1, %cst {dimension_numbers = #tpu.dot_dimension_numbers<[1], [0], [0], [1], [0, 0, 1, 1], [], []>} : vector<8x1280xbf16>, vector<1280x1024xbf16>, vector<8x1024xf32> -> vector<8x1024xf32>
    %c0_3 = arith.constant 0 : index
    %c0_4 = arith.constant 0 : index
    %3 = vector.load %arg3[%c0_3, %c0_4] : memref<1x1024xf32, #tpu.memory_space<vmem>>, vector<1x1024xf32>
    %4 = vector.broadcast %3 : vector<1x1024xf32> to vector<8x1024xf32>
    %5 = arith.addf %2, %4 : vector<8x1024xf32>
    %cst_5 = arith.constant 0.000000e+00 : f32
    %6 = vector.broadcast %cst_5 : f32 to vector<8x1024xf32>
    %7 = arith.maximumf %5, %6 : vector<8x1024xf32>
    %c0_6 = arith.constant 0 : index
    %c0_7 = arith.constant 0 : index
    %8 = vector.load %arg4[%c0_6, %c0_7] : memref<1024x8xf32, #tpu.memory_space<vmem>>, vector<1024x8xf32>
    %cst_8 = arith.constant dense<0.000000e+00> : vector<8x8xf32>
    %9 = tpu.matmul %7, %8, %cst_8 {dimension_numbers = #tpu.dot_dimension_numbers<[1], [0], [0], [1], [0, 0, 1, 1], [], []>} : vector<8x1024xf32>, vector<1024x8xf32>, vector<8x8xf32> -> vector<8x8xf32>
    %c0_9 = arith.constant 0 : index
    %c0_10 = arith.constant 0 : index
    %c0_11 = arith.constant 0 : index
    %10 = vector.load %arg5[%c0_9, %c0_10, %c0_11] : memref<1x8x8xf32, #tpu.memory_space<vmem>>, vector<1x8x8xf32>
    %11 = vector.shape_cast %10 : vector<1x8x8xf32> to vector<8x8xf32>
    %12 = vector.shape_cast %9 : vector<8x8xf32> to vector<1x8x8xf32>
    tpu.vector_store %arg5[%c0_9, %c0_10, %c0_11], %12 {strides = array<i32>} : memref<1x8x8xf32, #tpu.memory_space<vmem>>, vector<1x8x8xf32>,
    return
  }
  func.func @transform_0(%arg0: i32) -> (i32, i32) {
    %c0_i32 = arith.constant 0 : i32
    %c0_i32_0 = arith.constant 0 : i32
    %c0_i32_1 = arith.constant 0 : i32
    return %c0_i32, %c0_i32_0 : i32, i32
  }
  func.func @transform_1(%arg0: i32) -> (i32, i32) {
    %c0_i32 = arith.constant 0 : i32
    %c0_i32_0 = arith.constant 0 : i32
    return %c0_i32, %arg0 : i32, i32
  }
  func.func @transform_2(%arg0: i32) -> (i32, i32) {
    %c0_i32 = arith.constant 0 : i32
    %c0_i32_0 = arith.constant 0 : i32
    return %c0_i32, %arg0 : i32, i32
  }
  func.func @transform_3(%arg0: i32) -> (i32, i32) {
    %c0_i32 = arith.constant 0 : i32
    %c0_i32_0 = arith.constant 0 : i32
    return %arg0, %c0_i32 : i32, i32
  }
  func.func @transform_4(%arg0: i32) -> (i32, i32, i32) {
    %c0_i32 = arith.constant 0 : i32
    %c0_i32_0 = arith.constant 0 : i32
    %c0_i32_1 = arith.constant 0 : i32
    return %arg0, %c0_i32, %c0_i32_0 : i32, i32, i32
  }
}

</mosaic_0001>

<llo_original>
// kernel: fc_forward.1
$region0: #{fc_forward.1}
  #allocation0 [shape = 'u32[]', space=smem, size = 0x4, offset = 0x4, fixed_abs, tag = 'smem constant byte address 0x4 - core index']
  #allocation1 [shape = 'u32[144,128]{1,0:T(1,128)}', space=vmem, size = 0x12000, scoped, tag = 'internal scratch']
  %s0 = inlined_call_operand.vmem [shape: bf16[8,1280], index: 0, kind: input, shape index: {}]
  %s1 = inlined_call_operand.hbm [shape: bf16[1280,2048], index: 1, kind: input, shape index: {}]
  %s2 = inlined_call_operand.hbm [shape: f32[1,2048], index: 2, kind: input, shape index: {}]
  %s3 = inlined_call_operand.vmem [shape: f32[2048,8], index: 3, kind: input, shape index: {}]
  %s4 = inlined_call_operand.vmem [shape: f32[2,8,8], index: 4, kind: output, shape index: {}]
  %s5 = sld [smem:[#allocation0]]
  $region57: #{fc_forward.1} parent=0
    _
  %s7 = ssub.s32 1, %s5
  %s8 = scalar_select 0, %s7, %s5
  $region1: #{fc_forward.1} parent=0
    #allocation2 [shape = 'u8[5242880]{0}', space=vmem, size = 0x500000, scoped, tag = 'input window, operand 1']
    #allocation3 [shape = 's32[2]{0}', space=sflag, size = 0x8, scoped, tag = 'scoped memory for fc_forward.1']
    #allocation4 [shape = 'u8[8192]{0}', space=vmem, size = 0x2000, scoped, tag = 'input window, operand 2']
    #allocation5 [shape = 's32[2]{0}', space=sflag, size = 0x8, scoped, tag = 'scoped memory for fc_forward.1']
    %9 = vsyncpa [#allocation3], 0
    %s10 = scalar_lea.sflag [#allocation3], 1
    %11 = vsyncpa %s10, 0
    %12 = vsyncpa [#allocation5], 0
    %s13 = scalar_lea.sflag [#allocation5], 1
    %14 = vsyncpa %s13, 0
    loop: start=0, step=1, limit=4
    $region2: #{fc_forward.1} parent=1 // loop_pre_header
      _
    $region3: #{fc_forward.1} parent=1 // loop_header
      %s16 = sphi 0, %s20
      %p17 = scmp.ge.s32.totalorder %s16, 4
      %s24 = sphi 0, %s24
      %s26 = sphi 0, %s24
      %s27 = sphi 0, %s26
      %s41 = sphi 0, %s27
      %s47 = sphi 0, %s49
      %s50 = sphi 0, %s47
      %s51 = sphi 0, %s50
      %s67 = sphi 0, %s51
      %s73 = sphi 0, %s75
      %s76 = sphi 0, %s73
      %s77 = sphi 0, %s76
      %s93 = sphi 0, %s77
      %s99 = sphi 0, %s101
      %s102 = sphi 0, %s99
      %s103 = sphi 0, %s102
      %s119 = sphi 0, %s103
      %s125 = sphi 0, %s127
      %s128 = sphi 0, %s125
      %s129 = sphi 0, %s128
      %s145 = sphi 0, %s129
    $region4: #{fc_forward.1} parent=1 // loop_header_branch
      %19 = sbr.rel (%p17) target = $region8
    $region5: #{fc_forward.1} parent=1 // loop_body
      %s21 = ssub.s32 %s16, 1
      %s22 = ssub.s32 %s16, 2
      %s23 = sadd.s32 %s16, 1
      %s25 = sadd.s32 %s24, 1
      %p28 = scmp.eq.s32.totalorder %s16, 1
      %p29 = scmp.ne.s32.totalorder %s24, %s26
      %p30 = scmp.eq.s32.totalorder %s16, 0
      %p31 = por %p29, %p30
      %p32 = scmp.ne.s32.totalorder %s24, %s26
      %p33 = scmp.eq.s32.totalorder %s21, 1
      %p34 = por %p32, %p33
      %p35 = scmp.ne.s32.totalorder %s26, %s27
      %p36 = scmp.eq.s32.totalorder %s21, 0
      %p37 = por %p35, %p36
      %p38 = scmp.ne.s32.totalorder %s26, %s27
      %p39 = scmp.eq.s32.totalorder %s22, 1
      %p40 = por %p38, %p39
      %p42 = scmp.ne.s32.totalorder %s27, %s41
      %p43 = scmp.eq.s32.totalorder %s22, 0
      %p44 = por %p42, %p43
      %s45 = ssub.s32 %s16, %s23
      %p46 = scmp.eq.s32.totalorder %s45, 0
      %s48 = sadd.s32 %s47, 1
      %s49 = scalar_select %p46, %s47, %s48
      %p52 = pneg %p46
      %p53 = scmp.eq.s32.totalorder %s16, 1
      %p54 = por %p52, %p53
      %p55 = scmp.ne.s32.totalorder %s47, %s50
      %p56 = scmp.eq.s32.totalorder %s16, 0
      %p57 = por %p55, %p56
      %p58 = scmp.ne.s32.totalorder %s47, %s50
      %p59 = scmp.eq.s32.totalorder %s21, 1
      %p60 = por %p58, %p59
      %p61 = scmp.ne.s32.totalorder %s50, %s51
      %p62 = scmp.eq.s32.totalorder %s21, 0
      %p63 = por %p61, %p62
      %p64 = scmp.ne.s32.totalorder %s50, %s51
      %p65 = scmp.eq.s32.totalorder %s22, 1
      %p66 = por %p64, %p65
      %p68 = scmp.ne.s32.totalorder %s51, %s67
      %p69 = scmp.eq.s32.totalorder %s22, 0
      %p70 = por %p68, %p69
      %s71 = ssub.s32 %s16, %s23
      %p72 = scmp.eq.s32.totalorder %s71, 0
      %s74 = sadd.s32 %s73, 1
      %s75 = scalar_select %p72, %s73, %s74
      %p78 = pneg %p72
      %p79 = scmp.eq.s32.totalorder %s16, 1
      %p80 = por %p78, %p79
      %p81 = scmp.ne.s32.totalorder %s73, %s76
      %p82 = scmp.eq.s32.totalorder %s16, 0
      %p83 = por %p81, %p82
      %p84 = scmp.ne.s32.totalorder %s73, %s76
      %p85 = scmp.eq.s32.totalorder %s21, 1
      %p86 = por %p84, %p85
      %p87 = scmp.ne.s32.totalorder %s76, %s77
      %p88 = scmp.eq.s32.totalorder %s21, 0
      %p89 = por %p87, %p88
      %p90 = scmp.ne.s32.totalorder %s76, %s77
      %p91 = scmp.eq.s32.totalorder %s22, 1
      %p92 = por %p90, %p91
      %p94 = scmp.ne.s32.totalorder %s77, %s93
      %p95 = scmp.eq.s32.totalorder %s22, 0
      %p96 = por %p94, %p95
      %s97 = ssub.s32 %s16, %s23
      %p98 = scmp.eq.s32.totalorder %s97, 0
      %s100 = sadd.s32 %s99, 1
      %s101 = scalar_select %p98, %s99, %s100
      %p104 = pneg %p98
      %p105 = scmp.eq.s32.totalorder %s16, 1
      %p106 = por %p104, %p105
      %p107 = scmp.ne.s32.totalorder %s99, %s102
      %p108 = scmp.eq.s32.totalorder %s16, 0
      %p109 = por %p107, %p108
      %p110 = scmp.ne.s32.totalorder %s99, %s102
      %p111 = scmp.eq.s32.totalorder %s21, 1
      %p112 = por %p110, %p111
      %p113 = scmp.ne.s32.totalorder %s102, %s103
      %p114 = scmp.eq.s32.totalorder %s21, 0
      %p115 = por %p113, %p114
      %p116 = scmp.ne.s32.totalorder %s102, %s103
      %p117 = scmp.eq.s32.totalorder %s22, 1
      %p118 = por %p116, %p117
      %p120 = scmp.ne.s32.totalorder %s103, %s119
      %p121 = scmp.eq.s32.totalorder %s22, 0
      %p122 = por %p120, %p121
      %s123 = ssub.s32 %s16, %s23
      %p124 = scmp.eq.s32.totalorder %s123, 0
      %s126 = sadd.s32 %s125, 1
      %s127 = scalar_select %p124, %s125, %s126
      %p130 = pneg %p124
      %p131 = scmp.eq.s32.totalorder %s16, 1
      %p132 = por %p130, %p131
      %p133 = scmp.ne.s32.totalorder %s125, %s128
      %p134 = scmp.eq.s32.totalorder %s16, 0
      %p135 = por %p133, %p134
      %p136 = scmp.ne.s32.totalorder %s125, %s128
      %p137 = scmp.eq.s32.totalorder %s21, 1
      %p138 = por %p136, %p137
      %p139 = scmp.ne.s32.totalorder %s128, %s129
      %p140 = scmp.eq.s32.totalorder %s21, 0
      %p141 = por %p139, %p140
      %p142 = scmp.ne.s32.totalorder %s128, %s129
      %p143 = scmp.eq.s32.totalorder %s22, 1
      %p144 = por %p142, %p143
      %p146 = scmp.ne.s32.totalorder %s129, %s145
      %p147 = scmp.eq.s32.totalorder %s22, 0
      %p148 = por %p146, %p147
      %p149 = scmp.le.s32.totalorder 1, %s16
      %p150 = scmp.lt.s32.totalorder %s16, 3
      %p151 = pnand %p149, %p150
      %p152 = pneg %p151
      // Predicated region
      $region9: #{fc_forward.1} parent=5 // pred_check
        _
      $region10: #{fc_forward.1} parent=5 // pred_check_branch
        %154 = sbr.rel (%p151) target = $region12
      $region11: #{fc_forward.1} parent=5 // pred_region
        %s155 = ssub.s32 %s16, 1
        // Predicated region
        $region13: #{fc_forward.1} parent=11 // pred_check
          %p156 = pneg %p37
        $region14: #{fc_forward.1} parent=11 // pred_check_branch
          %158 = sbr.rel (%p156) target = $region16
        $region15: #{fc_forward.1} parent=11 // pred_region
          _
        $region16: #{fc_forward.1} parent=11 // pred_fallthru
          _
      $region12: #{fc_forward.1} parent=5 // pred_fallthru
        _
      %p159 = scmp.lt.s32.totalorder %s16, 2
      // Predicated region
      $region17: #{fc_forward.1} parent=5 // pred_check
        %p160 = pneg %p159
      $region18: #{fc_forward.1} parent=5 // pred_check_branch
        %162 = sbr.rel (%p160) target = $region20
      $region19: #{fc_forward.1} parent=5 // pred_region
        // Predicated region
        $region21: #{fc_forward.1} parent=19 // pred_check
          %p163 = pneg %p57
        $region22: #{fc_forward.1} parent=19 // pred_check_branch
          %165 = sbr.rel (%p163) target = $region24
        $region23: #{fc_forward.1} parent=19 // pred_region
          %s166 = sand.u32 %s47, 1
          %s167 = scalar_lea.sflag [#allocation3], %s166
          %s168 = sand.u32 %s47, 1
          %s169 = smul.addr %s168, 5120
          %s170 = scalar_lea.vmem [#allocation2], %s169
          %s171 = smul.u32 8, %s16
          %s173 = ssub.s32 81920, 81920
          %174 = vsyncadd %s167, %s173
          %s175 = smul.addr %s171, 64
          %s176 = scalar_lea.hbm %s1, %s175
          %s177 = sshll.u32 %s170, 4
          %s178 = int_to_ptr.vmem [resolvable:$true] %s177
          %183 = dma.hbm_to_vmem [thread:$0]  %s176, 81920, %s178, %s167, 1024, 512, 32
        $region24: #{fc_forward.1} parent=19 // pred_fallthru
          _
        // Predicated region
        $region25: #{fc_forward.1} parent=19 // pred_check
          %p184 = pneg %p83
        $region26: #{fc_forward.1} parent=19 // pred_check_branch
          %186 = sbr.rel (%p184) target = $region28
        $region27: #{fc_forward.1} parent=19 // pred_region
          %s187 = sand.u32 %s73, 1
          %s188 = scalar_lea.sflag [#allocation5], %s187
          %s189 = sand.u32 %s73, 1
          %s190 = smul.addr %s189, 8
          %s191 = scalar_lea.vmem [#allocation4], %s190
          %s192 = smul.u32 8, %s16
          %s194 = ssub.s32 128, 128
          %195 = vsyncadd %s188, %s194
          %s196 = smul.addr %s192, 16
          %s197 = scalar_lea.hbm %s2, %s196
          %s199 = sshll.u32 %s191, 4
          %s200 = int_to_ptr.vmem [resolvable:$true] %s199
          %202 = dma.hbm_to_vmem [thread:$0]  %s197, 128, %s200, %s188
        $region28: #{fc_forward.1} parent=19 // pred_fallthru
          _
        // Predicated region
        $region29: #{fc_forward.1} parent=19 // pred_check
          %p203 = pneg %p109
        $region30: #{fc_forward.1} parent=19 // pred_check_branch
          %205 = sbr.rel (%p203) target = $region32
        $region31: #{fc_forward.1} parent=19 // pred_region
          %s206 = smul.u32 128, %s16
          %p207 = scmp.lt.s32.totalorder %s206, 255
          %s208 = scalar_select %p207, %s206, 255
          %s209 = smul.addr %s208, 8
          %s210 = scalar_lea.vmem %s3, %s209
          %s211 = smul.u32 128, %s16
        $region32: #{fc_forward.1} parent=19 // pred_fallthru
          _
      $region20: #{fc_forward.1} parent=5 // pred_fallthru
        _
      %p212 = scmp.le.s32.totalorder 1, %s16
      %p213 = scmp.lt.s32.totalorder %s16, 3
      %p214 = pnand %p212, %p213
      %p215 = pneg %p214
      // Predicated region
      $region33: #{fc_forward.1} parent=5 // pred_check
        _
      $region34: #{fc_forward.1} parent=5 // pred_check_branch
        %217 = sbr.rel (%p214) target = $region36
      $region35: #{fc_forward.1} parent=5 // pred_region
        %s218 = ssub.s32 %s16, 1
        %s219 = sand.u32 %s50, 1
        %s220 = scalar_lea.sflag [#allocation3], %s219
        %s221 = sand.u32 %s50, 1
        %s222 = smul.addr %s221, 5120
        %s223 = scalar_lea.vmem [#allocation2], %s222
        // Predicated region
        $region37: #{fc_forward.1} parent=35 // pred_check
          %p224 = pneg %p63
        $region38: #{fc_forward.1} parent=35 // pred_check_branch
          %226 = sbr.rel (%p224) target = $region40
        $region39: #{fc_forward.1} parent=35 // pred_region
          %227 = dma.done %s220, 81920
        $region40: #{fc_forward.1} parent=35 // pred_fallthru
          _
        %s228 = sand.u32 %s76, 1
        %s229 = scalar_lea.sflag [#allocation5], %s228
        %s230 = sand.u32 %s76, 1
        %s231 = smul.addr %s230, 8
        %s232 = scalar_lea.vmem [#allocation4], %s231
        // Predicated region
        $region41: #{fc_forward.1} parent=35 // pred_check
          %p233 = pneg %p89
        $region42: #{fc_forward.1} parent=35 // pred_check_branch
          %235 = sbr.rel (%p233) target = $region44
        $region43: #{fc_forward.1} parent=35 // pred_region
          %236 = dma.done %s229, 128
        $region44: #{fc_forward.1} parent=35 // pred_fallthru
          _
        %p237 = pneg %p37
        %p238 = pneg %p34
        %s239 = sand.u32 %s50, 1
        %s240 = scalar_lea.sflag [#allocation3], %s239
        %s241 = sand.u32 %s50, 1
        %s242 = smul.addr %s241, 5120
        %s243 = scalar_lea.vmem [#allocation2], %s242
        %p244 = pneg %p63
        %p245 = pneg %p60
        %s246 = sand.u32 %s76, 1
        %s247 = scalar_lea.sflag [#allocation5], %s246
        %s248 = sand.u32 %s76, 1
        %s249 = smul.addr %s248, 8
        %s250 = scalar_lea.vmem [#allocation4], %s249
        %p251 = pneg %p89
        %p252 = pneg %p86
        %s253 = smul.u32 128, %s21
        %p254 = scmp.lt.s32.totalorder %s253, 255
        %s255 = scalar_select %p254, %s253, 255
        %s256 = smul.addr %s255, 8
        %s257 = scalar_lea.vmem %s3, %s256
        %p258 = pneg %p115
        %p259 = pneg %p112
        %p260 = pneg %p141
        %p261 = pneg %p138
        %p262 = scmp.lt.s32.totalorder %s21, 1
        %s263 = scalar_select %p262, %s21, 1
        %s264 = smul.addr %s263, 8
        %s265 = scalar_lea.vmem %s4, %s264
        %s266 = smul.u32 8, %s21
        %s267 = smul.u32 8, %s21
        %s268 = smul.u32 128, %s21
        %p269 = scmp.lt.s32.totalorder %s268, 255
        %s270 = scalar_select %p269, %s268, 255
        %s271 = smul.addr %s270, 8
        %s272 = scalar_lea.vmem %s3, %s271
        %s273 = smul.u32 128, %s21
        %p274 = scmp.lt.s32.totalorder %s21, 1
        %s275 = scalar_select %p274, %s21, 1
        %s276 = smul.addr %s275, 8
        %s277 = scalar_lea.vmem %s4, %s276
        %v278 = vld [vmem:[%s0] sm:$0xff]
        %v279 = vld [vmem:[%s0 + $0x8] sm:$0xff]
        %v280 = vld [vmem:[%s0 + $0x10] sm:$0xff]
        %v281 = vld [vmem:[%s0 + $0x18] sm:$0xff]
        %v282 = vld [vmem:[%s0 + $0x20] sm:$0xff]
        %v283 = vld [vmem:[%s223] sm:$0xff]
        %v284 = vld [vmem:[%s223 + $0x8] sm:$0xff]
        %v285 = vld [vmem:[%s223 + $0x10] sm:$0xff]
        %v286 = vld [vmem:[%s223 + $0x18] sm:$0xff]
        %v287 = vld [vmem:[%s223 + $0x20] sm:$0xff]
        %v288 = vld [vmem:[%s223 + $0x28] sm:$0xff]
        %v289 = vld [vmem:[%s223 + $0x30] sm:$0xff]
        %v290 = vld [vmem:[%s223 + $0x38] sm:$0xff]
        %v291 = vld [vmem:[%s223 + $0x40] sm:$0xff]
        %v292 = vld [vmem:[%s223 + $0x48] sm:$0xff]
        %v293 = vld [vmem:[%s223 + $0x50] sm:$0xff]
        %v294 = vld [vmem:[%s223 + $0x58] sm:$0xff]
        %v295 = vld [vmem:[%s223 + $0x60] sm:$0xff]
        %v296 = vld [vmem:[%s223 + $0x68] sm:$0xff]
        %v297 = vld [vmem:[%s223 + $0x70] sm:$0xff]
        %v298 = vld [vmem:[%s223 + $0x78] sm:$0xff]
        %v299 = vld [vmem:[%s223 + $0x80] sm:$0xff]
        %v300 = vld [vmem:[%s223 + $0x88] sm:$0xff]
        %v301 = vld [vmem:[%s223 + $0x90] sm:$0xff]
        %v302 = vld [vmem:[%s223 + $0x98] sm:$0xff]
        %v303 = vld [vmem:[%s223 + $0xa0] sm:$0xff]
        %v304 = vld [vmem:[%s223 + $0xa8] sm:$0xff]
        %v305 = vld [vmem:[%s223 + $0xb0] sm:$0xff]
        %v306 = vld [vmem:[%s223 + $0xb8] sm:$0xff]
        %v307 = vld [vmem:[%s223 + $0xc0] sm:$0xff]
        %v308 = vld [vmem:[%s223 + $0xc8] sm:$0xff]
        %v309 = vld [vmem:[%s223 + $0xd0] sm:$0xff]
        %v310 = vld [vmem:[%s223 + $0xd8] sm:$0xff]
        %v311 = vld [vmem:[%s223 + $0xe0] sm:$0xff]
        %v312 = vld [vmem:[%s223 + $0xe8] sm:$0xff]
        %v313 = vld [vmem:[%s223 + $0xf0] sm:$0xff]
        %v314 = vld [vmem:[%s223 + $0xf8] sm:$0xff]
        %v315 = vld [vmem:[%s223 + $0x100] sm:$0xff]
        %v316 = vld [vmem:[%s223 + $0x108] sm:$0xff]
        %v317 = vld [vmem:[%s223 + $0x110] sm:$0xff]
        %v318 = vld [vmem:[%s223 + $0x118] sm:$0xff]
        %v319 = vld [vmem:[%s223 + $0x120] sm:$0xff]
        %v320 = vld [vmem:[%s223 + $0x128] sm:$0xff]
        %v321 = vld [vmem:[%s223 + $0x130] sm:$0xff]
        %v322 = vld [vmem:[%s223 + $0x138] sm:$0xff]
        %v323 = vld [vmem:[%s223 + $0x140] sm:$0xff]
        %v324 = vld [vmem:[%s223 + $0x148] sm:$0xff]
        %v325 = vld [vmem:[%s223 + $0x150] sm:$0xff]
        %v326 = vld [vmem:[%s223 + $0x158] sm:$0xff]
        %v327 = vld [vmem:[%s223 + $0x160] sm:$0xff]
        %v328 = vld [vmem:[%s223 + $0x168] sm:$0xff]
        %v329 = vld [vmem:[%s223 + $0x170] sm:$0xff]
        %v330 = vld [vmem:[%s223 + $0x178] sm:$0xff]
        %v331 = vld [vmem:[%s223 + $0x180] sm:$0xff]
        %v332 = vld [vmem:[%s223 + $0x188] sm:$0xff]
        %v333 = vld [vmem:[%s223 + $0x190] sm:$0xff]
        %v334 = vld [vmem:[%s223 + $0x198] sm:$0xff]
        %v335 = vld [vmem:[%s223 + $0x1a0] sm:$0xff]
        %v336 = vld [vmem:[%s223 + $0x1a8] sm:$0xff]
        %v337 = vld [vmem:[%s223 + $0x1b0] sm:$0xff]
        %v338 = vld [vmem:[%s223 + $0x1b8] sm:$0xff]
        %v339 = vld [vmem:[%s223 + $0x1c0] sm:$0xff]
        %v340 = vld [vmem:[%s223 + $0x1c8] sm:$0xff]
        %v341 = vld [vmem:[%s223 + $0x1d0] sm:$0xff]
        %v342 = vld [vmem:[%s223 + $0x1d8] sm:$0xff]
        %v343 = vld [vmem:[%s223 + $0x1e0] sm:$0xff]
        %v344 = vld [vmem:[%s223 + $0x1e8] sm:$0xff]
        %v345 = vld [vmem:[%s223 + $0x1f0] sm:$0xff]
        %v346 = vld [vmem:[%s223 + $0x1f8] sm:$0xff]
        %v347 = vld [vmem:[%s223 + $0x200] sm:$0xff]
        %v348 = vld [vmem:[%s223 + $0x208] sm:$0xff]
        %v349 = vld [vmem:[%s223 + $0x210] sm:$0xff]
        %v350 = vld [vmem:[%s223 + $0x218] sm:$0xff]
        %v351 = vld [vmem:[%s223 + $0x220] sm:$0xff]
        %v352 = vld [vmem:[%s223 + $0x228] sm:$0xff]
        %v353 = vld [vmem:[%s223 + $0x230] sm:$0xff]
        %v354 = vld [vmem:[%s223 + $0x238] sm:$0xff]
        %v355 = vld [vmem:[%s223 + $0x240] sm:$0xff]
        %v356 = vld [vmem:[%s223 + $0x248] sm:$0xff]
        %v357 = vld [vmem:[%s223 + $0x250] sm:$0xff]
        %v358 = vld [vmem:[%s223 + $0x258] sm:$0xff]
        %v359 = vld [vmem:[%s223 + $0x260] sm:$0xff]
        %v360 = vld [vmem:[%s223 + $0x268] sm:$0xff]
        %v361 = vld [vmem:[%s223 + $0x270] sm:$0xff]
        %v362 = vld [vmem:[%s223 + $0x278] sm:$0xff]
        %v363 = vld [vmem:[%s223 + $0x280] sm:$0xff]
        %v364 = vld [vmem:[%s223 + $0x288] sm:$0xff]
        %v365 = vld [vmem:[%s223 + $0x290] sm:$0xff]
        %v366 = vld [vmem:[%s223 + $0x298] sm:$0xff]
        %v367 = vld [vmem:[%s223 + $0x2a0] sm:$0xff]
        %v368 = vld [vmem:[%s223 + $0x2a8] sm:$0xff]
        %v369 = vld [vmem:[%s223 + $0x2b0] sm:$0xff]
        %v370 = vld [vmem:[%s223 + $0x2b8] sm:$0xff]
        %v371 = vld [vmem:[%s223 + $0x2c0] sm:$0xff]
        %v372 = vld [vmem:[%s223 + $0x2c8] sm:$0xff]
        %v373 = vld [vmem:[%s223 + $0x2d0] sm:$0xff]
        %v374 = vld [vmem:[%s223 + $0x2d8] sm:$0xff]
        %v375 = vld [vmem:[%s223 + $0x2e0] sm:$0xff]
        %v376 = vld [vmem:[%s223 + $0x2e8] sm:$0xff]
        %v377 = vld [vmem:[%s223 + $0x2f0] sm:$0xff]
        %v378 = vld [vmem:[%s223 + $0x2f8] sm:$0xff]
        %v379 = vld [vmem:[%s223 + $0x300] sm:$0xff]
        %v380 = vld [vmem:[%s223 + $0x308] sm:$0xff]
        %v381 = vld [vmem:[%s223 + $0x310] sm:$0xff]
        %v382 = vld [vmem:[%s223 + $0x318] sm:$0xff]
        %v383 = vld [vmem:[%s223 + $0x320] sm:$0xff]
        %v384 = vld [vmem:[%s223 + $0x328] sm:$0xff]
        %v385 = vld [vmem:[%s223 + $0x330] sm:$0xff]
        %v386 = vld [vmem:[%s223 + $0x338] sm:$0xff]
        %v387 = vld [vmem:[%s223 + $0x340] sm:$0xff]
        %v388 = vld [vmem:[%s223 + $0x348] sm:$0xff]
        %v389 = vld [vmem:[%s223 + $0x350] sm:$0xff]
        %v390 = vld [vmem:[%s223 + $0x358] sm:$0xff]
        %v391 = vld [vmem:[%s223 + $0x360] sm:$0xff]
        %v392 = vld [vmem:[%s223 + $0x368] sm:$0xff]
        %v393 = vld [vmem:[%s223 + $0x370] sm:$0xff]
        %v394 = vld [vmem:[%s223 + $0x378] sm:$0xff]
        %v395 = vld [vmem:[%s223 + $0x380] sm:$0xff]
        %v396 = vld [vmem:[%s223 + $0x388] sm:$0xff]
        %v397 = vld [vmem:[%s223 + $0x390] sm:$0xff]
        %v398 = vld [vmem:[%s223 + $0x398] sm:$0xff]
        %v399 = vld [vmem:[%s223 + $0x3a0] sm:$0xff]
        %v400 = vld [vmem:[%s223 + $0x3a8] sm:$0xff]
        %v401 = vld [vmem:[%s223 + $0x3b0] sm:$0xff]
        %v402 = vld [vmem:[%s223 + $0x3b8] sm:$0xff]
        %v403 = vld [vmem:[%s223 + $0x3c0] sm:$0xff]
        %v404 = vld [vmem:[%s223 + $0x3c8] sm:$0xff]
        %v405 = vld [vmem:[%s223 + $0x3d0] sm:$0xff]
        %v406 = vld [vmem:[%s223 + $0x3d8] sm:$0xff]
        %v407 = vld [vmem:[%s223 + $0x3e0] sm:$0xff]
        %v408 = vld [vmem:[%s223 + $0x3e8] sm:$0xff]
        %v409 = vld [vmem:[%s223 + $0x3f0] sm:$0xff]
        %v410 = vld [vmem:[%s223 + $0x3f8] sm:$0xff]
        %v411 = vld [vmem:[%s223 + $0x400] sm:$0xff]
        %v412 = vld [vmem:[%s223 + $0x408] sm:$0xff]
        %v413 = vld [vmem:[%s223 + $0x410] sm:$0xff]
        %v414 = vld [vmem:[%s223 + $0x418] sm:$0xff]
        %v415 = vld [vmem:[%s223 + $0x420] sm:$0xff]
        %v416 = vld [vmem:[%s223 + $0x428] sm:$0xff]
        %v417 = vld [vmem:[%s223 + $0x430] sm:$0xff]
        %v418 = vld [vmem:[%s223 + $0x438] sm:$0xff]
        %v419 = vld [vmem:[%s223 + $0x440] sm:$0xff]
        %v420 = vld [vmem:[%s223 + $0x448] sm:$0xff]
        %v421 = vld [vmem:[%s223 + $0x450] sm:$0xff]
        %v422 = vld [vmem:[%s223 + $0x458] sm:$0xff]
        %v423 = vld [vmem:[%s223 + $0x460] sm:$0xff]
        %v424 = vld [vmem:[%s223 + $0x468] sm:$0xff]
        %v425 = vld [vmem:[%s223 + $0x470] sm:$0xff]
        %v426 = vld [vmem:[%s223 + $0x478] sm:$0xff]
        %v427 = vld [vmem:[%s223 + $0x480] sm:$0xff]
        %v428 = vld [vmem:[%s223 + $0x488] sm:$0xff]
        %v429 = vld [vmem:[%s223 + $0x490] sm:$0xff]
        %v430 = vld [vmem:[%s223 + $0x498] sm:$0xff]
        %v431 = vld [vmem:[%s223 + $0x4a0] sm:$0xff]
        %v432 = vld [vmem:[%s223 + $0x4a8] sm:$0xff]
        %v433 = vld [vmem:[%s223 + $0x4b0] sm:$0xff]
        %v434 = vld [vmem:[%s223 + $0x4b8] sm:$0xff]
        %v435 = vld [vmem:[%s223 + $0x4c0] sm:$0xff]
        %v436 = vld [vmem:[%s223 + $0x4c8] sm:$0xff]
        %v437 = vld [vmem:[%s223 + $0x4d0] sm:$0xff]
        %v438 = vld [vmem:[%s223 + $0x4d8] sm:$0xff]
        %v439 = vld [vmem:[%s223 + $0x4e0] sm:$0xff]
        %v440 = vld [vmem:[%s223 + $0x4e8] sm:$0xff]
        %v441 = vld [vmem:[%s223 + $0x4f0] sm:$0xff]
        %v442 = vld [vmem:[%s223 + $0x4f8] sm:$0xff]
        %v443 = vld [vmem:[%s223 + $0x500] sm:$0xff]
        %v444 = vld [vmem:[%s223 + $0x508] sm:$0xff]
        %v445 = vld [vmem:[%s223 + $0x510] sm:$0xff]
        %v446 = vld [vmem:[%s223 + $0x518] sm:$0xff]
        %v447 = vld [vmem:[%s223 + $0x520] sm:$0xff]
        %v448 = vld [vmem:[%s223 + $0x528] sm:$0xff]
        %v449 = vld [vmem:[%s223 + $0x530] sm:$0xff]
        %v450 = vld [vmem:[%s223 + $0x538] sm:$0xff]
        %v451 = vld [vmem:[%s223 + $0x540] sm:$0xff]
        %v452 = vld [vmem:[%s223 + $0x548] sm:$0xff]
        %v453 = vld [vmem:[%s223 + $0x550] sm:$0xff]
        %v454 = vld [vmem:[%s223 + $0x558] sm:$0xff]
        %v455 = vld [vmem:[%s223 + $0x560] sm:$0xff]
        %v456 = vld [vmem:[%s223 + $0x568] sm:$0xff]
        %v457 = vld [vmem:[%s223 + $0x570] sm:$0xff]
        %v458 = vld [vmem:[%s223 + $0x578] sm:$0xff]
        %v459 = vld [vmem:[%s223 + $0x580] sm:$0xff]
        %v460 = vld [vmem:[%s223 + $0x588] sm:$0xff]
        %v461 = vld [vmem:[%s223 + $0x590] sm:$0xff]
        %v462 = vld [vmem:[%s223 + $0x598] sm:$0xff]
        %v463 = vld [vmem:[%s223 + $0x5a0] sm:$0xff]
        %v464 = vld [vmem:[%s223 + $0x5a8] sm:$0xff]
        %v465 = vld [vmem:[%s223 + $0x5b0] sm:$0xff]
        %v466 = vld [vmem:[%s223 + $0x5b8] sm:$0xff]
        %v467 = vld [vmem:[%s223 + $0x5c0] sm:$0xff]
        %v468 = vld [vmem:[%s223 + $0x5c8] sm:$0xff]
        %v469 = vld [vmem:[%s223 + $0x5d0] sm:$0xff]
        %v470 = vld [vmem:[%s223 + $0x5d8] sm:$0xff]
        %v471 = vld [vmem:[%s223 + $0x5e0] sm:$0xff]
        %v472 = vld [vmem:[%s223 + $0x5e8] sm:$0xff]
        %v473 = vld [vmem:[%s223 + $0x5f0] sm:$0xff]
        %v474 = vld [vmem:[%s223 + $0x5f8] sm:$0xff]
        %v475 = vld [vmem:[%s223 + $0x600] sm:$0xff]
        %v476 = vld [vmem:[%s223 + $0x608] sm:$0xff]
        %v477 = vld [vmem:[%s223 + $0x610] sm:$0xff]
        %v478 = vld [vmem:[%s223 + $0x618] sm:$0xff]
        %v479 = vld [vmem:[%s223 + $0x620] sm:$0xff]
        %v480 = vld [vmem:[%s223 + $0x628] sm:$0xff]
        %v481 = vld [vmem:[%s223 + $0x630] sm:$0xff]
        %v482 = vld [vmem:[%s223 + $0x638] sm:$0xff]
        %v483 = vld [vmem:[%s223 + $0x640] sm:$0xff]
        %v484 = vld [vmem:[%s223 + $0x648] sm:$0xff]
        %v485 = vld [vmem:[%s223 + $0x650] sm:$0xff]
        %v486 = vld [vmem:[%s223 + $0x658] sm:$0xff]
        %v487 = vld [vmem:[%s223 + $0x660] sm:$0xff]
        %v488 = vld [vmem:[%s223 + $0x668] sm:$0xff]
        %v489 = vld [vmem:[%s223 + $0x670] sm:$0xff]
        %v490 = vld [vmem:[%s223 + $0x678] sm:$0xff]
        %v491 = vld [vmem:[%s223 + $0x680] sm:$0xff]
        %v492 = vld [vmem:[%s223 + $0x688] sm:$0xff]
        %v493 = vld [vmem:[%s223 + $0x690] sm:$0xff]
        %v494 = vld [vmem:[%s223 + $0x698] sm:$0xff]
        %v495 = vld [vmem:[%s223 + $0x6a0] sm:$0xff]
        %v496 = vld [vmem:[%s223 + $0x6a8] sm:$0xff]
        %v497 = vld [vmem:[%s223 + $0x6b0] sm:$0xff]
        %v498 = vld [vmem:[%s223 + $0x6b8] sm:$0xff]
        %v499 = vld [vmem:[%s223 + $0x6c0] sm:$0xff]
        %v500 = vld [vmem:[%s223 + $0x6c8] sm:$0xff]
        %v501 = vld [vmem:[%s223 + $0x6d0] sm:$0xff]
        %v502 = vld [vmem:[%s223 + $0x6d8] sm:$0xff]
        %v503 = vld [vmem:[%s223 + $0x6e0] sm:$0xff]
        %v504 = vld [vmem:[%s223 + $0x6e8] sm:$0xff]
        %v505 = vld [vmem:[%s223 + $0x6f0] sm:$0xff]
        %v506 = vld [vmem:[%s223 + $0x6f8] sm:$0xff]
        %v507 = vld [vmem:[%s223 + $0x700] sm:$0xff]
        %v508 = vld [vmem:[%s223 + $0x708] sm:$0xff]
        %v509 = vld [vmem:[%s223 + $0x710] sm:$0xff]
        %v510 = vld [vmem:[%s223 + $0x718] sm:$0xff]
        %v511 = vld [vmem:[%s223 + $0x720] sm:$0xff]
        %v512 = vld [vmem:[%s223 + $0x728] sm:$0xff]
        %v513 = vld [vmem:[%s223 + $0x730] sm:$0xff]
        %v514 = vld [vmem:[%s223 + $0x738] sm:$0xff]
        %v515 = vld [vmem:[%s223 + $0x740] sm:$0xff]
        %v516 = vld [vmem:[%s223 + $0x748] sm:$0xff]
        %v517 = vld [vmem:[%s223 + $0x750] sm:$0xff]
        %v518 = vld [vmem:[%s223 + $0x758] sm:$0xff]
        %v519 = vld [vmem:[%s223 + $0x760] sm:$0xff]
        %v520 = vld [vmem:[%s223 + $0x768] sm:$0xff]
        %v521 = vld [vmem:[%s223 + $0x770] sm:$0xff]
        %v522 = vld [vmem:[%s223 + $0x778] sm:$0xff]
        %v523 = vld [vmem:[%s223 + $0x780] sm:$0xff]
        %v524 = vld [vmem:[%s223 + $0x788] sm:$0xff]
        %v525 = vld [vmem:[%s223 + $0x790] sm:$0xff]
        %v526 = vld [vmem:[%s223 + $0x798] sm:$0xff]
        %v527 = vld [vmem:[%s223 + $0x7a0] sm:$0xff]
        %v528 = vld [vmem:[%s223 + $0x7a8] sm:$0xff]
        %v529 = vld [vmem:[%s223 + $0x7b0] sm:$0xff]
        %v530 = vld [vmem:[%s223 + $0x7b8] sm:$0xff]
        %v531 = vld [vmem:[%s223 + $0x7c0] sm:$0xff]
        %v532 = vld [vmem:[%s223 + $0x7c8] sm:$0xff]
        %v533 = vld [vmem:[%s223 + $0x7d0] sm:$0xff]
        %v534 = vld [vmem:[%s223 + $0x7d8] sm:$0xff]
        %v535 = vld [vmem:[%s223 + $0x7e0] sm:$0xff]
        %v536 = vld [vmem:[%s223 + $0x7e8] sm:$0xff]
        %v537 = vld [vmem:[%s223 + $0x7f0] sm:$0xff]
        %v538 = vld [vmem:[%s223 + $0x7f8] sm:$0xff]
        %v539 = vld [vmem:[%s223 + $0x800] sm:$0xff]
        %v540 = vld [vmem:[%s223 + $0x808] sm:$0xff]
        %v541 = vld [vmem:[%s223 + $0x810] sm:$0xff]
        %v542 = vld [vmem:[%s223 + $0x818] sm:$0xff]
        %v543 = vld [vmem:[%s223 + $0x820] sm:$0xff]
        %v544 = vld [vmem:[%s223 + $0x828] sm:$0xff]
        %v545 = vld [vmem:[%s223 + $0x830] sm:$0xff]
        %v546 = vld [vmem:[%s223 + $0x838] sm:$0xff]
        %v547 = vld [vmem:[%s223 + $0x840] sm:$0xff]
        %v548 = vld [vmem:[%s223 + $0x848] sm:$0xff]
        %v549 = vld [vmem:[%s223 + $0x850] sm:$0xff]
        %v550 = vld [vmem:[%s223 + $0x858] sm:$0xff]
        %v551 = vld [vmem:[%s223 + $0x860] sm:$0xff]
        %v552 = vld [vmem:[%s223 + $0x868] sm:$0xff]
        %v553 = vld [vmem:[%s223 + $0x870] sm:$0xff]
        %v554 = vld [vmem:[%s223 + $0x878] sm:$0xff]
        %v555 = vld [vmem:[%s223 + $0x880] sm:$0xff]
        %v556 = vld [vmem:[%s223 + $0x888] sm:$0xff]
        %v557 = vld [vmem:[%s223 + $0x890] sm:$0xff]
        %v558 = vld [vmem:[%s223 + $0x898] sm:$0xff]
        %v559 = vld [vmem:[%s223 + $0x8a0] sm:$0xff]
        %v560 = vld [vmem:[%s223 + $0x8a8] sm:$0xff]
        %v561 = vld [vmem:[%s223 + $0x8b0] sm:$0xff]
        %v562 = vld [vmem:[%s223 + $0x8b8] sm:$0xff]
        %v563 = vld [vmem:[%s223 + $0x8c0] sm:$0xff]
        %v564 = vld [vmem:[%s223 + $0x8c8] sm:$0xff]
        %v565 = vld [vmem:[%s223 + $0x8d0] sm:$0xff]
        %v566 = vld [vmem:[%s223 + $0x8d8] sm:$0xff]
        %v567 = vld [vmem:[%s223 + $0x8e0] sm:$0xff]
        %v568 = vld [vmem:[%s223 + $0x8e8] sm:$0xff]
        %v569 = vld [vmem:[%s223 + $0x8f0] sm:$0xff]
        %v570 = vld [vmem:[%s223 + $0x8f8] sm:$0xff]
        %v571 = vld [vmem:[%s223 + $0x900] sm:$0xff]
        %v572 = vld [vmem:[%s223 + $0x908] sm:$0xff]
        %v573 = vld [vmem:[%s223 + $0x910] sm:$0xff]
        %v574 = vld [vmem:[%s223 + $0x918] sm:$0xff]
        %v575 = vld [vmem:[%s223 + $0x920] sm:$0xff]
        %v576 = vld [vmem:[%s223 + $0x928] sm:$0xff]
        %v577 = vld [vmem:[%s223 + $0x930] sm:$0xff]
        %v578 = vld [vmem:[%s223 + $0x938] sm:$0xff]
        %v579 = vld [vmem:[%s223 + $0x940] sm:$0xff]
        %v580 = vld [vmem:[%s223 + $0x948] sm:$0xff]
        %v581 = vld [vmem:[%s223 + $0x950] sm:$0xff]
        %v582 = vld [vmem:[%s223 + $0x958] sm:$0xff]
        %v583 = vld [vmem:[%s223 + $0x960] sm:$0xff]
        %v584 = vld [vmem:[%s223 + $0x968] sm:$0xff]
        %v585 = vld [vmem:[%s223 + $0x970] sm:$0xff]
        %v586 = vld [vmem:[%s223 + $0x978] sm:$0xff]
        %v587 = vld [vmem:[%s223 + $0x980] sm:$0xff]
        %v588 = vld [vmem:[%s223 + $0x988] sm:$0xff]
        %v589 = vld [vmem:[%s223 + $0x990] sm:$0xff]
        %v590 = vld [vmem:[%s223 + $0x998] sm:$0xff]
        %v591 = vld [vmem:[%s223 + $0x9a0] sm:$0xff]
        %v592 = vld [vmem:[%s223 + $0x9a8] sm:$0xff]
        %v593 = vld [vmem:[%s223 + $0x9b0] sm:$0xff]
        %v594 = vld [vmem:[%s223 + $0x9b8] sm:$0xff]
        %v595 = vld [vmem:[%s223 + $0x9c0] sm:$0xff]
        %v596 = vld [vmem:[%s223 + $0x9c8] sm:$0xff]
        %v597 = vld [vmem:[%s223 + $0x9d0] sm:$0xff]
        %v598 = vld [vmem:[%s223 + $0x9d8] sm:$0xff]
        %v599 = vld [vmem:[%s223 + $0x9e0] sm:$0xff]
        %v600 = vld [vmem:[%s223 + $0x9e8] sm:$0xff]
        %v601 = vld [vmem:[%s223 + $0x9f0] sm:$0xff]
        %v602 = vld [vmem:[%s223 + $0x9f8] sm:$0xff]
        %v603 = vld [vmem:[%s223 + $0xa00] sm:$0xff]
        %v604 = vld [vmem:[%s223 + $0xa08] sm:$0xff]
        %v605 = vld [vmem:[%s223 + $0xa10] sm:$0xff]
        %v606 = vld [vmem:[%s223 + $0xa18] sm:$0xff]
        %v607 = vld [vmem:[%s223 + $0xa20] sm:$0xff]
        %v608 = vld [vmem:[%s223 + $0xa28] sm:$0xff]
        %v609 = vld [vmem:[%s223 + $0xa30] sm:$0xff]
        %v610 = vld [vmem:[%s223 + $0xa38] sm:$0xff]
        %v611 = vld [vmem:[%s223 + $0xa40] sm:$0xff]
        %v612 = vld [vmem:[%s223 + $0xa48] sm:$0xff]
        %v613 = vld [vmem:[%s223 + $0xa50] sm:$0xff]
        %v614 = vld [vmem:[%s223 + $0xa58] sm:$0xff]
        %v615 = vld [vmem:[%s223 + $0xa60] sm:$0xff]
        %v616 = vld [vmem:[%s223 + $0xa68] sm:$0xff]
        %v617 = vld [vmem:[%s223 + $0xa70] sm:$0xff]
        %v618 = vld [vmem:[%s223 + $0xa78] sm:$0xff]
        %v619 = vld [vmem:[%s223 + $0xa80] sm:$0xff]
        %v620 = vld [vmem:[%s223 + $0xa88] sm:$0xff]
        %v621 = vld [vmem:[%s223 + $0xa90] sm:$0xff]
        %v622 = vld [vmem:[%s223 + $0xa98] sm:$0xff]
        %v623 = vld [vmem:[%s223 + $0xaa0] sm:$0xff]
        %v624 = vld [vmem:[%s223 + $0xaa8] sm:$0xff]
        %v625 = vld [vmem:[%s223 + $0xab0] sm:$0xff]
        %v626 = vld [vmem:[%s223 + $0xab8] sm:$0xff]
        %v627 = vld [vmem:[%s223 + $0xac0] sm:$0xff]
        %v628 = vld [vmem:[%s223 + $0xac8] sm:$0xff]
        %v629 = vld [vmem:[%s223 + $0xad0] sm:$0xff]
        %v630 = vld [vmem:[%s223 + $0xad8] sm:$0xff]
        %v631 = vld [vmem:[%s223 + $0xae0] sm:$0xff]
        %v632 = vld [vmem:[%s223 + $0xae8] sm:$0xff]
        %v633 = vld [vmem:[%s223 + $0xaf0] sm:$0xff]
        %v634 = vld [vmem:[%s223 + $0xaf8] sm:$0xff]
        %v635 = vld [vmem:[%s223 + $0xb00] sm:$0xff]
        %v636 = vld [vmem:[%s223 + $0xb08] sm:$0xff]
        %v637 = vld [vmem:[%s223 + $0xb10] sm:$0xff]
        %v638 = vld [vmem:[%s223 + $0xb18] sm:$0xff]
        %v639 = vld [vmem:[%s223 + $0xb20] sm:$0xff]
        %v640 = vld [vmem:[%s223 + $0xb28] sm:$0xff]
        %v641 = vld [vmem:[%s223 + $0xb30] sm:$0xff]
        %v642 = vld [vmem:[%s223 + $0xb38] sm:$0xff]
        %v643 = vld [vmem:[%s223 + $0xb40] sm:$0xff]
        %v644 = vld [vmem:[%s223 + $0xb48] sm:$0xff]
        %v645 = vld [vmem:[%s223 + $0xb50] sm:$0xff]
        %v646 = vld [vmem:[%s223 + $0xb58] sm:$0xff]
        %v647 = vld [vmem:[%s223 + $0xb60] sm:$0xff]
        %v648 = vld [vmem:[%s223 + $0xb68] sm:$0xff]
        %v649 = vld [vmem:[%s223 + $0xb70] sm:$0xff]
        %v650 = vld [vmem:[%s223 + $0xb78] sm:$0xff]
        %v651 = vld [vmem:[%s223 + $0xb80] sm:$0xff]
        %v652 = vld [vmem:[%s223 + $0xb88] sm:$0xff]
        %v653 = vld [vmem:[%s223 + $0xb90] sm:$0xff]
        %v654 = vld [vmem:[%s223 + $0xb98] sm:$0xff]
        %v655 = vld [vmem:[%s223 + $0xba0] sm:$0xff]
        %v656 = vld [vmem:[%s223 + $0xba8] sm:$0xff]
        %v657 = vld [vmem:[%s223 + $0xbb0] sm:$0xff]
        %v658 = vld [vmem:[%s223 + $0xbb8] sm:$0xff]
        %v659 = vld [vmem:[%s223 + $0xbc0] sm:$0xff]
        %v660 = vld [vmem:[%s223 + $0xbc8] sm:$0xff]
        %v661 = vld [vmem:[%s223 + $0xbd0] sm:$0xff]
        %v662 = vld [vmem:[%s223 + $0xbd8] sm:$0xff]
        %v663 = vld [vmem:[%s223 + $0xbe0] sm:$0xff]
        %v664 = vld [vmem:[%s223 + $0xbe8] sm:$0xff]
        %v665 = vld [vmem:[%s223 + $0xbf0] sm:$0xff]
        %v666 = vld [vmem:[%s223 + $0xbf8] sm:$0xff]
        %v667 = vld [vmem:[%s223 + $0xc00] sm:$0xff]
        %v668 = vld [vmem:[%s223 + $0xc08] sm:$0xff]
        %v669 = vld [vmem:[%s223 + $0xc10] sm:$0xff]
        %v670 = vld [vmem:[%s223 + $0xc18] sm:$0xff]
        %v671 = vld [vmem:[%s223 + $0xc20] sm:$0xff]
        %v672 = vld [vmem:[%s223 + $0xc28] sm:$0xff]
        %v673 = vld [vmem:[%s223 + $0xc30] sm:$0xff]
        %v674 = vld [vmem:[%s223 + $0xc38] sm:$0xff]
        %v675 = vld [vmem:[%s223 + $0xc40] sm:$0xff]
        %v676 = vld [vmem:[%s223 + $0xc48] sm:$0xff]
        %v677 = vld [vmem:[%s223 + $0xc50] sm:$0xff]
        %v678 = vld [vmem:[%s223 + $0xc58] sm:$0xff]
        %v679 = vld [vmem:[%s223 + $0xc60] sm:$0xff]
        %v680 = vld [vmem:[%s223 + $0xc68] sm:$0xff]
        %v681 = vld [vmem:[%s223 + $0xc70] sm:$0xff]
        %v682 = vld [vmem:[%s223 + $0xc78] sm:$0xff]
        %v683 = vld [vmem:[%s223 + $0xc80] sm:$0xff]
        %v684 = vld [vmem:[%s223 + $0xc88] sm:$0xff]
        %v685 = vld [vmem:[%s223 + $0xc90] sm:$0xff]
        %v686 = vld [vmem:[%s223 + $0xc98] sm:$0xff]
        %v687 = vld [vmem:[%s223 + $0xca0] sm:$0xff]
        %v688 = vld [vmem:[%s223 + $0xca8] sm:$0xff]
        %v689 = vld [vmem:[%s223 + $0xcb0] sm:$0xff]
        %v690 = vld [vmem:[%s223 + $0xcb8] sm:$0xff]
        %v691 = vld [vmem:[%s223 + $0xcc0] sm:$0xff]
        %v692 = vld [vmem:[%s223 + $0xcc8] sm:$0xff]
        %v693 = vld [vmem:[%s223 + $0xcd0] sm:$0xff]
        %v694 = vld [vmem:[%s223 + $0xcd8] sm:$0xff]
        %v695 = vld [vmem:[%s223 + $0xce0] sm:$0xff]
        %v696 = vld [vmem:[%s223 + $0xce8] sm:$0xff]
        %v697 = vld [vmem:[%s223 + $0xcf0] sm:$0xff]
        %v698 = vld [vmem:[%s223 + $0xcf8] sm:$0xff]
        %v699 = vld [vmem:[%s223 + $0xd00] sm:$0xff]
        %v700 = vld [vmem:[%s223 + $0xd08] sm:$0xff]
        %v701 = vld [vmem:[%s223 + $0xd10] sm:$0xff]
        %v702 = vld [vmem:[%s223 + $0xd18] sm:$0xff]
        %v703 = vld [vmem:[%s223 + $0xd20] sm:$0xff]
        %v704 = vld [vmem:[%s223 + $0xd28] sm:$0xff]
        %v705 = vld [vmem:[%s223 + $0xd30] sm:$0xff]
        %v706 = vld [vmem:[%s223 + $0xd38] sm:$0xff]
        %v707 = vld [vmem:[%s223 + $0xd40] sm:$0xff]
        %v708 = vld [vmem:[%s223 + $0xd48] sm:$0xff]
        %v709 = vld [vmem:[%s223 + $0xd50] sm:$0xff]
        %v710 = vld [vmem:[%s223 + $0xd58] sm:$0xff]
        %v711 = vld [vmem:[%s223 + $0xd60] sm:$0xff]
        %v712 = vld [vmem:[%s223 + $0xd68] sm:$0xff]
        %v713 = vld [vmem:[%s223 + $0xd70] sm:$0xff]
        %v714 = vld [vmem:[%s223 + $0xd78] sm:$0xff]
        %v715 = vld [vmem:[%s223 + $0xd80] sm:$0xff]
        %v716 = vld [vmem:[%s223 + $0xd88] sm:$0xff]
        %v717 = vld [vmem:[%s223 + $0xd90] sm:$0xff]
        %v718 = vld [vmem:[%s223 + $0xd98] sm:$0xff]
        %v719 = vld [vmem:[%s223 + $0xda0] sm:$0xff]
        %v720 = vld [vmem:[%s223 + $0xda8] sm:$0xff]
        %v721 = vld [vmem:[%s223 + $0xdb0] sm:$0xff]
        %v722 = vld [vmem:[%s223 + $0xdb8] sm:$0xff]
        %v723 = vld [vmem:[%s223 + $0xdc0] sm:$0xff]
        %v724 = vld [vmem:[%s223 + $0xdc8] sm:$0xff]
        %v725 = vld [vmem:[%s223 + $0xdd0] sm:$0xff]
        %v726 = vld [vmem:[%s223 + $0xdd8] sm:$0xff]
        %v727 = vld [vmem:[%s223 + $0xde0] sm:$0xff]
        %v728 = vld [vmem:[%s223 + $0xde8] sm:$0xff]
        %v729 = vld [vmem:[%s223 + $0xdf0] sm:$0xff]
        %v730 = vld [vmem:[%s223 + $0xdf8] sm:$0xff]
        %v731 = vld [vmem:[%s223 + $0xe00] sm:$0xff]
        %v732 = vld [vmem:[%s223 + $0xe08] sm:$0xff]
        %v733 = vld [vmem:[%s223 + $0xe10] sm:$0xff]
        %v734 = vld [vmem:[%s223 + $0xe18] sm:$0xff]
        %v735 = vld [vmem:[%s223 + $0xe20] sm:$0xff]
        %v736 = vld [vmem:[%s223 + $0xe28] sm:$0xff]
        %v737 = vld [vmem:[%s223 + $0xe30] sm:$0xff]
        %v738 = vld [vmem:[%s223 + $0xe38] sm:$0xff]
        %v739 = vld [vmem:[%s223 + $0xe40] sm:$0xff]
        %v740 = vld [vmem:[%s223 + $0xe48] sm:$0xff]
        %v741 = vld [vmem:[%s223 + $0xe50] sm:$0xff]
        %v742 = vld [vmem:[%s223 + $0xe58] sm:$0xff]
        %v743 = vld [vmem:[%s223 + $0xe60] sm:$0xff]
        %v744 = vld [vmem:[%s223 + $0xe68] sm:$0xff]
        %v745 = vld [vmem:[%s223 + $0xe70] sm:$0xff]
        %v746 = vld [vmem:[%s223 + $0xe78] sm:$0xff]
        %v747 = vld [vmem:[%s223 + $0xe80] sm:$0xff]
        %v748 = vld [vmem:[%s223 + $0xe88] sm:$0xff]
        %v749 = vld [vmem:[%s223 + $0xe90] sm:$0xff]
        %v750 = vld [vmem:[%s223 + $0xe98] sm:$0xff]
        %v751 = vld [vmem:[%s223 + $0xea0] sm:$0xff]
        %v752 = vld [vmem:[%s223 + $0xea8] sm:$0xff]
        %v753 = vld [vmem:[%s223 + $0xeb0] sm:$0xff]
        %v754 = vld [vmem:[%s223 + $0xeb8] sm:$0xff]
        %v755 = vld [vmem:[%s223 + $0xec0] sm:$0xff]
        %v756 = vld [vmem:[%s223 + $0xec8] sm:$0xff]
        %v757 = vld [vmem:[%s223 + $0xed0] sm:$0xff]
        %v758 = vld [vmem:[%s223 + $0xed8] sm:$0xff]
        %v759 = vld [vmem:[%s223 + $0xee0] sm:$0xff]
        %v760 = vld [vmem:[%s223 + $0xee8] sm:$0xff]
        %v761 = vld [vmem:[%s223 + $0xef0] sm:$0xff]
        %v762 = vld [vmem:[%s223 + $0xef8] sm:$0xff]
        %v763 = vld [vmem:[%s223 + $0xf00] sm:$0xff]
        %v764 = vld [vmem:[%s223 + $0xf08] sm:$0xff]
        %v765 = vld [vmem:[%s223 + $0xf10] sm:$0xff]
        %v766 = vld [vmem:[%s223 + $0xf18] sm:$0xff]
        %v767 = vld [vmem:[%s223 + $0xf20] sm:$0xff]
        %v768 = vld [vmem:[%s223 + $0xf28] sm:$0xff]
        %v769 = vld [vmem:[%s223 + $0xf30] sm:$0xff]
        %v770 = vld [vmem:[%s223 + $0xf38] sm:$0xff]
        %v771 = vld [vmem:[%s223 + $0xf40] sm:$0xff]
        %v772 = vld [vmem:[%s223 + $0xf48] sm:$0xff]
        %v773 = vld [vmem:[%s223 + $0xf50] sm:$0xff]
        %v774 = vld [vmem:[%s223 + $0xf58] sm:$0xff]
        %v775 = vld [vmem:[%s223 + $0xf60] sm:$0xff]
        %v776 = vld [vmem:[%s223 + $0xf68] sm:$0xff]
        %v777 = vld [vmem:[%s223 + $0xf70] sm:$0xff]
        %v778 = vld [vmem:[%s223 + $0xf78] sm:$0xff]
        %v779 = vld [vmem:[%s223 + $0xf80] sm:$0xff]
        %v780 = vld [vmem:[%s223 + $0xf88] sm:$0xff]
        %v781 = vld [vmem:[%s223 + $0xf90] sm:$0xff]
        %v782 = vld [vmem:[%s223 + $0xf98] sm:$0xff]
        %v783 = vld [vmem:[%s223 + $0xfa0] sm:$0xff]
        %v784 = vld [vmem:[%s223 + $0xfa8] sm:$0xff]
        %v785 = vld [vmem:[%s223 + $0xfb0] sm:$0xff]
        %v786 = vld [vmem:[%s223 + $0xfb8] sm:$0xff]
        %v787 = vld [vmem:[%s223 + $0xfc0] sm:$0xff]
        %v788 = vld [vmem:[%s223 + $0xfc8] sm:$0xff]
        %v789 = vld [vmem:[%s223 + $0xfd0] sm:$0xff]
        %v790 = vld [vmem:[%s223 + $0xfd8] sm:$0xff]
        %v791 = vld [vmem:[%s223 + $0xfe0] sm:$0xff]
        %v792 = vld [vmem:[%s223 + $0xfe8] sm:$0xff]
        %v793 = vld [vmem:[%s223 + $0xff0] sm:$0xff]
        %v794 = vld [vmem:[%s223 + $0xff8] sm:$0xff]
        %v795 = vld [vmem:[%s223 + $0x1000] sm:$0xff]
        %v796 = vld [vmem:[%s223 + $0x1008] sm:$0xff]
        %v797 = vld [vmem:[%s223 + $0x1010] sm:$0xff]
        %v798 = vld [vmem:[%s223 + $0x1018] sm:$0xff]
        %v799 = vld [vmem:[%s223 + $0x1020] sm:$0xff]
        %v800 = vld [vmem:[%s223 + $0x1028] sm:$0xff]
        %v801 = vld [vmem:[%s223 + $0x1030] sm:$0xff]
        %v802 = vld [vmem:[%s223 + $0x1038] sm:$0xff]
        %v803 = vld [vmem:[%s223 + $0x1040] sm:$0xff]
        %v804 = vld [vmem:[%s223 + $0x1048] sm:$0xff]
        %v805 = vld [vmem:[%s223 + $0x1050] sm:$0xff]
        %v806 = vld [vmem:[%s223 + $0x1058] sm:$0xff]
        %v807 = vld [vmem:[%s223 + $0x1060] sm:$0xff]
        %v808 = vld [vmem:[%s223 + $0x1068] sm:$0xff]
        %v809 = vld [vmem:[%s223 + $0x1070] sm:$0xff]
        %v810 = vld [vmem:[%s223 + $0x1078] sm:$0xff]
        %v811 = vld [vmem:[%s223 + $0x1080] sm:$0xff]
        %v812 = vld [vmem:[%s223 + $0x1088] sm:$0xff]
        %v813 = vld [vmem:[%s223 + $0x1090] sm:$0xff]
        %v814 = vld [vmem:[%s223 + $0x1098] sm:$0xff]
        %v815 = vld [vmem:[%s223 + $0x10a0] sm:$0xff]
        %v816 = vld [vmem:[%s223 + $0x10a8] sm:$0xff]
        %v817 = vld [vmem:[%s223 + $0x10b0] sm:$0xff]
        %v818 = vld [vmem:[%s223 + $0x10b8] sm:$0xff]
        %v819 = vld [vmem:[%s223 + $0x10c0] sm:$0xff]
        %v820 = vld [vmem:[%s223 + $0x10c8] sm:$0xff]
        %v821 = vld [vmem:[%s223 + $0x10d0] sm:$0xff]
        %v822 = vld [vmem:[%s223 + $0x10d8] sm:$0xff]
        %v823 = vld [vmem:[%s223 + $0x10e0] sm:$0xff]
        %v824 = vld [vmem:[%s223 + $0x10e8] sm:$0xff]
        %v825 = vld [vmem:[%s223 + $0x10f0] sm:$0xff]
        %v826 = vld [vmem:[%s223 + $0x10f8] sm:$0xff]
        %v827 = vld [vmem:[%s223 + $0x1100] sm:$0xff]
        %v828 = vld [vmem:[%s223 + $0x1108] sm:$0xff]
        %v829 = vld [vmem:[%s223 + $0x1110] sm:$0xff]
        %v830 = vld [vmem:[%s223 + $0x1118] sm:$0xff]
        %v831 = vld [vmem:[%s223 + $0x1120] sm:$0xff]
        %v832 = vld [vmem:[%s223 + $0x1128] sm:$0xff]
        %v833 = vld [vmem:[%s223 + $0x1130] sm:$0xff]
        %v834 = vld [vmem:[%s223 + $0x1138] sm:$0xff]
        %v835 = vld [vmem:[%s223 + $0x1140] sm:$0xff]
        %v836 = vld [vmem:[%s223 + $0x1148] sm:$0xff]
        %v837 = vld [vmem:[%s223 + $0x1150] sm:$0xff]
        %v838 = vld [vmem:[%s223 + $0x1158] sm:$0xff]
        %v839 = vld [vmem:[%s223 + $0x1160] sm:$0xff]
        %v840 = vld [vmem:[%s223 + $0x1168] sm:$0xff]
        %v841 = vld [vmem:[%s223 + $0x1170] sm:$0xff]
        %v842 = vld [vmem:[%s223 + $0x1178] sm:$0xff]
        %v843 = vld [vmem:[%s223 + $0x1180] sm:$0xff]
        %v844 = vld [vmem:[%s223 + $0x1188] sm:$0xff]
        %v845 = vld [vmem:[%s223 + $0x1190] sm:$0xff]
        %v846 = vld [vmem:[%s223 + $0x1198] sm:$0xff]
        %v847 = vld [vmem:[%s223 + $0x11a0] sm:$0xff]
        %v848 = vld [vmem:[%s223 + $0x11a8] sm:$0xff]
        %v849 = vld [vmem:[%s223 + $0x11b0] sm:$0xff]
        %v850 = vld [vmem:[%s223 + $0x11b8] sm:$0xff]
        %v851 = vld [vmem:[%s223 + $0x11c0] sm:$0xff]
        %v852 = vld [vmem:[%s223 + $0x11c8] sm:$0xff]
        %v853 = vld [vmem:[%s223 + $0x11d0] sm:$0xff]
        %v854 = vld [vmem:[%s223 + $0x11d8] sm:$0xff]
        %v855 = vld [vmem:[%s223 + $0x11e0] sm:$0xff]
        %v856 = vld [vmem:[%s223 + $0x11e8] sm:$0xff]
        %v857 = vld [vmem:[%s223 + $0x11f0] sm:$0xff]
        %v858 = vld [vmem:[%s223 + $0x11f8] sm:$0xff]
        %v859 = vld [vmem:[%s223 + $0x1200] sm:$0xff]
        %v860 = vld [vmem:[%s223 + $0x1208] sm:$0xff]
        %v861 = vld [vmem:[%s223 + $0x1210] sm:$0xff]
        %v862 = vld [vmem:[%s223 + $0x1218] sm:$0xff]
        %v863 = vld [vmem:[%s223 + $0x1220] sm:$0xff]
        %v864 = vld [vmem:[%s223 + $0x1228] sm:$0xff]
        %v865 = vld [vmem:[%s223 + $0x1230] sm:$0xff]
        %v866 = vld [vmem:[%s223 + $0x1238] sm:$0xff]
        %v867 = vld [vmem:[%s223 + $0x1240] sm:$0xff]
        %v868 = vld [vmem:[%s223 + $0x1248] sm:$0xff]
        %v869 = vld [vmem:[%s223 + $0x1250] sm:$0xff]
        %v870 = vld [vmem:[%s223 + $0x1258] sm:$0xff]
        %v871 = vld [vmem:[%s223 + $0x1260] sm:$0xff]
        %v872 = vld [vmem:[%s223 + $0x1268] sm:$0xff]
        %v873 = vld [vmem:[%s223 + $0x1270] sm:$0xff]
        %v874 = vld [vmem:[%s223 + $0x1278] sm:$0xff]
        %v875 = vld [vmem:[%s223 + $0x1280] sm:$0xff]
        %v876 = vld [vmem:[%s223 + $0x1288] sm:$0xff]
        %v877 = vld [vmem:[%s223 + $0x1290] sm:$0xff]
        %v878 = vld [vmem:[%s223 + $0x1298] sm:$0xff]
        %v879 = vld [vmem:[%s223 + $0x12a0] sm:$0xff]
        %v880 = vld [vmem:[%s223 + $0x12a8] sm:$0xff]
        %v881 = vld [vmem:[%s223 + $0x12b0] sm:$0xff]
        %v882 = vld [vmem:[%s223 + $0x12b8] sm:$0xff]
        %v883 = vld [vmem:[%s223 + $0x12c0] sm:$0xff]
        %v884 = vld [vmem:[%s223 + $0x12c8] sm:$0xff]
        %v885 = vld [vmem:[%s223 + $0x12d0] sm:$0xff]
        %v886 = vld [vmem:[%s223 + $0x12d8] sm:$0xff]
        %v887 = vld [vmem:[%s223 + $0x12e0] sm:$0xff]
        %v888 = vld [vmem:[%s223 + $0x12e8] sm:$0xff]
        %v889 = vld [vmem:[%s223 + $0x12f0] sm:$0xff]
        %v890 = vld [vmem:[%s223 + $0x12f8] sm:$0xff]
        %v891 = vld [vmem:[%s223 + $0x1300] sm:$0xff]
        %v892 = vld [vmem:[%s223 + $0x1308] sm:$0xff]
        %v893 = vld [vmem:[%s223 + $0x1310] sm:$0xff]
        %v894 = vld [vmem:[%s223 + $0x1318] sm:$0xff]
        %v895 = vld [vmem:[%s223 + $0x1320] sm:$0xff]
        %v896 = vld [vmem:[%s223 + $0x1328] sm:$0xff]
        %v897 = vld [vmem:[%s223 + $0x1330] sm:$0xff]
        %v898 = vld [vmem:[%s223 + $0x1338] sm:$0xff]
        %v899 = vld [vmem:[%s223 + $0x1340] sm:$0xff]
        %v900 = vld [vmem:[%s223 + $0x1348] sm:$0xff]
        %v901 = vld [vmem:[%s223 + $0x1350] sm:$0xff]
        %v902 = vld [vmem:[%s223 + $0x1358] sm:$0xff]
        %v903 = vld [vmem:[%s223 + $0x1360] sm:$0xff]
        %v904 = vld [vmem:[%s223 + $0x1368] sm:$0xff]
        %v905 = vld [vmem:[%s223 + $0x1370] sm:$0xff]
        %v906 = vld [vmem:[%s223 + $0x1378] sm:$0xff]
        %v907 = vld [vmem:[%s223 + $0x1380] sm:$0xff]
        %v908 = vld [vmem:[%s223 + $0x1388] sm:$0xff]
        %v909 = vld [vmem:[%s223 + $0x1390] sm:$0xff]
        %v910 = vld [vmem:[%s223 + $0x1398] sm:$0xff]
        %v911 = vld [vmem:[%s223 + $0x13a0] sm:$0xff]
        %v912 = vld [vmem:[%s223 + $0x13a8] sm:$0xff]
        %v913 = vld [vmem:[%s223 + $0x13b0] sm:$0xff]
        %v914 = vld [vmem:[%s223 + $0x13b8] sm:$0xff]
        %v915 = vld [vmem:[%s223 + $0x13c0] sm:$0xff]
        %v916 = vld [vmem:[%s223 + $0x13c8] sm:$0xff]
        %v917 = vld [vmem:[%s223 + $0x13d0] sm:$0xff]
        %v918 = vld [vmem:[%s223 + $0x13d8] sm:$0xff]
        %v919 = vld [vmem:[%s223 + $0x13e0] sm:$0xff]
        %v920 = vld [vmem:[%s223 + $0x13e8] sm:$0xff]
        %v921 = vld [vmem:[%s223 + $0x13f0] sm:$0xff]
        %v922 = vld [vmem:[%s223 + $0x13f8] sm:$0xff]
        %v923 = vld [vmem:[%s232] sm:$0xff]
        %v925 = vlaneseq
        %v926 = vshrl.u32 %v925, 7
        %v927 = vsub.s32 0, %v926
        %v928 = vrot.slane %v923, %v927
        %v929 = vlaneseq
        %v930 = vshrl.u32 %v929, 7
        %v931 = vsub.s32 1, %v930
        %v932 = vrot.slane %v923, %v931
        %v933 = vlaneseq
        %v934 = vshrl.u32 %v933, 7
        %v935 = vsub.s32 2, %v934
        %v936 = vrot.slane %v923, %v935
        %v937 = vlaneseq
        %v938 = vshrl.u32 %v937, 7
        %v939 = vsub.s32 3, %v938
        %v940 = vrot.slane %v923, %v939
        %v941 = vlaneseq
        %v942 = vshrl.u32 %v941, 7
        %v943 = vsub.s32 4, %v942
        %v944 = vrot.slane %v923, %v943
        %v945 = vlaneseq
        %v946 = vshrl.u32 %v945, 7
        %v947 = vsub.s32 5, %v946
        %v948 = vrot.slane %v923, %v947
        %v949 = vlaneseq
        %v950 = vshrl.u32 %v949, 7
        %v951 = vsub.s32 6, %v950
        %v952 = vrot.slane %v923, %v951
        %v953 = vlaneseq
        %v954 = vshrl.u32 %v953, 7
        %v955 = vsub.s32 7, %v954
        %v956 = vrot.slane %v923, %v955
        %v970 = vunpack.c.l.b16 %v278
        %v971 = vunpack.c.h.b16 %v278
        %v972 = vunpack.c.l.b16 %v279
        %v973 = vunpack.c.h.b16 %v279
        %v974 = vunpack.c.l.b16 %v280
        %v975 = vunpack.c.h.b16 %v280
        %v976 = vunpack.c.l.b16 %v281
        %v977 = vunpack.c.h.b16 %v281
        %v978 = vunpack.c.l.b16 %v282
        %v979 = vunpack.c.h.b16 %v282
        %v980 = vpack.c.b16 %v970, %v970
        %v981 = vpack.c.b16 %v971, %v971
        %v982 = vpack.c.b16 %v972, %v972
        %v983 = vpack.c.b16 %v973, %v973
        %v984 = vpack.c.b16 %v974, %v974
        %v985 = vpack.c.b16 %v975, %v975
        %v986 = vpack.c.b16 %v976, %v976
        %v987 = vpack.c.b16 %v977, %v977
        %v988 = vpack.c.b16 %v978, %v978
        %v989 = vpack.c.b16 %v979, %v979
        %v1640 = vunpack.c.l.b16 %v283
        %v1641 = vunpack.c.h.b16 %v283
        %v1642 = vunpack.c.l.b16 %v284
        %v1643 = vunpack.c.h.b16 %v284
        %v1644 = vunpack.c.l.b16 %v285
        %v1645 = vunpack.c.h.b16 %v285
        %v1646 = vunpack.c.l.b16 %v286
        %v1647 = vunpack.c.h.b16 %v286
        %v1648 = vunpack.c.l.b16 %v287
        %v1649 = vunpack.c.h.b16 %v287
        %v1650 = vunpack.c.l.b16 %v288
        %v1651 = vunpack.c.h.b16 %v288
        %v1652 = vunpack.c.l.b16 %v289
        %v1653 = vunpack.c.h.b16 %v289
        %v1654 = vunpack.c.l.b16 %v290
        %v1655 = vunpack.c.h.b16 %v290
        %v1656 = vunpack.c.l.b16 %v291
        %v1657 = vunpack.c.h.b16 %v291
        %v1658 = vunpack.c.l.b16 %v292
        %v1659 = vunpack.c.h.b16 %v292
        %v1660 = vunpack.c.l.b16 %v293
        %v1661 = vunpack.c.h.b16 %v293
        %v1662 = vunpack.c.l.b16 %v294
        %v1663 = vunpack.c.h.b16 %v294
        %v1664 = vunpack.c.l.b16 %v295
        %v1665 = vunpack.c.h.b16 %v295
        %v1666 = vunpack.c.l.b16 %v296
        %v1667 = vunpack.c.h.b16 %v296
        %v1668 = vunpack.c.l.b16 %v297
        %v1669 = vunpack.c.h.b16 %v297
        %v1670 = vunpack.c.l.b16 %v298
        %v1671 = vunpack.c.h.b16 %v298
        %v1672 = vunpack.c.l.b16 %v299
        %v1673 = vunpack.c.h.b16 %v299
        %v1674 = vunpack.c.l.b16 %v300
        %v1675 = vunpack.c.h.b16 %v300
        %v1676 = vunpack.c.l.b16 %v301
        %v1677 = vunpack.c.h.b16 %v301
        %v1678 = vunpack.c.l.b16 %v302
        %v1679 = vunpack.c.h.b16 %v302
        %v1680 = vunpack.c.l.b16 %v303
        %v1681 = vunpack.c.h.b16 %v303
        %v1682 = vunpack.c.l.b16 %v304
        %v1683 = vunpack.c.h.b16 %v304
        %v1684 = vunpack.c.l.b16 %v305
        %v1685 = vunpack.c.h.b16 %v305
        %v1686 = vunpack.c.l.b16 %v306
        %v1687 = vunpack.c.h.b16 %v306
        %v1688 = vunpack.c.l.b16 %v307
        %v1689 = vunpack.c.h.b16 %v307
        %v1690 = vunpack.c.l.b16 %v308
        %v1691 = vunpack.c.h.b16 %v308
        %v1692 = vunpack.c.l.b16 %v309
        %v1693 = vunpack.c.h.b16 %v309
        %v1694 = vunpack.c.l.b16 %v310
        %v1695 = vunpack.c.h.b16 %v310
        %v1696 = vunpack.c.l.b16 %v311
        %v1697 = vunpack.c.h.b16 %v311
        %v1698 = vunpack.c.l.b16 %v312
        %v1699 = vunpack.c.h.b16 %v312
        %v1700 = vunpack.c.l.b16 %v313
        %v1701 = vunpack.c.h.b16 %v313
        %v1702 = vunpack.c.l.b16 %v314
        %v1703 = vunpack.c.h.b16 %v314
        %v1704 = vunpack.c.l.b16 %v315
        %v1705 = vunpack.c.h.b16 %v315
        %v1706 = vunpack.c.l.b16 %v316
        %v1707 = vunpack.c.h.b16 %v316
        %v1708 = vunpack.c.l.b16 %v317
        %v1709 = vunpack.c.h.b16 %v317
        %v1710 = vunpack.c.l.b16 %v318
        %v1711 = vunpack.c.h.b16 %v318
        %v1712 = vunpack.c.l.b16 %v319
        %v1713 = vunpack.c.h.b16 %v319
        %v1714 = vunpack.c.l.b16 %v320
        %v1715 = vunpack.c.h.b16 %v320
        %v1716 = vunpack.c.l.b16 %v321
        %v1717 = vunpack.c.h.b16 %v321
        %v1718 = vunpack.c.l.b16 %v322
        %v1719 = vunpack.c.h.b16 %v322
        %v1720 = vunpack.c.l.b16 %v323
        %v1721 = vunpack.c.h.b16 %v323
        %v1722 = vunpack.c.l.b16 %v324
        %v1723 = vunpack.c.h.b16 %v324
        %v1724 = vunpack.c.l.b16 %v325
        %v1725 = vunpack.c.h.b16 %v325
        %v1726 = vunpack.c.l.b16 %v326
        %v1727 = vunpack.c.h.b16 %v326
        %v1728 = vunpack.c.l.b16 %v327
        %v1729 = vunpack.c.h.b16 %v327
        %v1730 = vunpack.c.l.b16 %v328
        %v1731 = vunpack.c.h.b16 %v328
        %v1732 = vunpack.c.l.b16 %v329
        %v1733 = vunpack.c.h.b16 %v329
        %v1734 = vunpack.c.l.b16 %v330
        %v1735 = vunpack.c.h.b16 %v330
        %v1736 = vunpack.c.l.b16 %v331
        %v1737 = vunpack.c.h.b16 %v331
        %v1738 = vunpack.c.l.b16 %v332
        %v1739 = vunpack.c.h.b16 %v332
        %v1740 = vunpack.c.l.b16 %v333
        %v1741 = vunpack.c.h.b16 %v333
        %v1742 = vunpack.c.l.b16 %v334
        %v1743 = vunpack.c.h.b16 %v334
        %v1744 = vunpack.c.l.b16 %v335
        %v1745 = vunpack.c.h.b16 %v335
        %v1746 = vunpack.c.l.b16 %v336
        %v1747 = vunpack.c.h.b16 %v336
        %v1748 = vunpack.c.l.b16 %v337
        %v1749 = vunpack.c.h.b16 %v337
        %v1750 = vunpack.c.l.b16 %v338
        %v1751 = vunpack.c.h.b16 %v338
        %v1752 = vunpack.c.l.b16 %v339
        %v1753 = vunpack.c.h.b16 %v339
        %v1754 = vunpack.c.l.b16 %v340
        %v1755 = vunpack.c.h.b16 %v340
        %v1756 = vunpack.c.l.b16 %v341
        %v1757 = vunpack.c.h.b16 %v341
        %v1758 = vunpack.c.l.b16 %v342
        %v1759 = vunpack.c.h.b16 %v342
        %v1760 = vunpack.c.l.b16 %v343
        %v1761 = vunpack.c.h.b16 %v343
        %v1762 = vunpack.c.l.b16 %v344
        %v1763 = vunpack.c.h.b16 %v344
        %v1764 = vunpack.c.l.b16 %v345
        %v1765 = vunpack.c.h.b16 %v345
        %v1766 = vunpack.c.l.b16 %v346
        %v1767 = vunpack.c.h.b16 %v346
        %v1768 = vunpack.c.l.b16 %v347
        %v1769 = vunpack.c.h.b16 %v347
        %v1770 = vunpack.c.l.b16 %v348
        %v1771 = vunpack.c.h.b16 %v348
        %v1772 = vunpack.c.l.b16 %v349
        %v1773 = vunpack.c.h.b16 %v349
        %v1774 = vunpack.c.l.b16 %v350
        %v1775 = vunpack.c.h.b16 %v350
        %v1776 = vunpack.c.l.b16 %v351
        %v1777 = vunpack.c.h.b16 %v351
        %v1778 = vunpack.c.l.b16 %v352
        %v1779 = vunpack.c.h.b16 %v352
        %v1780 = vunpack.c.l.b16 %v353
        %v1781 = vunpack.c.h.b16 %v353
        %v1782 = vunpack.c.l.b16 %v354
        %v1783 = vunpack.c.h.b16 %v354
        %v1784 = vunpack.c.l.b16 %v355
        %v1785 = vunpack.c.h.b16 %v355
        %v1786 = vunpack.c.l.b16 %v356
        %v1787 = vunpack.c.h.b16 %v356
        %v1788 = vunpack.c.l.b16 %v357
        %v1789 = vunpack.c.h.b16 %v357
        %v1790 = vunpack.c.l.b16 %v358
        %v1791 = vunpack.c.h.b16 %v358
        %v1792 = vunpack.c.l.b16 %v359
        %v1793 = vunpack.c.h.b16 %v359
        %v1794 = vunpack.c.l.b16 %v360
        %v1795 = vunpack.c.h.b16 %v360
        %v1796 = vunpack.c.l.b16 %v361
        %v1797 = vunpack.c.h.b16 %v361
        %v1798 = vunpack.c.l.b16 %v362
        %v1799 = vunpack.c.h.b16 %v362
        %v1800 = vunpack.c.l.b16 %v363
        %v1801 = vunpack.c.h.b16 %v363
        %v1802 = vunpack.c.l.b16 %v364
        %v1803 = vunpack.c.h.b16 %v364
        %v1804 = vunpack.c.l.b16 %v365
        %v1805 = vunpack.c.h.b16 %v365
        %v1806 = vunpack.c.l.b16 %v366
        %v1807 = vunpack.c.h.b16 %v366
        %v1808 = vunpack.c.l.b16 %v367
        %v1809 = vunpack.c.h.b16 %v367
        %v1810 = vunpack.c.l.b16 %v368
        %v1811 = vunpack.c.h.b16 %v368
        %v1812 = vunpack.c.l.b16 %v369
        %v1813 = vunpack.c.h.b16 %v369
        %v1814 = vunpack.c.l.b16 %v370
        %v1815 = vunpack.c.h.b16 %v370
        %v1816 = vunpack.c.l.b16 %v371
        %v1817 = vunpack.c.h.b16 %v371
        %v1818 = vunpack.c.l.b16 %v372
        %v1819 = vunpack.c.h.b16 %v372
        %v1820 = vunpack.c.l.b16 %v373
        %v1821 = vunpack.c.h.b16 %v373
        %v1822 = vunpack.c.l.b16 %v374
        %v1823 = vunpack.c.h.b16 %v374
        %v1824 = vunpack.c.l.b16 %v375
        %v1825 = vunpack.c.h.b16 %v375
        %v1826 = vunpack.c.l.b16 %v376
        %v1827 = vunpack.c.h.b16 %v376
        %v1828 = vunpack.c.l.b16 %v377
        %v1829 = vunpack.c.h.b16 %v377
        %v1830 = vunpack.c.l.b16 %v378
        %v1831 = vunpack.c.h.b16 %v378
        %v1832 = vunpack.c.l.b16 %v379
        %v1833 = vunpack.c.h.b16 %v379
        %v1834 = vunpack.c.l.b16 %v380
        %v1835 = vunpack.c.h.b16 %v380
        %v1836 = vunpack.c.l.b16 %v381
        %v1837 = vunpack.c.h.b16 %v381
        %v1838 = vunpack.c.l.b16 %v382
        %v1839 = vunpack.c.h.b16 %v382
        %v1840 = vunpack.c.l.b16 %v383
        %v1841 = vunpack.c.h.b16 %v383
        %v1842 = vunpack.c.l.b16 %v384
        %v1843 = vunpack.c.h.b16 %v384
        %v1844 = vunpack.c.l.b16 %v385
        %v1845 = vunpack.c.h.b16 %v385
        %v1846 = vunpack.c.l.b16 %v386
        %v1847 = vunpack.c.h.b16 %v386
        %v1848 = vunpack.c.l.b16 %v387
        %v1849 = vunpack.c.h.b16 %v387
        %v1850 = vunpack.c.l.b16 %v388
        %v1851 = vunpack.c.h.b16 %v388
        %v1852 = vunpack.c.l.b16 %v389
        %v1853 = vunpack.c.h.b16 %v389
        %v1854 = vunpack.c.l.b16 %v390
        %v1855 = vunpack.c.h.b16 %v390
        %v1856 = vunpack.c.l.b16 %v391
        %v1857 = vunpack.c.h.b16 %v391
        %v1858 = vunpack.c.l.b16 %v392
        %v1859 = vunpack.c.h.b16 %v392
        %v1860 = vunpack.c.l.b16 %v393
        %v1861 = vunpack.c.h.b16 %v393
        %v1862 = vunpack.c.l.b16 %v394
        %v1863 = vunpack.c.h.b16 %v394
        %v1864 = vunpack.c.l.b16 %v395
        %v1865 = vunpack.c.h.b16 %v395
        %v1866 = vunpack.c.l.b16 %v396
        %v1867 = vunpack.c.h.b16 %v396
        %v1868 = vunpack.c.l.b16 %v397
        %v1869 = vunpack.c.h.b16 %v397
        %v1870 = vunpack.c.l.b16 %v398
        %v1871 = vunpack.c.h.b16 %v398
        %v1872 = vunpack.c.l.b16 %v399
        %v1873 = vunpack.c.h.b16 %v399
        %v1874 = vunpack.c.l.b16 %v400
        %v1875 = vunpack.c.h.b16 %v400
        %v1876 = vunpack.c.l.b16 %v401
        %v1877 = vunpack.c.h.b16 %v401
        %v1878 = vunpack.c.l.b16 %v402
        %v1879 = vunpack.c.h.b16 %v402
        %v1880 = vunpack.c.l.b16 %v403
        %v1881 = vunpack.c.h.b16 %v403
        %v1882 = vunpack.c.l.b16 %v404
        %v1883 = vunpack.c.h.b16 %v404
        %v1884 = vunpack.c.l.b16 %v405
        %v1885 = vunpack.c.h.b16 %v405
        %v1886 = vunpack.c.l.b16 %v406
        %v1887 = vunpack.c.h.b16 %v406
        %v1888 = vunpack.c.l.b16 %v407
        %v1889 = vunpack.c.h.b16 %v407
        %v1890 = vunpack.c.l.b16 %v408
        %v1891 = vunpack.c.h.b16 %v408
        %v1892 = vunpack.c.l.b16 %v409
        %v1893 = vunpack.c.h.b16 %v409
        %v1894 = vunpack.c.l.b16 %v410
        %v1895 = vunpack.c.h.b16 %v410
        %v1896 = vunpack.c.l.b16 %v411
        %v1897 = vunpack.c.h.b16 %v411
        %v1898 = vunpack.c.l.b16 %v412
        %v1899 = vunpack.c.h.b16 %v412
        %v1900 = vunpack.c.l.b16 %v413
        %v1901 = vunpack.c.h.b16 %v413
        %v1902 = vunpack.c.l.b16 %v414
        %v1903 = vunpack.c.h.b16 %v414
        %v1904 = vunpack.c.l.b16 %v415
        %v1905 = vunpack.c.h.b16 %v415
        %v1906 = vunpack.c.l.b16 %v416
        %v1907 = vunpack.c.h.b16 %v416
        %v1908 = vunpack.c.l.b16 %v417
        %v1909 = vunpack.c.h.b16 %v417
        %v1910 = vunpack.c.l.b16 %v418
        %v1911 = vunpack.c.h.b16 %v418
        %v1912 = vunpack.c.l.b16 %v419
        %v1913 = vunpack.c.h.b16 %v419
        %v1914 = vunpack.c.l.b16 %v420
        %v1915 = vunpack.c.h.b16 %v420
        %v1916 = vunpack.c.l.b16 %v421
        %v1917 = vunpack.c.h.b16 %v421
        %v1918 = vunpack.c.l.b16 %v422
        %v1919 = vunpack.c.h.b16 %v422
        %v1920 = vunpack.c.l.b16 %v423
        %v1921 = vunpack.c.h.b16 %v423
        %v1922 = vunpack.c.l.b16 %v424
        %v1923 = vunpack.c.h.b16 %v424
        %v1924 = vunpack.c.l.b16 %v425
        %v1925 = vunpack.c.h.b16 %v425
        %v1926 = vunpack.c.l.b16 %v426
        %v1927 = vunpack.c.h.b16 %v426
        %v1928 = vunpack.c.l.b16 %v427
        %v1929 = vunpack.c.h.b16 %v427
        %v1930 = vunpack.c.l.b16 %v428
        %v1931 = vunpack.c.h.b16 %v428
        %v1932 = vunpack.c.l.b16 %v429
        %v1933 = vunpack.c.h.b16 %v429
        %v1934 = vunpack.c.l.b16 %v430
        %v1935 = vunpack.c.h.b16 %v430
        %v1936 = vunpack.c.l.b16 %v431
        %v1937 = vunpack.c.h.b16 %v431
        %v1938 = vunpack.c.l.b16 %v432
        %v1939 = vunpack.c.h.b16 %v432
        %v1940 = vunpack.c.l.b16 %v433
        %v1941 = vunpack.c.h.b16 %v433
        %v1942 = vunpack.c.l.b16 %v434
        %v1943 = vunpack.c.h.b16 %v434
        %v1944 = vunpack.c.l.b16 %v435
        %v1945 = vunpack.c.h.b16 %v435
        %v1946 = vunpack.c.l.b16 %v436
        %v1947 = vunpack.c.h.b16 %v436
        %v1948 = vunpack.c.l.b16 %v437
        %v1949 = vunpack.c.h.b16 %v437
        %v1950 = vunpack.c.l.b16 %v438
        %v1951 = vunpack.c.h.b16 %v438
        %v1952 = vunpack.c.l.b16 %v439
        %v1953 = vunpack.c.h.b16 %v439
        %v1954 = vunpack.c.l.b16 %v440
        %v1955 = vunpack.c.h.b16 %v440
        %v1956 = vunpack.c.l.b16 %v441
        %v1957 = vunpack.c.h.b16 %v441
        %v1958 = vunpack.c.l.b16 %v442
        %v1959 = vunpack.c.h.b16 %v442
        %v1960 = vunpack.c.l.b16 %v443
        %v1961 = vunpack.c.h.b16 %v443
        %v1962 = vunpack.c.l.b16 %v444
        %v1963 = vunpack.c.h.b16 %v444
        %v1964 = vunpack.c.l.b16 %v445
        %v1965 = vunpack.c.h.b16 %v445
        %v1966 = vunpack.c.l.b16 %v446
        %v1967 = vunpack.c.h.b16 %v446
        %v1968 = vunpack.c.l.b16 %v447
        %v1969 = vunpack.c.h.b16 %v447
        %v1970 = vunpack.c.l.b16 %v448
        %v1971 = vunpack.c.h.b16 %v448
        %v1972 = vunpack.c.l.b16 %v449
        %v1973 = vunpack.c.h.b16 %v449
        %v1974 = vunpack.c.l.b16 %v450
        %v1975 = vunpack.c.h.b16 %v450
        %v1976 = vunpack.c.l.b16 %v451
        %v1977 = vunpack.c.h.b16 %v451
        %v1978 = vunpack.c.l.b16 %v452
        %v1979 = vunpack.c.h.b16 %v452
        %v1980 = vunpack.c.l.b16 %v453
        %v1981 = vunpack.c.h.b16 %v453
        %v1982 = vunpack.c.l.b16 %v454
        %v1983 = vunpack.c.h.b16 %v454
        %v1984 = vunpack.c.l.b16 %v455
        %v1985 = vunpack.c.h.b16 %v455
        %v1986 = vunpack.c.l.b16 %v456
        %v1987 = vunpack.c.h.b16 %v456
        %v1988 = vunpack.c.l.b16 %v457
        %v1989 = vunpack.c.h.b16 %v457
        %v1990 = vunpack.c.l.b16 %v458
        %v1991 = vunpack.c.h.b16 %v458
        %v1992 = vunpack.c.l.b16 %v459
        %v1993 = vunpack.c.h.b16 %v459
        %v1994 = vunpack.c.l.b16 %v460
        %v1995 = vunpack.c.h.b16 %v460
        %v1996 = vunpack.c.l.b16 %v461
        %v1997 = vunpack.c.h.b16 %v461
        %v1998 = vunpack.c.l.b16 %v462
        %v1999 = vunpack.c.h.b16 %v462
        %v2000 = vunpack.c.l.b16 %v463
        %v2001 = vunpack.c.h.b16 %v463
        %v2002 = vunpack.c.l.b16 %v464
        %v2003 = vunpack.c.h.b16 %v464
        %v2004 = vunpack.c.l.b16 %v465
        %v2005 = vunpack.c.h.b16 %v465
        %v2006 = vunpack.c.l.b16 %v466
        %v2007 = vunpack.c.h.b16 %v466
        %v2008 = vunpack.c.l.b16 %v467
        %v2009 = vunpack.c.h.b16 %v467
        %v2010 = vunpack.c.l.b16 %v468
        %v2011 = vunpack.c.h.b16 %v468
        %v2012 = vunpack.c.l.b16 %v469
        %v2013 = vunpack.c.h.b16 %v469
        %v2014 = vunpack.c.l.b16 %v470
        %v2015 = vunpack.c.h.b16 %v470
        %v2016 = vunpack.c.l.b16 %v471
        %v2017 = vunpack.c.h.b16 %v471
        %v2018 = vunpack.c.l.b16 %v472
        %v2019 = vunpack.c.h.b16 %v472
        %v2020 = vunpack.c.l.b16 %v473
        %v2021 = vunpack.c.h.b16 %v473
        %v2022 = vunpack.c.l.b16 %v474
        %v2023 = vunpack.c.h.b16 %v474
        %v2024 = vunpack.c.l.b16 %v475
        %v2025 = vunpack.c.h.b16 %v475
        %v2026 = vunpack.c.l.b16 %v476
        %v2027 = vunpack.c.h.b16 %v476
        %v2028 = vunpack.c.l.b16 %v477
        %v2029 = vunpack.c.h.b16 %v477
        %v2030 = vunpack.c.l.b16 %v478
        %v2031 = vunpack.c.h.b16 %v478
        %v2032 = vunpack.c.l.b16 %v479
        %v2033 = vunpack.c.h.b16 %v479
        %v2034 = vunpack.c.l.b16 %v480
        %v2035 = vunpack.c.h.b16 %v480
        %v2036 = vunpack.c.l.b16 %v481
        %v2037 = vunpack.c.h.b16 %v481
        %v2038 = vunpack.c.l.b16 %v482
        %v2039 = vunpack.c.h.b16 %v482
        %v2040 = vunpack.c.l.b16 %v483
        %v2041 = vunpack.c.h.b16 %v483
        %v2042 = vunpack.c.l.b16 %v484
        %v2043 = vunpack.c.h.b16 %v484
        %v2044 = vunpack.c.l.b16 %v485
        %v2045 = vunpack.c.h.b16 %v485
        %v2046 = vunpack.c.l.b16 %v486
        %v2047 = vunpack.c.h.b16 %v486
        %v2048 = vunpack.c.l.b16 %v487
        %v2049 = vunpack.c.h.b16 %v487
        %v2050 = vunpack.c.l.b16 %v488
        %v2051 = vunpack.c.h.b16 %v488
        %v2052 = vunpack.c.l.b16 %v489
        %v2053 = vunpack.c.h.b16 %v489
        %v2054 = vunpack.c.l.b16 %v490
        %v2055 = vunpack.c.h.b16 %v490
        %v2056 = vunpack.c.l.b16 %v491
        %v2057 = vunpack.c.h.b16 %v491
        %v2058 = vunpack.c.l.b16 %v492
        %v2059 = vunpack.c.h.b16 %v492
        %v2060 = vunpack.c.l.b16 %v493
        %v2061 = vunpack.c.h.b16 %v493
        %v2062 = vunpack.c.l.b16 %v494
        %v2063 = vunpack.c.h.b16 %v494
        %v2064 = vunpack.c.l.b16 %v495
        %v2065 = vunpack.c.h.b16 %v495
        %v2066 = vunpack.c.l.b16 %v496
        %v2067 = vunpack.c.h.b16 %v496
        %v2068 = vunpack.c.l.b16 %v497
        %v2069 = vunpack.c.h.b16 %v497
        %v2070 = vunpack.c.l.b16 %v498
        %v2071 = vunpack.c.h.b16 %v498
        %v2072 = vunpack.c.l.b16 %v499
        %v2073 = vunpack.c.h.b16 %v499
        %v2074 = vunpack.c.l.b16 %v500
        %v2075 = vunpack.c.h.b16 %v500
        %v2076 = vunpack.c.l.b16 %v501
        %v2077 = vunpack.c.h.b16 %v501
        %v2078 = vunpack.c.l.b16 %v502
        %v2079 = vunpack.c.h.b16 %v502
        %v2080 = vunpack.c.l.b16 %v503
        %v2081 = vunpack.c.h.b16 %v503
        %v2082 = vunpack.c.l.b16 %v504
        %v2083 = vunpack.c.h.b16 %v504
        %v2084 = vunpack.c.l.b16 %v505
        %v2085 = vunpack.c.h.b16 %v505
        %v2086 = vunpack.c.l.b16 %v506
        %v2087 = vunpack.c.h.b16 %v506
        %v2088 = vunpack.c.l.b16 %v507
        %v2089 = vunpack.c.h.b16 %v507
        %v2090 = vunpack.c.l.b16 %v508
        %v2091 = vunpack.c.h.b16 %v508
        %v2092 = vunpack.c.l.b16 %v509
        %v2093 = vunpack.c.h.b16 %v509
        %v2094 = vunpack.c.l.b16 %v510
        %v2095 = vunpack.c.h.b16 %v510
        %v2096 = vunpack.c.l.b16 %v511
        %v2097 = vunpack.c.h.b16 %v511
        %v2098 = vunpack.c.l.b16 %v512
        %v2099 = vunpack.c.h.b16 %v512
        %v2100 = vunpack.c.l.b16 %v513
        %v2101 = vunpack.c.h.b16 %v513
        %v2102 = vunpack.c.l.b16 %v514
        %v2103 = vunpack.c.h.b16 %v514
        %v2104 = vunpack.c.l.b16 %v515
        %v2105 = vunpack.c.h.b16 %v515
        %v2106 = vunpack.c.l.b16 %v516
        %v2107 = vunpack.c.h.b16 %v516
        %v2108 = vunpack.c.l.b16 %v517
        %v2109 = vunpack.c.h.b16 %v517
        %v2110 = vunpack.c.l.b16 %v518
        %v2111 = vunpack.c.h.b16 %v518
        %v2112 = vunpack.c.l.b16 %v519
        %v2113 = vunpack.c.h.b16 %v519
        %v2114 = vunpack.c.l.b16 %v520
        %v2115 = vunpack.c.h.b16 %v520
        %v2116 = vunpack.c.l.b16 %v521
        %v2117 = vunpack.c.h.b16 %v521
        %v2118 = vunpack.c.l.b16 %v522
        %v2119 = vunpack.c.h.b16 %v522
        %v2120 = vunpack.c.l.b16 %v523
        %v2121 = vunpack.c.h.b16 %v523
        %v2122 = vunpack.c.l.b16 %v524
        %v2123 = vunpack.c.h.b16 %v524
        %v2124 = vunpack.c.l.b16 %v525
        %v2125 = vunpack.c.h.b16 %v525
        %v2126 = vunpack.c.l.b16 %v526
        %v2127 = vunpack.c.h.b16 %v526
        %v2128 = vunpack.c.l.b16 %v527
        %v2129 = vunpack.c.h.b16 %v527
        %v2130 = vunpack.c.l.b16 %v528
        %v2131 = vunpack.c.h.b16 %v528
        %v2132 = vunpack.c.l.b16 %v529
        %v2133 = vunpack.c.h.b16 %v529
        %v2134 = vunpack.c.l.b16 %v530
        %v2135 = vunpack.c.h.b16 %v530
        %v2136 = vunpack.c.l.b16 %v531
        %v2137 = vunpack.c.h.b16 %v531
        %v2138 = vunpack.c.l.b16 %v532
        %v2139 = vunpack.c.h.b16 %v532
        %v2140 = vunpack.c.l.b16 %v533
        %v2141 = vunpack.c.h.b16 %v533
        %v2142 = vunpack.c.l.b16 %v534
        %v2143 = vunpack.c.h.b16 %v534
        %v2144 = vunpack.c.l.b16 %v535
        %v2145 = vunpack.c.h.b16 %v535
        %v2146 = vunpack.c.l.b16 %v536
        %v2147 = vunpack.c.h.b16 %v536
        %v2148 = vunpack.c.l.b16 %v537
        %v2149 = vunpack.c.h.b16 %v537
        %v2150 = vunpack.c.l.b16 %v538
        %v2151 = vunpack.c.h.b16 %v538
        %v2152 = vunpack.c.l.b16 %v539
        %v2153 = vunpack.c.h.b16 %v539
        %v2154 = vunpack.c.l.b16 %v540
        %v2155 = vunpack.c.h.b16 %v540
        %v2156 = vunpack.c.l.b16 %v541
        %v2157 = vunpack.c.h.b16 %v541
        %v2158 = vunpack.c.l.b16 %v542
        %v2159 = vunpack.c.h.b16 %v542
        %v2160 = vunpack.c.l.b16 %v543
        %v2161 = vunpack.c.h.b16 %v543
        %v2162 = vunpack.c.l.b16 %v544
        %v2163 = vunpack.c.h.b16 %v544
        %v2164 = vunpack.c.l.b16 %v545
        %v2165 = vunpack.c.h.b16 %v545
        %v2166 = vunpack.c.l.b16 %v546
        %v2167 = vunpack.c.h.b16 %v546
        %v2168 = vunpack.c.l.b16 %v547
        %v2169 = vunpack.c.h.b16 %v547
        %v2170 = vunpack.c.l.b16 %v548
        %v2171 = vunpack.c.h.b16 %v548
        %v2172 = vunpack.c.l.b16 %v549
        %v2173 = vunpack.c.h.b16 %v549
        %v2174 = vunpack.c.l.b16 %v550
        %v2175 = vunpack.c.h.b16 %v550
        %v2176 = vunpack.c.l.b16 %v551
        %v2177 = vunpack.c.h.b16 %v551
        %v2178 = vunpack.c.l.b16 %v552
        %v2179 = vunpack.c.h.b16 %v552
        %v2180 = vunpack.c.l.b16 %v553
        %v2181 = vunpack.c.h.b16 %v553
        %v2182 = vunpack.c.l.b16 %v554
        %v2183 = vunpack.c.h.b16 %v554
        %v2184 = vunpack.c.l.b16 %v555
        %v2185 = vunpack.c.h.b16 %v555
        %v2186 = vunpack.c.l.b16 %v556
        %v2187 = vunpack.c.h.b16 %v556
        %v2188 = vunpack.c.l.b16 %v557
        %v2189 = vunpack.c.h.b16 %v557
        %v2190 = vunpack.c.l.b16 %v558
        %v2191 = vunpack.c.h.b16 %v558
        %v2192 = vunpack.c.l.b16 %v559
        %v2193 = vunpack.c.h.b16 %v559
        %v2194 = vunpack.c.l.b16 %v560
        %v2195 = vunpack.c.h.b16 %v560
        %v2196 = vunpack.c.l.b16 %v561
        %v2197 = vunpack.c.h.b16 %v561
        %v2198 = vunpack.c.l.b16 %v562
        %v2199 = vunpack.c.h.b16 %v562
        %v2200 = vunpack.c.l.b16 %v563
        %v2201 = vunpack.c.h.b16 %v563
        %v2202 = vunpack.c.l.b16 %v564
        %v2203 = vunpack.c.h.b16 %v564
        %v2204 = vunpack.c.l.b16 %v565
        %v2205 = vunpack.c.h.b16 %v565
        %v2206 = vunpack.c.l.b16 %v566
        %v2207 = vunpack.c.h.b16 %v566
        %v2208 = vunpack.c.l.b16 %v567
        %v2209 = vunpack.c.h.b16 %v567
        %v2210 = vunpack.c.l.b16 %v568
        %v2211 = vunpack.c.h.b16 %v568
        %v2212 = vunpack.c.l.b16 %v569
        %v2213 = vunpack.c.h.b16 %v569
        %v2214 = vunpack.c.l.b16 %v570
        %v2215 = vunpack.c.h.b16 %v570
        %v2216 = vunpack.c.l.b16 %v571
        %v2217 = vunpack.c.h.b16 %v571
        %v2218 = vunpack.c.l.b16 %v572
        %v2219 = vunpack.c.h.b16 %v572
        %v2220 = vunpack.c.l.b16 %v573
        %v2221 = vunpack.c.h.b16 %v573
        %v2222 = vunpack.c.l.b16 %v574
        %v2223 = vunpack.c.h.b16 %v574
        %v2224 = vunpack.c.l.b16 %v575
        %v2225 = vunpack.c.h.b16 %v575
        %v2226 = vunpack.c.l.b16 %v576
        %v2227 = vunpack.c.h.b16 %v576
        %v2228 = vunpack.c.l.b16 %v577
        %v2229 = vunpack.c.h.b16 %v577
        %v2230 = vunpack.c.l.b16 %v578
        %v2231 = vunpack.c.h.b16 %v578
        %v2232 = vunpack.c.l.b16 %v579
        %v2233 = vunpack.c.h.b16 %v579
        %v2234 = vunpack.c.l.b16 %v580
        %v2235 = vunpack.c.h.b16 %v580
        %v2236 = vunpack.c.l.b16 %v581
        %v2237 = vunpack.c.h.b16 %v581
        %v2238 = vunpack.c.l.b16 %v582
        %v2239 = vunpack.c.h.b16 %v582
        %v2240 = vunpack.c.l.b16 %v583
        %v2241 = vunpack.c.h.b16 %v583
        %v2242 = vunpack.c.l.b16 %v584
        %v2243 = vunpack.c.h.b16 %v584
        %v2244 = vunpack.c.l.b16 %v585
        %v2245 = vunpack.c.h.b16 %v585
        %v2246 = vunpack.c.l.b16 %v586
        %v2247 = vunpack.c.h.b16 %v586
        %v2248 = vunpack.c.l.b16 %v587
        %v2249 = vunpack.c.h.b16 %v587
        %v2250 = vunpack.c.l.b16 %v588
        %v2251 = vunpack.c.h.b16 %v588
        %v2252 = vunpack.c.l.b16 %v589
        %v2253 = vunpack.c.h.b16 %v589
        %v2254 = vunpack.c.l.b16 %v590
        %v2255 = vunpack.c.h.b16 %v590
        %v2256 = vunpack.c.l.b16 %v591
        %v2257 = vunpack.c.h.b16 %v591
        %v2258 = vunpack.c.l.b16 %v592
        %v2259 = vunpack.c.h.b16 %v592
        %v2260 = vunpack.c.l.b16 %v593
        %v2261 = vunpack.c.h.b16 %v593
        %v2262 = vunpack.c.l.b16 %v594
        %v2263 = vunpack.c.h.b16 %v594
        %v2264 = vunpack.c.l.b16 %v595
        %v2265 = vunpack.c.h.b16 %v595
        %v2266 = vunpack.c.l.b16 %v596
        %v2267 = vunpack.c.h.b16 %v596
        %v2268 = vunpack.c.l.b16 %v597
        %v2269 = vunpack.c.h.b16 %v597
        %v2270 = vunpack.c.l.b16 %v598
        %v2271 = vunpack.c.h.b16 %v598
        %v2272 = vunpack.c.l.b16 %v599
        %v2273 = vunpack.c.h.b16 %v599
        %v2274 = vunpack.c.l.b16 %v600
        %v2275 = vunpack.c.h.b16 %v600
        %v2276 = vunpack.c.l.b16 %v601
        %v2277 = vunpack.c.h.b16 %v601
        %v2278 = vunpack.c.l.b16 %v602
        %v2279 = vunpack.c.h.b16 %v602
        %v2280 = vunpack.c.l.b16 %v603
        %v2281 = vunpack.c.h.b16 %v603
        %v2282 = vunpack.c.l.b16 %v604
        %v2283 = vunpack.c.h.b16 %v604
        %v2284 = vunpack.c.l.b16 %v605
        %v2285 = vunpack.c.h.b16 %v605
        %v2286 = vunpack.c.l.b16 %v606
        %v2287 = vunpack.c.h.b16 %v606
        %v2288 = vunpack.c.l.b16 %v607
        %v2289 = vunpack.c.h.b16 %v607
        %v2290 = vunpack.c.l.b16 %v608
        %v2291 = vunpack.c.h.b16 %v608
        %v2292 = vunpack.c.l.b16 %v609
        %v2293 = vunpack.c.h.b16 %v609
        %v2294 = vunpack.c.l.b16 %v610
        %v2295 = vunpack.c.h.b16 %v610
        %v2296 = vunpack.c.l.b16 %v611
        %v2297 = vunpack.c.h.b16 %v611
        %v2298 = vunpack.c.l.b16 %v612
        %v2299 = vunpack.c.h.b16 %v612
        %v2300 = vunpack.c.l.b16 %v613
        %v2301 = vunpack.c.h.b16 %v613
        %v2302 = vunpack.c.l.b16 %v614
        %v2303 = vunpack.c.h.b16 %v614
        %v2304 = vunpack.c.l.b16 %v615
        %v2305 = vunpack.c.h.b16 %v615
        %v2306 = vunpack.c.l.b16 %v616
        %v2307 = vunpack.c.h.b16 %v616
        %v2308 = vunpack.c.l.b16 %v617
        %v2309 = vunpack.c.h.b16 %v617
        %v2310 = vunpack.c.l.b16 %v618
        %v2311 = vunpack.c.h.b16 %v618
        %v2312 = vunpack.c.l.b16 %v619
        %v2313 = vunpack.c.h.b16 %v619
        %v2314 = vunpack.c.l.b16 %v620
        %v2315 = vunpack.c.h.b16 %v620
        %v2316 = vunpack.c.l.b16 %v621
        %v2317 = vunpack.c.h.b16 %v621
        %v2318 = vunpack.c.l.b16 %v622
        %v2319 = vunpack.c.h.b16 %v622
        %v2320 = vunpack.c.l.b16 %v623
        %v2321 = vunpack.c.h.b16 %v623
        %v2322 = vunpack.c.l.b16 %v624
        %v2323 = vunpack.c.h.b16 %v624
        %v2324 = vunpack.c.l.b16 %v625
        %v2325 = vunpack.c.h.b16 %v625
        %v2326 = vunpack.c.l.b16 %v626
        %v2327 = vunpack.c.h.b16 %v626
        %v2328 = vunpack.c.l.b16 %v627
        %v2329 = vunpack.c.h.b16 %v627
        %v2330 = vunpack.c.l.b16 %v628
        %v2331 = vunpack.c.h.b16 %v628
        %v2332 = vunpack.c.l.b16 %v629
        %v2333 = vunpack.c.h.b16 %v629
        %v2334 = vunpack.c.l.b16 %v630
        %v2335 = vunpack.c.h.b16 %v630
        %v2336 = vunpack.c.l.b16 %v631
        %v2337 = vunpack.c.h.b16 %v631
        %v2338 = vunpack.c.l.b16 %v632
        %v2339 = vunpack.c.h.b16 %v632
        %v2340 = vunpack.c.l.b16 %v633
        %v2341 = vunpack.c.h.b16 %v633
        %v2342 = vunpack.c.l.b16 %v634
        %v2343 = vunpack.c.h.b16 %v634
        %v2344 = vunpack.c.l.b16 %v635
        %v2345 = vunpack.c.h.b16 %v635
        %v2346 = vunpack.c.l.b16 %v636
        %v2347 = vunpack.c.h.b16 %v636
        %v2348 = vunpack.c.l.b16 %v637
        %v2349 = vunpack.c.h.b16 %v637
        %v2350 = vunpack.c.l.b16 %v638
        %v2351 = vunpack.c.h.b16 %v638
        %v2352 = vunpack.c.l.b16 %v639
        %v2353 = vunpack.c.h.b16 %v639
        %v2354 = vunpack.c.l.b16 %v640
        %v2355 = vunpack.c.h.b16 %v640
        %v2356 = vunpack.c.l.b16 %v641
        %v2357 = vunpack.c.h.b16 %v641
        %v2358 = vunpack.c.l.b16 %v642
        %v2359 = vunpack.c.h.b16 %v642
        %v2360 = vunpack.c.l.b16 %v643
        %v2361 = vunpack.c.h.b16 %v643
        %v2362 = vunpack.c.l.b16 %v644
        %v2363 = vunpack.c.h.b16 %v644
        %v2364 = vunpack.c.l.b16 %v645
        %v2365 = vunpack.c.h.b16 %v645
        %v2366 = vunpack.c.l.b16 %v646
        %v2367 = vunpack.c.h.b16 %v646
        %v2368 = vunpack.c.l.b16 %v647
        %v2369 = vunpack.c.h.b16 %v647
        %v2370 = vunpack.c.l.b16 %v648
        %v2371 = vunpack.c.h.b16 %v648
        %v2372 = vunpack.c.l.b16 %v649
        %v2373 = vunpack.c.h.b16 %v649
        %v2374 = vunpack.c.l.b16 %v650
        %v2375 = vunpack.c.h.b16 %v650
        %v2376 = vunpack.c.l.b16 %v651
        %v2377 = vunpack.c.h.b16 %v651
        %v2378 = vunpack.c.l.b16 %v652
        %v2379 = vunpack.c.h.b16 %v652
        %v2380 = vunpack.c.l.b16 %v653
        %v2381 = vunpack.c.h.b16 %v653
        %v2382 = vunpack.c.l.b16 %v654
        %v2383 = vunpack.c.h.b16 %v654
        %v2384 = vunpack.c.l.b16 %v655
        %v2385 = vunpack.c.h.b16 %v655
        %v2386 = vunpack.c.l.b16 %v656
        %v2387 = vunpack.c.h.b16 %v656
        %v2388 = vunpack.c.l.b16 %v657
        %v2389 = vunpack.c.h.b16 %v657
        %v2390 = vunpack.c.l.b16 %v658
        %v2391 = vunpack.c.h.b16 %v658
        %v2392 = vunpack.c.l.b16 %v659
        %v2393 = vunpack.c.h.b16 %v659
        %v2394 = vunpack.c.l.b16 %v660
        %v2395 = vunpack.c.h.b16 %v660
        %v2396 = vunpack.c.l.b16 %v661
        %v2397 = vunpack.c.h.b16 %v661
        %v2398 = vunpack.c.l.b16 %v662
        %v2399 = vunpack.c.h.b16 %v662
        %v2400 = vunpack.c.l.b16 %v663
        %v2401 = vunpack.c.h.b16 %v663
        %v2402 = vunpack.c.l.b16 %v664
        %v2403 = vunpack.c.h.b16 %v664
        %v2404 = vunpack.c.l.b16 %v665
        %v2405 = vunpack.c.h.b16 %v665
        %v2406 = vunpack.c.l.b16 %v666
        %v2407 = vunpack.c.h.b16 %v666
        %v2408 = vunpack.c.l.b16 %v667
        %v2409 = vunpack.c.h.b16 %v667
        %v2410 = vunpack.c.l.b16 %v668
        %v2411 = vunpack.c.h.b16 %v668
        %v2412 = vunpack.c.l.b16 %v669
        %v2413 = vunpack.c.h.b16 %v669
        %v2414 = vunpack.c.l.b16 %v670
        %v2415 = vunpack.c.h.b16 %v670
        %v2416 = vunpack.c.l.b16 %v671
        %v2417 = vunpack.c.h.b16 %v671
        %v2418 = vunpack.c.l.b16 %v672
        %v2419 = vunpack.c.h.b16 %v672
        %v2420 = vunpack.c.l.b16 %v673
        %v2421 = vunpack.c.h.b16 %v673
        %v2422 = vunpack.c.l.b16 %v674
        %v2423 = vunpack.c.h.b16 %v674
        %v2424 = vunpack.c.l.b16 %v675
        %v2425 = vunpack.c.h.b16 %v675
        %v2426 = vunpack.c.l.b16 %v676
        %v2427 = vunpack.c.h.b16 %v676
        %v2428 = vunpack.c.l.b16 %v677
        %v2429 = vunpack.c.h.b16 %v677
        %v2430 = vunpack.c.l.b16 %v678
        %v2431 = vunpack.c.h.b16 %v678
        %v2432 = vunpack.c.l.b16 %v679
        %v2433 = vunpack.c.h.b16 %v679
        %v2434 = vunpack.c.l.b16 %v680
        %v2435 = vunpack.c.h.b16 %v680
        %v2436 = vunpack.c.l.b16 %v681
        %v2437 = vunpack.c.h.b16 %v681
        %v2438 = vunpack.c.l.b16 %v682
        %v2439 = vunpack.c.h.b16 %v682
        %v2440 = vunpack.c.l.b16 %v683
        %v2441 = vunpack.c.h.b16 %v683
        %v2442 = vunpack.c.l.b16 %v684
        %v2443 = vunpack.c.h.b16 %v684
        %v2444 = vunpack.c.l.b16 %v685
        %v2445 = vunpack.c.h.b16 %v685
        %v2446 = vunpack.c.l.b16 %v686
        %v2447 = vunpack.c.h.b16 %v686
        %v2448 = vunpack.c.l.b16 %v687
        %v2449 = vunpack.c.h.b16 %v687
        %v2450 = vunpack.c.l.b16 %v688
        %v2451 = vunpack.c.h.b16 %v688
        %v2452 = vunpack.c.l.b16 %v689
        %v2453 = vunpack.c.h.b16 %v689
        %v2454 = vunpack.c.l.b16 %v690
        %v2455 = vunpack.c.h.b16 %v690
        %v2456 = vunpack.c.l.b16 %v691
        %v2457 = vunpack.c.h.b16 %v691
        %v2458 = vunpack.c.l.b16 %v692
        %v2459 = vunpack.c.h.b16 %v692
        %v2460 = vunpack.c.l.b16 %v693
        %v2461 = vunpack.c.h.b16 %v693
        %v2462 = vunpack.c.l.b16 %v694
        %v2463 = vunpack.c.h.b16 %v694
        %v2464 = vunpack.c.l.b16 %v695
        %v2465 = vunpack.c.h.b16 %v695
        %v2466 = vunpack.c.l.b16 %v696
        %v2467 = vunpack.c.h.b16 %v696
        %v2468 = vunpack.c.l.b16 %v697
        %v2469 = vunpack.c.h.b16 %v697
        %v2470 = vunpack.c.l.b16 %v698
        %v2471 = vunpack.c.h.b16 %v698
        %v2472 = vunpack.c.l.b16 %v699
        %v2473 = vunpack.c.h.b16 %v699
        %v2474 = vunpack.c.l.b16 %v700
        %v2475 = vunpack.c.h.b16 %v700
        %v2476 = vunpack.c.l.b16 %v701
        %v2477 = vunpack.c.h.b16 %v701
        %v2478 = vunpack.c.l.b16 %v702
        %v2479 = vunpack.c.h.b16 %v702
        %v2480 = vunpack.c.l.b16 %v703
        %v2481 = vunpack.c.h.b16 %v703
        %v2482 = vunpack.c.l.b16 %v704
        %v2483 = vunpack.c.h.b16 %v704
        %v2484 = vunpack.c.l.b16 %v705
        %v2485 = vunpack.c.h.b16 %v705
        %v2486 = vunpack.c.l.b16 %v706
        %v2487 = vunpack.c.h.b16 %v706
        %v2488 = vunpack.c.l.b16 %v707
        %v2489 = vunpack.c.h.b16 %v707
        %v2490 = vunpack.c.l.b16 %v708
        %v2491 = vunpack.c.h.b16 %v708
        %v2492 = vunpack.c.l.b16 %v709
        %v2493 = vunpack.c.h.b16 %v709
        %v2494 = vunpack.c.l.b16 %v710
        %v2495 = vunpack.c.h.b16 %v710
        %v2496 = vunpack.c.l.b16 %v711
        %v2497 = vunpack.c.h.b16 %v711
        %v2498 = vunpack.c.l.b16 %v712
        %v2499 = vunpack.c.h.b16 %v712
        %v2500 = vunpack.c.l.b16 %v713
        %v2501 = vunpack.c.h.b16 %v713
        %v2502 = vunpack.c.l.b16 %v714
        %v2503 = vunpack.c.h.b16 %v714
        %v2504 = vunpack.c.l.b16 %v715
        %v2505 = vunpack.c.h.b16 %v715
        %v2506 = vunpack.c.l.b16 %v716
        %v2507 = vunpack.c.h.b16 %v716
        %v2508 = vunpack.c.l.b16 %v717
        %v2509 = vunpack.c.h.b16 %v717
        %v2510 = vunpack.c.l.b16 %v718
        %v2511 = vunpack.c.h.b16 %v718
        %v2512 = vunpack.c.l.b16 %v719
        %v2513 = vunpack.c.h.b16 %v719
        %v2514 = vunpack.c.l.b16 %v720
        %v2515 = vunpack.c.h.b16 %v720
        %v2516 = vunpack.c.l.b16 %v721
        %v2517 = vunpack.c.h.b16 %v721
        %v2518 = vunpack.c.l.b16 %v722
        %v2519 = vunpack.c.h.b16 %v722
        %v2520 = vunpack.c.l.b16 %v723
        %v2521 = vunpack.c.h.b16 %v723
        %v2522 = vunpack.c.l.b16 %v724
        %v2523 = vunpack.c.h.b16 %v724
        %v2524 = vunpack.c.l.b16 %v725
        %v2525 = vunpack.c.h.b16 %v725
        %v2526 = vunpack.c.l.b16 %v726
        %v2527 = vunpack.c.h.b16 %v726
        %v2528 = vunpack.c.l.b16 %v727
        %v2529 = vunpack.c.h.b16 %v727
        %v2530 = vunpack.c.l.b16 %v728
        %v2531 = vunpack.c.h.b16 %v728
        %v2532 = vunpack.c.l.b16 %v729
        %v2533 = vunpack.c.h.b16 %v729
        %v2534 = vunpack.c.l.b16 %v730
        %v2535 = vunpack.c.h.b16 %v730
        %v2536 = vunpack.c.l.b16 %v731
        %v2537 = vunpack.c.h.b16 %v731
        %v2538 = vunpack.c.l.b16 %v732
        %v2539 = vunpack.c.h.b16 %v732
        %v2540 = vunpack.c.l.b16 %v733
        %v2541 = vunpack.c.h.b16 %v733
        %v2542 = vunpack.c.l.b16 %v734
        %v2543 = vunpack.c.h.b16 %v734
        %v2544 = vunpack.c.l.b16 %v735
        %v2545 = vunpack.c.h.b16 %v735
        %v2546 = vunpack.c.l.b16 %v736
        %v2547 = vunpack.c.h.b16 %v736
        %v2548 = vunpack.c.l.b16 %v737
        %v2549 = vunpack.c.h.b16 %v737
        %v2550 = vunpack.c.l.b16 %v738
        %v2551 = vunpack.c.h.b16 %v738
        %v2552 = vunpack.c.l.b16 %v739
        %v2553 = vunpack.c.h.b16 %v739
        %v2554 = vunpack.c.l.b16 %v740
        %v2555 = vunpack.c.h.b16 %v740
        %v2556 = vunpack.c.l.b16 %v741
        %v2557 = vunpack.c.h.b16 %v741
        %v2558 = vunpack.c.l.b16 %v742
        %v2559 = vunpack.c.h.b16 %v742
        %v2560 = vunpack.c.l.b16 %v743
        %v2561 = vunpack.c.h.b16 %v743
        %v2562 = vunpack.c.l.b16 %v744
        %v2563 = vunpack.c.h.b16 %v744
        %v2564 = vunpack.c.l.b16 %v745
        %v2565 = vunpack.c.h.b16 %v745
        %v2566 = vunpack.c.l.b16 %v746
        %v2567 = vunpack.c.h.b16 %v746
        %v2568 = vunpack.c.l.b16 %v747
        %v2569 = vunpack.c.h.b16 %v747
        %v2570 = vunpack.c.l.b16 %v748
        %v2571 = vunpack.c.h.b16 %v748
        %v2572 = vunpack.c.l.b16 %v749
        %v2573 = vunpack.c.h.b16 %v749
        %v2574 = vunpack.c.l.b16 %v750
        %v2575 = vunpack.c.h.b16 %v750
        %v2576 = vunpack.c.l.b16 %v751
        %v2577 = vunpack.c.h.b16 %v751
        %v2578 = vunpack.c.l.b16 %v752
        %v2579 = vunpack.c.h.b16 %v752
        %v2580 = vunpack.c.l.b16 %v753
        %v2581 = vunpack.c.h.b16 %v753
        %v2582 = vunpack.c.l.b16 %v754
        %v2583 = vunpack.c.h.b16 %v754
        %v2584 = vunpack.c.l.b16 %v755
        %v2585 = vunpack.c.h.b16 %v755
        %v2586 = vunpack.c.l.b16 %v756
        %v2587 = vunpack.c.h.b16 %v756
        %v2588 = vunpack.c.l.b16 %v757
        %v2589 = vunpack.c.h.b16 %v757
        %v2590 = vunpack.c.l.b16 %v758
        %v2591 = vunpack.c.h.b16 %v758
        %v2592 = vunpack.c.l.b16 %v759
        %v2593 = vunpack.c.h.b16 %v759
        %v2594 = vunpack.c.l.b16 %v760
        %v2595 = vunpack.c.h.b16 %v760
        %v2596 = vunpack.c.l.b16 %v761
        %v2597 = vunpack.c.h.b16 %v761
        %v2598 = vunpack.c.l.b16 %v762
        %v2599 = vunpack.c.h.b16 %v762
        %v2600 = vunpack.c.l.b16 %v763
        %v2601 = vunpack.c.h.b16 %v763
        %v2602 = vunpack.c.l.b16 %v764
        %v2603 = vunpack.c.h.b16 %v764
        %v2604 = vunpack.c.l.b16 %v765
        %v2605 = vunpack.c.h.b16 %v765
        %v2606 = vunpack.c.l.b16 %v766
        %v2607 = vunpack.c.h.b16 %v766
        %v2608 = vunpack.c.l.b16 %v767
        %v2609 = vunpack.c.h.b16 %v767
        %v2610 = vunpack.c.l.b16 %v768
        %v2611 = vunpack.c.h.b16 %v768
        %v2612 = vunpack.c.l.b16 %v769
        %v2613 = vunpack.c.h.b16 %v769
        %v2614 = vunpack.c.l.b16 %v770
        %v2615 = vunpack.c.h.b16 %v770
        %v2616 = vunpack.c.l.b16 %v771
        %v2617 = vunpack.c.h.b16 %v771
        %v2618 = vunpack.c.l.b16 %v772
        %v2619 = vunpack.c.h.b16 %v772
        %v2620 = vunpack.c.l.b16 %v773
        %v2621 = vunpack.c.h.b16 %v773
        %v2622 = vunpack.c.l.b16 %v774
        %v2623 = vunpack.c.h.b16 %v774
        %v2624 = vunpack.c.l.b16 %v775
        %v2625 = vunpack.c.h.b16 %v775
        %v2626 = vunpack.c.l.b16 %v776
        %v2627 = vunpack.c.h.b16 %v776
        %v2628 = vunpack.c.l.b16 %v777
        %v2629 = vunpack.c.h.b16 %v777
        %v2630 = vunpack.c.l.b16 %v778
        %v2631 = vunpack.c.h.b16 %v778
        %v2632 = vunpack.c.l.b16 %v779
        %v2633 = vunpack.c.h.b16 %v779
        %v2634 = vunpack.c.l.b16 %v780
        %v2635 = vunpack.c.h.b16 %v780
        %v2636 = vunpack.c.l.b16 %v781
        %v2637 = vunpack.c.h.b16 %v781
        %v2638 = vunpack.c.l.b16 %v782
        %v2639 = vunpack.c.h.b16 %v782
        %v2640 = vunpack.c.l.b16 %v783
        %v2641 = vunpack.c.h.b16 %v783
        %v2642 = vunpack.c.l.b16 %v784
        %v2643 = vunpack.c.h.b16 %v784
        %v2644 = vunpack.c.l.b16 %v785
        %v2645 = vunpack.c.h.b16 %v785
        %v2646 = vunpack.c.l.b16 %v786
        %v2647 = vunpack.c.h.b16 %v786
        %v2648 = vunpack.c.l.b16 %v787
        %v2649 = vunpack.c.h.b16 %v787
        %v2650 = vunpack.c.l.b16 %v788
        %v2651 = vunpack.c.h.b16 %v788
        %v2652 = vunpack.c.l.b16 %v789
        %v2653 = vunpack.c.h.b16 %v789
        %v2654 = vunpack.c.l.b16 %v790
        %v2655 = vunpack.c.h.b16 %v790
        %v2656 = vunpack.c.l.b16 %v791
        %v2657 = vunpack.c.h.b16 %v791
        %v2658 = vunpack.c.l.b16 %v792
        %v2659 = vunpack.c.h.b16 %v792
        %v2660 = vunpack.c.l.b16 %v793
        %v2661 = vunpack.c.h.b16 %v793
        %v2662 = vunpack.c.l.b16 %v794
        %v2663 = vunpack.c.h.b16 %v794
        %v2664 = vunpack.c.l.b16 %v795
        %v2665 = vunpack.c.h.b16 %v795
        %v2666 = vunpack.c.l.b16 %v796
        %v2667 = vunpack.c.h.b16 %v796
        %v2668 = vunpack.c.l.b16 %v797
        %v2669 = vunpack.c.h.b16 %v797
        %v2670 = vunpack.c.l.b16 %v798
        %v2671 = vunpack.c.h.b16 %v798
        %v2672 = vunpack.c.l.b16 %v799
        %v2673 = vunpack.c.h.b16 %v799
        %v2674 = vunpack.c.l.b16 %v800
        %v2675 = vunpack.c.h.b16 %v800
        %v2676 = vunpack.c.l.b16 %v801
        %v2677 = vunpack.c.h.b16 %v801
        %v2678 = vunpack.c.l.b16 %v802
        %v2679 = vunpack.c.h.b16 %v802
        %v2680 = vunpack.c.l.b16 %v803
        %v2681 = vunpack.c.h.b16 %v803
        %v2682 = vunpack.c.l.b16 %v804
        %v2683 = vunpack.c.h.b16 %v804
        %v2684 = vunpack.c.l.b16 %v805
        %v2685 = vunpack.c.h.b16 %v805
        %v2686 = vunpack.c.l.b16 %v806
        %v2687 = vunpack.c.h.b16 %v806
        %v2688 = vunpack.c.l.b16 %v807
        %v2689 = vunpack.c.h.b16 %v807
        %v2690 = vunpack.c.l.b16 %v808
        %v2691 = vunpack.c.h.b16 %v808
        %v2692 = vunpack.c.l.b16 %v809
        %v2693 = vunpack.c.h.b16 %v809
        %v2694 = vunpack.c.l.b16 %v810
        %v2695 = vunpack.c.h.b16 %v810
        %v2696 = vunpack.c.l.b16 %v811
        %v2697 = vunpack.c.h.b16 %v811
        %v2698 = vunpack.c.l.b16 %v812
        %v2699 = vunpack.c.h.b16 %v812
        %v2700 = vunpack.c.l.b16 %v813
        %v2701 = vunpack.c.h.b16 %v813
        %v2702 = vunpack.c.l.b16 %v814
        %v2703 = vunpack.c.h.b16 %v814
        %v2704 = vunpack.c.l.b16 %v815
        %v2705 = vunpack.c.h.b16 %v815
        %v2706 = vunpack.c.l.b16 %v816
        %v2707 = vunpack.c.h.b16 %v816
        %v2708 = vunpack.c.l.b16 %v817
        %v2709 = vunpack.c.h.b16 %v817
        %v2710 = vunpack.c.l.b16 %v818
        %v2711 = vunpack.c.h.b16 %v818
        %v2712 = vunpack.c.l.b16 %v819
        %v2713 = vunpack.c.h.b16 %v819
        %v2714 = vunpack.c.l.b16 %v820
        %v2715 = vunpack.c.h.b16 %v820
        %v2716 = vunpack.c.l.b16 %v821
        %v2717 = vunpack.c.h.b16 %v821
        %v2718 = vunpack.c.l.b16 %v822
        %v2719 = vunpack.c.h.b16 %v822
        %v2720 = vunpack.c.l.b16 %v823
        %v2721 = vunpack.c.h.b16 %v823
        %v2722 = vunpack.c.l.b16 %v824
        %v2723 = vunpack.c.h.b16 %v824
        %v2724 = vunpack.c.l.b16 %v825
        %v2725 = vunpack.c.h.b16 %v825
        %v2726 = vunpack.c.l.b16 %v826
        %v2727 = vunpack.c.h.b16 %v826
        %v2728 = vunpack.c.l.b16 %v827
        %v2729 = vunpack.c.h.b16 %v827
        %v2730 = vunpack.c.l.b16 %v828
        %v2731 = vunpack.c.h.b16 %v828
        %v2732 = vunpack.c.l.b16 %v829
        %v2733 = vunpack.c.h.b16 %v829
        %v2734 = vunpack.c.l.b16 %v830
        %v2735 = vunpack.c.h.b16 %v830
        %v2736 = vunpack.c.l.b16 %v831
        %v2737 = vunpack.c.h.b16 %v831
        %v2738 = vunpack.c.l.b16 %v832
        %v2739 = vunpack.c.h.b16 %v832
        %v2740 = vunpack.c.l.b16 %v833
        %v2741 = vunpack.c.h.b16 %v833
        %v2742 = vunpack.c.l.b16 %v834
        %v2743 = vunpack.c.h.b16 %v834
        %v2744 = vunpack.c.l.b16 %v835
        %v2745 = vunpack.c.h.b16 %v835
        %v2746 = vunpack.c.l.b16 %v836
        %v2747 = vunpack.c.h.b16 %v836
        %v2748 = vunpack.c.l.b16 %v837
        %v2749 = vunpack.c.h.b16 %v837
        %v2750 = vunpack.c.l.b16 %v838
        %v2751 = vunpack.c.h.b16 %v838
        %v2752 = vunpack.c.l.b16 %v839
        %v2753 = vunpack.c.h.b16 %v839
        %v2754 = vunpack.c.l.b16 %v840
        %v2755 = vunpack.c.h.b16 %v840
        %v2756 = vunpack.c.l.b16 %v841
        %v2757 = vunpack.c.h.b16 %v841
        %v2758 = vunpack.c.l.b16 %v842
        %v2759 = vunpack.c.h.b16 %v842
        %v2760 = vunpack.c.l.b16 %v843
        %v2761 = vunpack.c.h.b16 %v843
        %v2762 = vunpack.c.l.b16 %v844
        %v2763 = vunpack.c.h.b16 %v844
        %v2764 = vunpack.c.l.b16 %v845
        %v2765 = vunpack.c.h.b16 %v845
        %v2766 = vunpack.c.l.b16 %v846
        %v2767 = vunpack.c.h.b16 %v846
        %v2768 = vunpack.c.l.b16 %v847
        %v2769 = vunpack.c.h.b16 %v847
        %v2770 = vunpack.c.l.b16 %v848
        %v2771 = vunpack.c.h.b16 %v848
        %v2772 = vunpack.c.l.b16 %v849
        %v2773 = vunpack.c.h.b16 %v849
        %v2774 = vunpack.c.l.b16 %v850
        %v2775 = vunpack.c.h.b16 %v850
        %v2776 = vunpack.c.l.b16 %v851
        %v2777 = vunpack.c.h.b16 %v851
        %v2778 = vunpack.c.l.b16 %v852
        %v2779 = vunpack.c.h.b16 %v852
        %v2780 = vunpack.c.l.b16 %v853
        %v2781 = vunpack.c.h.b16 %v853
        %v2782 = vunpack.c.l.b16 %v854
        %v2783 = vunpack.c.h.b16 %v854
        %v2784 = vunpack.c.l.b16 %v855
        %v2785 = vunpack.c.h.b16 %v855
        %v2786 = vunpack.c.l.b16 %v856
        %v2787 = vunpack.c.h.b16 %v856
        %v2788 = vunpack.c.l.b16 %v857
        %v2789 = vunpack.c.h.b16 %v857
        %v2790 = vunpack.c.l.b16 %v858
        %v2791 = vunpack.c.h.b16 %v858
        %v2792 = vunpack.c.l.b16 %v859
        %v2793 = vunpack.c.h.b16 %v859
        %v2794 = vunpack.c.l.b16 %v860
        %v2795 = vunpack.c.h.b16 %v860
        %v2796 = vunpack.c.l.b16 %v861
        %v2797 = vunpack.c.h.b16 %v861
        %v2798 = vunpack.c.l.b16 %v862
        %v2799 = vunpack.c.h.b16 %v862
        %v2800 = vunpack.c.l.b16 %v863
        %v2801 = vunpack.c.h.b16 %v863
        %v2802 = vunpack.c.l.b16 %v864
        %v2803 = vunpack.c.h.b16 %v864
        %v2804 = vunpack.c.l.b16 %v865
        %v2805 = vunpack.c.h.b16 %v865
        %v2806 = vunpack.c.l.b16 %v866
        %v2807 = vunpack.c.h.b16 %v866
        %v2808 = vunpack.c.l.b16 %v867
        %v2809 = vunpack.c.h.b16 %v867
        %v2810 = vunpack.c.l.b16 %v868
        %v2811 = vunpack.c.h.b16 %v868
        %v2812 = vunpack.c.l.b16 %v869
        %v2813 = vunpack.c.h.b16 %v869
        %v2814 = vunpack.c.l.b16 %v870
        %v2815 = vunpack.c.h.b16 %v870
        %v2816 = vunpack.c.l.b16 %v871
        %v2817 = vunpack.c.h.b16 %v871
        %v2818 = vunpack.c.l.b16 %v872
        %v2819 = vunpack.c.h.b16 %v872
        %v2820 = vunpack.c.l.b16 %v873
        %v2821 = vunpack.c.h.b16 %v873
        %v2822 = vunpack.c.l.b16 %v874
        %v2823 = vunpack.c.h.b16 %v874
        %v2824 = vunpack.c.l.b16 %v875
        %v2825 = vunpack.c.h.b16 %v875
        %v2826 = vunpack.c.l.b16 %v876
        %v2827 = vunpack.c.h.b16 %v876
        %v2828 = vunpack.c.l.b16 %v877
        %v2829 = vunpack.c.h.b16 %v877
        %v2830 = vunpack.c.l.b16 %v878
        %v2831 = vunpack.c.h.b16 %v878
        %v2832 = vunpack.c.l.b16 %v879
        %v2833 = vunpack.c.h.b16 %v879
        %v2834 = vunpack.c.l.b16 %v880
        %v2835 = vunpack.c.h.b16 %v880
        %v2836 = vunpack.c.l.b16 %v881
        %v2837 = vunpack.c.h.b16 %v881
        %v2838 = vunpack.c.l.b16 %v882
        %v2839 = vunpack.c.h.b16 %v882
        %v2840 = vunpack.c.l.b16 %v883
        %v2841 = vunpack.c.h.b16 %v883
        %v2842 = vunpack.c.l.b16 %v884
        %v2843 = vunpack.c.h.b16 %v884
        %v2844 = vunpack.c.l.b16 %v885
        %v2845 = vunpack.c.h.b16 %v885
        %v2846 = vunpack.c.l.b16 %v886
        %v2847 = vunpack.c.h.b16 %v886
        %v2848 = vunpack.c.l.b16 %v887
        %v2849 = vunpack.c.h.b16 %v887
        %v2850 = vunpack.c.l.b16 %v888
        %v2851 = vunpack.c.h.b16 %v888
        %v2852 = vunpack.c.l.b16 %v889
        %v2853 = vunpack.c.h.b16 %v889
        %v2854 = vunpack.c.l.b16 %v890
        %v2855 = vunpack.c.h.b16 %v890
        %v2856 = vunpack.c.l.b16 %v891
        %v2857 = vunpack.c.h.b16 %v891
        %v2858 = vunpack.c.l.b16 %v892
        %v2859 = vunpack.c.h.b16 %v892
        %v2860 = vunpack.c.l.b16 %v893
        %v2861 = vunpack.c.h.b16 %v893
        %v2862 = vunpack.c.l.b16 %v894
        %v2863 = vunpack.c.h.b16 %v894
        %v2864 = vunpack.c.l.b16 %v895
        %v2865 = vunpack.c.h.b16 %v895
        %v2866 = vunpack.c.l.b16 %v896
        %v2867 = vunpack.c.h.b16 %v896
        %v2868 = vunpack.c.l.b16 %v897
        %v2869 = vunpack.c.h.b16 %v897
        %v2870 = vunpack.c.l.b16 %v898
        %v2871 = vunpack.c.h.b16 %v898
        %v2872 = vunpack.c.l.b16 %v899
        %v2873 = vunpack.c.h.b16 %v899
        %v2874 = vunpack.c.l.b16 %v900
        %v2875 = vunpack.c.h.b16 %v900
        %v2876 = vunpack.c.l.b16 %v901
        %v2877 = vunpack.c.h.b16 %v901
        %v2878 = vunpack.c.l.b16 %v902
        %v2879 = vunpack.c.h.b16 %v902
        %v2880 = vunpack.c.l.b16 %v903
        %v2881 = vunpack.c.h.b16 %v903
        %v2882 = vunpack.c.l.b16 %v904
        %v2883 = vunpack.c.h.b16 %v904
        %v2884 = vunpack.c.l.b16 %v905
        %v2885 = vunpack.c.h.b16 %v905
        %v2886 = vunpack.c.l.b16 %v906
        %v2887 = vunpack.c.h.b16 %v906
        %v2888 = vunpack.c.l.b16 %v907
        %v2889 = vunpack.c.h.b16 %v907
        %v2890 = vunpack.c.l.b16 %v908
        %v2891 = vunpack.c.h.b16 %v908
        %v2892 = vunpack.c.l.b16 %v909
        %v2893 = vunpack.c.h.b16 %v909
        %v2894 = vunpack.c.l.b16 %v910
        %v2895 = vunpack.c.h.b16 %v910
        %v2896 = vunpack.c.l.b16 %v911
        %v2897 = vunpack.c.h.b16 %v911
        %v2898 = vunpack.c.l.b16 %v912
        %v2899 = vunpack.c.h.b16 %v912
        %v2900 = vunpack.c.l.b16 %v913
        %v2901 = vunpack.c.h.b16 %v913
        %v2902 = vunpack.c.l.b16 %v914
        %v2903 = vunpack.c.h.b16 %v914
        %v2904 = vunpack.c.l.b16 %v915
        %v2905 = vunpack.c.h.b16 %v915
        %v2906 = vunpack.c.l.b16 %v916
        %v2907 = vunpack.c.h.b16 %v916
        %v2908 = vunpack.c.l.b16 %v917
        %v2909 = vunpack.c.h.b16 %v917
        %v2910 = vunpack.c.l.b16 %v918
        %v2911 = vunpack.c.h.b16 %v918
        %v2912 = vunpack.c.l.b16 %v919
        %v2913 = vunpack.c.h.b16 %v919
        %v2914 = vunpack.c.l.b16 %v920
        %v2915 = vunpack.c.h.b16 %v920
        %v2916 = vunpack.c.l.b16 %v921
        %v2917 = vunpack.c.h.b16 %v921
        %v2918 = vunpack.c.l.b16 %v922
        %v2919 = vunpack.c.h.b16 %v922
        %v2920 = vpack.c.b16 %v1648, %v1640
        %v2921 = vpack.c.b16 %v1649, %v1641
        %v2922 = vpack.c.b16 %v1650, %v1642
        %v2923 = vpack.c.b16 %v1651, %v1643
        %v2924 = vpack.c.b16 %v1652, %v1644
        %v2925 = vpack.c.b16 %v1653, %v1645
        %v2926 = vpack.c.b16 %v1654, %v1646
        %v2927 = vpack.c.b16 %v1655, %v1647
        %v2928 = vpack.c.b16 %v1664, %v1656
        %v2929 = vpack.c.b16 %v1665, %v1657
        %v2930 = vpack.c.b16 %v1666, %v1658
        %v2931 = vpack.c.b16 %v1667, %v1659
        %v2932 = vpack.c.b16 %v1668, %v1660
        %v2933 = vpack.c.b16 %v1669, %v1661
        %v2934 = vpack.c.b16 %v1670, %v1662
        %v2935 = vpack.c.b16 %v1671, %v1663
        %v2936 = vpack.c.b16 %v1680, %v1672
        %v2937 = vpack.c.b16 %v1681, %v1673
        %v2938 = vpack.c.b16 %v1682, %v1674
        %v2939 = vpack.c.b16 %v1683, %v1675
        %v2940 = vpack.c.b16 %v1684, %v1676
        %v2941 = vpack.c.b16 %v1685, %v1677
        %v2942 = vpack.c.b16 %v1686, %v1678
        %v2943 = vpack.c.b16 %v1687, %v1679
        %v2944 = vpack.c.b16 %v1696, %v1688
        %v2945 = vpack.c.b16 %v1697, %v1689
        %v2946 = vpack.c.b16 %v1698, %v1690
        %v2947 = vpack.c.b16 %v1699, %v1691
        %v2948 = vpack.c.b16 %v1700, %v1692
        %v2949 = vpack.c.b16 %v1701, %v1693
        %v2950 = vpack.c.b16 %v1702, %v1694
        %v2951 = vpack.c.b16 %v1703, %v1695
        %v2952 = vpack.c.b16 %v1712, %v1704
        %v2953 = vpack.c.b16 %v1713, %v1705
        %v2954 = vpack.c.b16 %v1714, %v1706
        %v2955 = vpack.c.b16 %v1715, %v1707
        %v2956 = vpack.c.b16 %v1716, %v1708
        %v2957 = vpack.c.b16 %v1717, %v1709
        %v2958 = vpack.c.b16 %v1718, %v1710
        %v2959 = vpack.c.b16 %v1719, %v1711
        %v2960 = vpack.c.b16 %v1728, %v1720
        %v2961 = vpack.c.b16 %v1729, %v1721
        %v2962 = vpack.c.b16 %v1730, %v1722
        %v2963 = vpack.c.b16 %v1731, %v1723
        %v2964 = vpack.c.b16 %v1732, %v1724
        %v2965 = vpack.c.b16 %v1733, %v1725
        %v2966 = vpack.c.b16 %v1734, %v1726
        %v2967 = vpack.c.b16 %v1735, %v1727
        %v2968 = vpack.c.b16 %v1744, %v1736
        %v2969 = vpack.c.b16 %v1745, %v1737
        %v2970 = vpack.c.b16 %v1746, %v1738
        %v2971 = vpack.c.b16 %v1747, %v1739
        %v2972 = vpack.c.b16 %v1748, %v1740
        %v2973 = vpack.c.b16 %v1749, %v1741
        %v2974 = vpack.c.b16 %v1750, %v1742
        %v2975 = vpack.c.b16 %v1751, %v1743
        %v2976 = vpack.c.b16 %v1760, %v1752
        %v2977 = vpack.c.b16 %v1761, %v1753
        %v2978 = vpack.c.b16 %v1762, %v1754
        %v2979 = vpack.c.b16 %v1763, %v1755
        %v2980 = vpack.c.b16 %v1764, %v1756
        %v2981 = vpack.c.b16 %v1765, %v1757
        %v2982 = vpack.c.b16 %v1766, %v1758
        %v2983 = vpack.c.b16 %v1767, %v1759
        %v2984 = vpack.c.b16 %v1776, %v1768
        %v2985 = vpack.c.b16 %v1777, %v1769
        %v2986 = vpack.c.b16 %v1778, %v1770
        %v2987 = vpack.c.b16 %v1779, %v1771
        %v2988 = vpack.c.b16 %v1780, %v1772
        %v2989 = vpack.c.b16 %v1781, %v1773
        %v2990 = vpack.c.b16 %v1782, %v1774
        %v2991 = vpack.c.b16 %v1783, %v1775
        %v2992 = vpack.c.b16 %v1792, %v1784
        %v2993 = vpack.c.b16 %v1793, %v1785
        %v2994 = vpack.c.b16 %v1794, %v1786
        %v2995 = vpack.c.b16 %v1795, %v1787
        %v2996 = vpack.c.b16 %v1796, %v1788
        %v2997 = vpack.c.b16 %v1797, %v1789
        %v2998 = vpack.c.b16 %v1798, %v1790
        %v2999 = vpack.c.b16 %v1799, %v1791
        %v3000 = vpack.c.b16 %v1808, %v1800
        %v3001 = vpack.c.b16 %v1809, %v1801
        %v3002 = vpack.c.b16 %v1810, %v1802
        %v3003 = vpack.c.b16 %v1811, %v1803
        %v3004 = vpack.c.b16 %v1812, %v1804
        %v3005 = vpack.c.b16 %v1813, %v1805
        %v3006 = vpack.c.b16 %v1814, %v1806
        %v3007 = vpack.c.b16 %v1815, %v1807
        %v3008 = vpack.c.b16 %v1824, %v1816
        %v3009 = vpack.c.b16 %v1825, %v1817
        %v3010 = vpack.c.b16 %v1826, %v1818
        %v3011 = vpack.c.b16 %v1827, %v1819
        %v3012 = vpack.c.b16 %v1828, %v1820
        %v3013 = vpack.c.b16 %v1829, %v1821
        %v3014 = vpack.c.b16 %v1830, %v1822
        %v3015 = vpack.c.b16 %v1831, %v1823
        %v3016 = vpack.c.b16 %v1840, %v1832
        %v3017 = vpack.c.b16 %v1841, %v1833
        %v3018 = vpack.c.b16 %v1842, %v1834
        %v3019 = vpack.c.b16 %v1843, %v1835
        %v3020 = vpack.c.b16 %v1844, %v1836
        %v3021 = vpack.c.b16 %v1845, %v1837
        %v3022 = vpack.c.b16 %v1846, %v1838
        %v3023 = vpack.c.b16 %v1847, %v1839
        %v3024 = vpack.c.b16 %v1856, %v1848
        %v3025 = vpack.c.b16 %v1857, %v1849
        %v3026 = vpack.c.b16 %v1858, %v1850
        %v3027 = vpack.c.b16 %v1859, %v1851
        %v3028 = vpack.c.b16 %v1860, %v1852
        %v3029 = vpack.c.b16 %v1861, %v1853
        %v3030 = vpack.c.b16 %v1862, %v1854
        %v3031 = vpack.c.b16 %v1863, %v1855
        %v3032 = vpack.c.b16 %v1872, %v1864
        %v3033 = vpack.c.b16 %v1873, %v1865
        %v3034 = vpack.c.b16 %v1874, %v1866
        %v3035 = vpack.c.b16 %v1875, %v1867
        %v3036 = vpack.c.b16 %v1876, %v1868
        %v3037 = vpack.c.b16 %v1877, %v1869
        %v3038 = vpack.c.b16 %v1878, %v1870
        %v3039 = vpack.c.b16 %v1879, %v1871
        %v3040 = vpack.c.b16 %v1888, %v1880
        %v3041 = vpack.c.b16 %v1889, %v1881
        %v3042 = vpack.c.b16 %v1890, %v1882
        %v3043 = vpack.c.b16 %v1891, %v1883
        %v3044 = vpack.c.b16 %v1892, %v1884
        %v3045 = vpack.c.b16 %v1893, %v1885
        %v3046 = vpack.c.b16 %v1894, %v1886
        %v3047 = vpack.c.b16 %v1895, %v1887
        %v3048 = vpack.c.b16 %v1904, %v1896
        %v3049 = vpack.c.b16 %v1905, %v1897
        %v3050 = vpack.c.b16 %v1906, %v1898
        %v3051 = vpack.c.b16 %v1907, %v1899
        %v3052 = vpack.c.b16 %v1908, %v1900
        %v3053 = vpack.c.b16 %v1909, %v1901
        %v3054 = vpack.c.b16 %v1910, %v1902
        %v3055 = vpack.c.b16 %v1911, %v1903
        %v3056 = vpack.c.b16 %v1920, %v1912
        %v3057 = vpack.c.b16 %v1921, %v1913
        %v3058 = vpack.c.b16 %v1922, %v1914
        %v3059 = vpack.c.b16 %v1923, %v1915
        %v3060 = vpack.c.b16 %v1924, %v1916
        %v3061 = vpack.c.b16 %v1925, %v1917
        %v3062 = vpack.c.b16 %v1926, %v1918
        %v3063 = vpack.c.b16 %v1927, %v1919
        %v3064 = vpack.c.b16 %v1936, %v1928
        %v3065 = vpack.c.b16 %v1937, %v1929
        %v3066 = vpack.c.b16 %v1938, %v1930
        %v3067 = vpack.c.b16 %v1939, %v1931
        %v3068 = vpack.c.b16 %v1940, %v1932
        %v3069 = vpack.c.b16 %v1941, %v1933
        %v3070 = vpack.c.b16 %v1942, %v1934
        %v3071 = vpack.c.b16 %v1943, %v1935
        %v3072 = vpack.c.b16 %v1952, %v1944
        %v3073 = vpack.c.b16 %v1953, %v1945
        %v3074 = vpack.c.b16 %v1954, %v1946
        %v3075 = vpack.c.b16 %v1955, %v1947
        %v3076 = vpack.c.b16 %v1956, %v1948
        %v3077 = vpack.c.b16 %v1957, %v1949
        %v3078 = vpack.c.b16 %v1958, %v1950
        %v3079 = vpack.c.b16 %v1959, %v1951
        %v3080 = vpack.c.b16 %v1968, %v1960
        %v3081 = vpack.c.b16 %v1969, %v1961
        %v3082 = vpack.c.b16 %v1970, %v1962
        %v3083 = vpack.c.b16 %v1971, %v1963
        %v3084 = vpack.c.b16 %v1972, %v1964
        %v3085 = vpack.c.b16 %v1973, %v1965
        %v3086 = vpack.c.b16 %v1974, %v1966
        %v3087 = vpack.c.b16 %v1975, %v1967
        %v3088 = vpack.c.b16 %v1984, %v1976
        %v3089 = vpack.c.b16 %v1985, %v1977
        %v3090 = vpack.c.b16 %v1986, %v1978
        %v3091 = vpack.c.b16 %v1987, %v1979
        %v3092 = vpack.c.b16 %v1988, %v1980
        %v3093 = vpack.c.b16 %v1989, %v1981
        %v3094 = vpack.c.b16 %v1990, %v1982
        %v3095 = vpack.c.b16 %v1991, %v1983
        %v3096 = vpack.c.b16 %v2000, %v1992
        %v3097 = vpack.c.b16 %v2001, %v1993
        %v3098 = vpack.c.b16 %v2002, %v1994
        %v3099 = vpack.c.b16 %v2003, %v1995
        %v3100 = vpack.c.b16 %v2004, %v1996
        %v3101 = vpack.c.b16 %v2005, %v1997
        %v3102 = vpack.c.b16 %v2006, %v1998
        %v3103 = vpack.c.b16 %v2007, %v1999
        %v3104 = vpack.c.b16 %v2016, %v2008
        %v3105 = vpack.c.b16 %v2017, %v2009
        %v3106 = vpack.c.b16 %v2018, %v2010
        %v3107 = vpack.c.b16 %v2019, %v2011
        %v3108 = vpack.c.b16 %v2020, %v2012
        %v3109 = vpack.c.b16 %v2021, %v2013
        %v3110 = vpack.c.b16 %v2022, %v2014
        %v3111 = vpack.c.b16 %v2023, %v2015
        %v3112 = vpack.c.b16 %v2032, %v2024
        %v3113 = vpack.c.b16 %v2033, %v2025
        %v3114 = vpack.c.b16 %v2034, %v2026
        %v3115 = vpack.c.b16 %v2035, %v2027
        %v3116 = vpack.c.b16 %v2036, %v2028
        %v3117 = vpack.c.b16 %v2037, %v2029
        %v3118 = vpack.c.b16 %v2038, %v2030
        %v3119 = vpack.c.b16 %v2039, %v2031
        %v3120 = vpack.c.b16 %v2048, %v2040
        %v3121 = vpack.c.b16 %v2049, %v2041
        %v3122 = vpack.c.b16 %v2050, %v2042
        %v3123 = vpack.c.b16 %v2051, %v2043
        %v3124 = vpack.c.b16 %v2052, %v2044
        %v3125 = vpack.c.b16 %v2053, %v2045
        %v3126 = vpack.c.b16 %v2054, %v2046
        %v3127 = vpack.c.b16 %v2055, %v2047
        %v3128 = vpack.c.b16 %v2064, %v2056
        %v3129 = vpack.c.b16 %v2065, %v2057
        %v3130 = vpack.c.b16 %v2066, %v2058
        %v3131 = vpack.c.b16 %v2067, %v2059
        %v3132 = vpack.c.b16 %v2068, %v2060
        %v3133 = vpack.c.b16 %v2069, %v2061
        %v3134 = vpack.c.b16 %v2070, %v2062
        %v3135 = vpack.c.b16 %v2071, %v2063
        %v3136 = vpack.c.b16 %v2080, %v2072
        %v3137 = vpack.c.b16 %v2081, %v2073
        %v3138 = vpack.c.b16 %v2082, %v2074
        %v3139 = vpack.c.b16 %v2083, %v2075
        %v3140 = vpack.c.b16 %v2084, %v2076
        %v3141 = vpack.c.b16 %v2085, %v2077
        %v3142 = vpack.c.b16 %v2086, %v2078
        %v3143 = vpack.c.b16 %v2087, %v2079
        %v3144 = vpack.c.b16 %v2096, %v2088
        %v3145 = vpack.c.b16 %v2097, %v2089
        %v3146 = vpack.c.b16 %v2098, %v2090
        %v3147 = vpack.c.b16 %v2099, %v2091
        %v3148 = vpack.c.b16 %v2100, %v2092
        %v3149 = vpack.c.b16 %v2101, %v2093
        %v3150 = vpack.c.b16 %v2102, %v2094
        %v3151 = vpack.c.b16 %v2103, %v2095
        %v3152 = vpack.c.b16 %v2112, %v2104
        %v3153 = vpack.c.b16 %v2113, %v2105
        %v3154 = vpack.c.b16 %v2114, %v2106
        %v3155 = vpack.c.b16 %v2115, %v2107
        %v3156 = vpack.c.b16 %v2116, %v2108
        %v3157 = vpack.c.b16 %v2117, %v2109
        %v3158 = vpack.c.b16 %v2118, %v2110
        %v3159 = vpack.c.b16 %v2119, %v2111
        %v3160 = vpack.c.b16 %v2128, %v2120
        %v3161 = vpack.c.b16 %v2129, %v2121
        %v3162 = vpack.c.b16 %v2130, %v2122
        %v3163 = vpack.c.b16 %v2131, %v2123
        %v3164 = vpack.c.b16 %v2132, %v2124
        %v3165 = vpack.c.b16 %v2133, %v2125
        %v3166 = vpack.c.b16 %v2134, %v2126
        %v3167 = vpack.c.b16 %v2135, %v2127
        %v3168 = vpack.c.b16 %v2144, %v2136
        %v3169 = vpack.c.b16 %v2145, %v2137
        %v3170 = vpack.c.b16 %v2146, %v2138
        %v3171 = vpack.c.b16 %v2147, %v2139
        %v3172 = vpack.c.b16 %v2148, %v2140
        %v3173 = vpack.c.b16 %v2149, %v2141
        %v3174 = vpack.c.b16 %v2150, %v2142
        %v3175 = vpack.c.b16 %v2151, %v2143
        %v3176 = vpack.c.b16 %v2160, %v2152
        %v3177 = vpack.c.b16 %v2161, %v2153
        %v3178 = vpack.c.b16 %v2162, %v2154
        %v3179 = vpack.c.b16 %v2163, %v2155
        %v3180 = vpack.c.b16 %v2164, %v2156
        %v3181 = vpack.c.b16 %v2165, %v2157
        %v3182 = vpack.c.b16 %v2166, %v2158
        %v3183 = vpack.c.b16 %v2167, %v2159
        %v3184 = vpack.c.b16 %v2176, %v2168
        %v3185 = vpack.c.b16 %v2177, %v2169
        %v3186 = vpack.c.b16 %v2178, %v2170
        %v3187 = vpack.c.b16 %v2179, %v2171
        %v3188 = vpack.c.b16 %v2180, %v2172
        %v3189 = vpack.c.b16 %v2181, %v2173
        %v3190 = vpack.c.b16 %v2182, %v2174
        %v3191 = vpack.c.b16 %v2183, %v2175
        %v3192 = vpack.c.b16 %v2192, %v2184
        %v3193 = vpack.c.b16 %v2193, %v2185
        %v3194 = vpack.c.b16 %v2194, %v2186
        %v3195 = vpack.c.b16 %v2195, %v2187
        %v3196 = vpack.c.b16 %v2196, %v2188
        %v3197 = vpack.c.b16 %v2197, %v2189
        %v3198 = vpack.c.b16 %v2198, %v2190
        %v3199 = vpack.c.b16 %v2199, %v2191
        %v3200 = vpack.c.b16 %v2208, %v2200
        %v3201 = vpack.c.b16 %v2209, %v2201
        %v3202 = vpack.c.b16 %v2210, %v2202
        %v3203 = vpack.c.b16 %v2211, %v2203
        %v3204 = vpack.c.b16 %v2212, %v2204
        %v3205 = vpack.c.b16 %v2213, %v2205
        %v3206 = vpack.c.b16 %v2214, %v2206
        %v3207 = vpack.c.b16 %v2215, %v2207
        %v3208 = vpack.c.b16 %v2224, %v2216
        %v3209 = vpack.c.b16 %v2225, %v2217
        %v3210 = vpack.c.b16 %v2226, %v2218
        %v3211 = vpack.c.b16 %v2227, %v2219
        %v3212 = vpack.c.b16 %v2228, %v2220
        %v3213 = vpack.c.b16 %v2229, %v2221
        %v3214 = vpack.c.b16 %v2230, %v2222
        %v3215 = vpack.c.b16 %v2231, %v2223
        %v3216 = vpack.c.b16 %v2240, %v2232
        %v3217 = vpack.c.b16 %v2241, %v2233
        %v3218 = vpack.c.b16 %v2242, %v2234
        %v3219 = vpack.c.b16 %v2243, %v2235
        %v3220 = vpack.c.b16 %v2244, %v2236
        %v3221 = vpack.c.b16 %v2245, %v2237
        %v3222 = vpack.c.b16 %v2246, %v2238
        %v3223 = vpack.c.b16 %v2247, %v2239
        %v3224 = vpack.c.b16 %v2256, %v2248
        %v3225 = vpack.c.b16 %v2257, %v2249
        %v3226 = vpack.c.b16 %v2258, %v2250
        %v3227 = vpack.c.b16 %v2259, %v2251
        %v3228 = vpack.c.b16 %v2260, %v2252
        %v3229 = vpack.c.b16 %v2261, %v2253
        %v3230 = vpack.c.b16 %v2262, %v2254
        %v3231 = vpack.c.b16 %v2263, %v2255
        %v3232 = vpack.c.b16 %v2272, %v2264
        %v3233 = vpack.c.b16 %v2273, %v2265
        %v3234 = vpack.c.b16 %v2274, %v2266
        %v3235 = vpack.c.b16 %v2275, %v2267
        %v3236 = vpack.c.b16 %v2276, %v2268
        %v3237 = vpack.c.b16 %v2277, %v2269
        %v3238 = vpack.c.b16 %v2278, %v2270
        %v3239 = vpack.c.b16 %v2279, %v2271
        %v3240 = vpack.c.b16 %v2288, %v2280
        %v3241 = vpack.c.b16 %v2289, %v2281
        %v3242 = vpack.c.b16 %v2290, %v2282
        %v3243 = vpack.c.b16 %v2291, %v2283
        %v3244 = vpack.c.b16 %v2292, %v2284
        %v3245 = vpack.c.b16 %v2293, %v2285
        %v3246 = vpack.c.b16 %v2294, %v2286
        %v3247 = vpack.c.b16 %v2295, %v2287
        %v3248 = vpack.c.b16 %v2304, %v2296
        %v3249 = vpack.c.b16 %v2305, %v2297
        %v3250 = vpack.c.b16 %v2306, %v2298
        %v3251 = vpack.c.b16 %v2307, %v2299
        %v3252 = vpack.c.b16 %v2308, %v2300
        %v3253 = vpack.c.b16 %v2309, %v2301
        %v3254 = vpack.c.b16 %v2310, %v2302
        %v3255 = vpack.c.b16 %v2311, %v2303
        %v3256 = vpack.c.b16 %v2320, %v2312
        %v3257 = vpack.c.b16 %v2321, %v2313
        %v3258 = vpack.c.b16 %v2322, %v2314
        %v3259 = vpack.c.b16 %v2323, %v2315
        %v3260 = vpack.c.b16 %v2324, %v2316
        %v3261 = vpack.c.b16 %v2325, %v2317
        %v3262 = vpack.c.b16 %v2326, %v2318
        %v3263 = vpack.c.b16 %v2327, %v2319
        %v3264 = vpack.c.b16 %v2336, %v2328
        %v3265 = vpack.c.b16 %v2337, %v2329
        %v3266 = vpack.c.b16 %v2338, %v2330
        %v3267 = vpack.c.b16 %v2339, %v2331
        %v3268 = vpack.c.b16 %v2340, %v2332
        %v3269 = vpack.c.b16 %v2341, %v2333
        %v3270 = vpack.c.b16 %v2342, %v2334
        %v3271 = vpack.c.b16 %v2343, %v2335
        %v3272 = vpack.c.b16 %v2352, %v2344
        %v3273 = vpack.c.b16 %v2353, %v2345
        %v3274 = vpack.c.b16 %v2354, %v2346
        %v3275 = vpack.c.b16 %v2355, %v2347
        %v3276 = vpack.c.b16 %v2356, %v2348
        %v3277 = vpack.c.b16 %v2357, %v2349
        %v3278 = vpack.c.b16 %v2358, %v2350
        %v3279 = vpack.c.b16 %v2359, %v2351
        %v3280 = vpack.c.b16 %v2368, %v2360
        %v3281 = vpack.c.b16 %v2369, %v2361
        %v3282 = vpack.c.b16 %v2370, %v2362
        %v3283 = vpack.c.b16 %v2371, %v2363
        %v3284 = vpack.c.b16 %v2372, %v2364
        %v3285 = vpack.c.b16 %v2373, %v2365
        %v3286 = vpack.c.b16 %v2374, %v2366
        %v3287 = vpack.c.b16 %v2375, %v2367
        %v3288 = vpack.c.b16 %v2384, %v2376
        %v3289 = vpack.c.b16 %v2385, %v2377
        %v3290 = vpack.c.b16 %v2386, %v2378
        %v3291 = vpack.c.b16 %v2387, %v2379
        %v3292 = vpack.c.b16 %v2388, %v2380
        %v3293 = vpack.c.b16 %v2389, %v2381
        %v3294 = vpack.c.b16 %v2390, %v2382
        %v3295 = vpack.c.b16 %v2391, %v2383
        %v3296 = vpack.c.b16 %v2400, %v2392
        %v3297 = vpack.c.b16 %v2401, %v2393
        %v3298 = vpack.c.b16 %v2402, %v2394
        %v3299 = vpack.c.b16 %v2403, %v2395
        %v3300 = vpack.c.b16 %v2404, %v2396
        %v3301 = vpack.c.b16 %v2405, %v2397
        %v3302 = vpack.c.b16 %v2406, %v2398
        %v3303 = vpack.c.b16 %v2407, %v2399
        %v3304 = vpack.c.b16 %v2416, %v2408
        %v3305 = vpack.c.b16 %v2417, %v2409
        %v3306 = vpack.c.b16 %v2418, %v2410
        %v3307 = vpack.c.b16 %v2419, %v2411
        %v3308 = vpack.c.b16 %v2420, %v2412
        %v3309 = vpack.c.b16 %v2421, %v2413
        %v3310 = vpack.c.b16 %v2422, %v2414
        %v3311 = vpack.c.b16 %v2423, %v2415
        %v3312 = vpack.c.b16 %v2432, %v2424
        %v3313 = vpack.c.b16 %v2433, %v2425
        %v3314 = vpack.c.b16 %v2434, %v2426
        %v3315 = vpack.c.b16 %v2435, %v2427
        %v3316 = vpack.c.b16 %v2436, %v2428
        %v3317 = vpack.c.b16 %v2437, %v2429
        %v3318 = vpack.c.b16 %v2438, %v2430
        %v3319 = vpack.c.b16 %v2439, %v2431
        %v3320 = vpack.c.b16 %v2448, %v2440
        %v3321 = vpack.c.b16 %v2449, %v2441
        %v3322 = vpack.c.b16 %v2450, %v2442
        %v3323 = vpack.c.b16 %v2451, %v2443
        %v3324 = vpack.c.b16 %v2452, %v2444
        %v3325 = vpack.c.b16 %v2453, %v2445
        %v3326 = vpack.c.b16 %v2454, %v2446
        %v3327 = vpack.c.b16 %v2455, %v2447
        %v3328 = vpack.c.b16 %v2464, %v2456
        %v3329 = vpack.c.b16 %v2465, %v2457
        %v3330 = vpack.c.b16 %v2466, %v2458
        %v3331 = vpack.c.b16 %v2467, %v2459
        %v3332 = vpack.c.b16 %v2468, %v2460
        %v3333 = vpack.c.b16 %v2469, %v2461
        %v3334 = vpack.c.b16 %v2470, %v2462
        %v3335 = vpack.c.b16 %v2471, %v2463
        %v3336 = vpack.c.b16 %v2480, %v2472
        %v3337 = vpack.c.b16 %v2481, %v2473
        %v3338 = vpack.c.b16 %v2482, %v2474
        %v3339 = vpack.c.b16 %v2483, %v2475
        %v3340 = vpack.c.b16 %v2484, %v2476
        %v3341 = vpack.c.b16 %v2485, %v2477
        %v3342 = vpack.c.b16 %v2486, %v2478
        %v3343 = vpack.c.b16 %v2487, %v2479
        %v3344 = vpack.c.b16 %v2496, %v2488
        %v3345 = vpack.c.b16 %v2497, %v2489
        %v3346 = vpack.c.b16 %v2498, %v2490
        %v3347 = vpack.c.b16 %v2499, %v2491
        %v3348 = vpack.c.b16 %v2500, %v2492
        %v3349 = vpack.c.b16 %v2501, %v2493
        %v3350 = vpack.c.b16 %v2502, %v2494
        %v3351 = vpack.c.b16 %v2503, %v2495
        %v3352 = vpack.c.b16 %v2512, %v2504
        %v3353 = vpack.c.b16 %v2513, %v2505
        %v3354 = vpack.c.b16 %v2514, %v2506
        %v3355 = vpack.c.b16 %v2515, %v2507
        %v3356 = vpack.c.b16 %v2516, %v2508
        %v3357 = vpack.c.b16 %v2517, %v2509
        %v3358 = vpack.c.b16 %v2518, %v2510
        %v3359 = vpack.c.b16 %v2519, %v2511
        %v3360 = vpack.c.b16 %v2528, %v2520
        %v3361 = vpack.c.b16 %v2529, %v2521
        %v3362 = vpack.c.b16 %v2530, %v2522
        %v3363 = vpack.c.b16 %v2531, %v2523
        %v3364 = vpack.c.b16 %v2532, %v2524
        %v3365 = vpack.c.b16 %v2533, %v2525
        %v3366 = vpack.c.b16 %v2534, %v2526
        %v3367 = vpack.c.b16 %v2535, %v2527
        %v3368 = vpack.c.b16 %v2544, %v2536
        %v3369 = vpack.c.b16 %v2545, %v2537
        %v3370 = vpack.c.b16 %v2546, %v2538
        %v3371 = vpack.c.b16 %v2547, %v2539
        %v3372 = vpack.c.b16 %v2548, %v2540
        %v3373 = vpack.c.b16 %v2549, %v2541
        %v3374 = vpack.c.b16 %v2550, %v2542
        %v3375 = vpack.c.b16 %v2551, %v2543
        %v3376 = vpack.c.b16 %v2560, %v2552
        %v3377 = vpack.c.b16 %v2561, %v2553
        %v3378 = vpack.c.b16 %v2562, %v2554
        %v3379 = vpack.c.b16 %v2563, %v2555
        %v3380 = vpack.c.b16 %v2564, %v2556
        %v3381 = vpack.c.b16 %v2565, %v2557
        %v3382 = vpack.c.b16 %v2566, %v2558
        %v3383 = vpack.c.b16 %v2567, %v2559
        %v3384 = vpack.c.b16 %v2576, %v2568
        %v3385 = vpack.c.b16 %v2577, %v2569
        %v3386 = vpack.c.b16 %v2578, %v2570
        %v3387 = vpack.c.b16 %v2579, %v2571
        %v3388 = vpack.c.b16 %v2580, %v2572
        %v3389 = vpack.c.b16 %v2581, %v2573
        %v3390 = vpack.c.b16 %v2582, %v2574
        %v3391 = vpack.c.b16 %v2583, %v2575
        %v3392 = vpack.c.b16 %v2592, %v2584
        %v3393 = vpack.c.b16 %v2593, %v2585
        %v3394 = vpack.c.b16 %v2594, %v2586
        %v3395 = vpack.c.b16 %v2595, %v2587
        %v3396 = vpack.c.b16 %v2596, %v2588
        %v3397 = vpack.c.b16 %v2597, %v2589
        %v3398 = vpack.c.b16 %v2598, %v2590
        %v3399 = vpack.c.b16 %v2599, %v2591
        %v3400 = vpack.c.b16 %v2608, %v2600
        %v3401 = vpack.c.b16 %v2609, %v2601
        %v3402 = vpack.c.b16 %v2610, %v2602
        %v3403 = vpack.c.b16 %v2611, %v2603
        %v3404 = vpack.c.b16 %v2612, %v2604
        %v3405 = vpack.c.b16 %v2613, %v2605
        %v3406 = vpack.c.b16 %v2614, %v2606
        %v3407 = vpack.c.b16 %v2615, %v2607
        %v3408 = vpack.c.b16 %v2624, %v2616
        %v3409 = vpack.c.b16 %v2625, %v2617
        %v3410 = vpack.c.b16 %v2626, %v2618
        %v3411 = vpack.c.b16 %v2627, %v2619
        %v3412 = vpack.c.b16 %v2628, %v2620
        %v3413 = vpack.c.b16 %v2629, %v2621
        %v3414 = vpack.c.b16 %v2630, %v2622
        %v3415 = vpack.c.b16 %v2631, %v2623
        %v3416 = vpack.c.b16 %v2640, %v2632
        %v3417 = vpack.c.b16 %v2641, %v2633
        %v3418 = vpack.c.b16 %v2642, %v2634
        %v3419 = vpack.c.b16 %v2643, %v2635
        %v3420 = vpack.c.b16 %v2644, %v2636
        %v3421 = vpack.c.b16 %v2645, %v2637
        %v3422 = vpack.c.b16 %v2646, %v2638
        %v3423 = vpack.c.b16 %v2647, %v2639
        %v3424 = vpack.c.b16 %v2656, %v2648
        %v3425 = vpack.c.b16 %v2657, %v2649
        %v3426 = vpack.c.b16 %v2658, %v2650
        %v3427 = vpack.c.b16 %v2659, %v2651
        %v3428 = vpack.c.b16 %v2660, %v2652
        %v3429 = vpack.c.b16 %v2661, %v2653
        %v3430 = vpack.c.b16 %v2662, %v2654
        %v3431 = vpack.c.b16 %v2663, %v2655
        %v3432 = vpack.c.b16 %v2672, %v2664
        %v3433 = vpack.c.b16 %v2673, %v2665
        %v3434 = vpack.c.b16 %v2674, %v2666
        %v3435 = vpack.c.b16 %v2675, %v2667
        %v3436 = vpack.c.b16 %v2676, %v2668
        %v3437 = vpack.c.b16 %v2677, %v2669
        %v3438 = vpack.c.b16 %v2678, %v2670
        %v3439 = vpack.c.b16 %v2679, %v2671
        %v3440 = vpack.c.b16 %v2688, %v2680
        %v3441 = vpack.c.b16 %v2689, %v2681
        %v3442 = vpack.c.b16 %v2690, %v2682
        %v3443 = vpack.c.b16 %v2691, %v2683
        %v3444 = vpack.c.b16 %v2692, %v2684
        %v3445 = vpack.c.b16 %v2693, %v2685
        %v3446 = vpack.c.b16 %v2694, %v2686
        %v3447 = vpack.c.b16 %v2695, %v2687
        %v3448 = vpack.c.b16 %v2704, %v2696
        %v3449 = vpack.c.b16 %v2705, %v2697
        %v3450 = vpack.c.b16 %v2706, %v2698
        %v3451 = vpack.c.b16 %v2707, %v2699
        %v3452 = vpack.c.b16 %v2708, %v2700
        %v3453 = vpack.c.b16 %v2709, %v2701
        %v3454 = vpack.c.b16 %v2710, %v2702
        %v3455 = vpack.c.b16 %v2711, %v2703
        %v3456 = vpack.c.b16 %v2720, %v2712
        %v3457 = vpack.c.b16 %v2721, %v2713
        %v3458 = vpack.c.b16 %v2722, %v2714
        %v3459 = vpack.c.b16 %v2723, %v2715
        %v3460 = vpack.c.b16 %v2724, %v2716
        %v3461 = vpack.c.b16 %v2725, %v2717
        %v3462 = vpack.c.b16 %v2726, %v2718
        %v3463 = vpack.c.b16 %v2727, %v2719
        %v3464 = vpack.c.b16 %v2736, %v2728
        %v3465 = vpack.c.b16 %v2737, %v2729
        %v3466 = vpack.c.b16 %v2738, %v2730
        %v3467 = vpack.c.b16 %v2739, %v2731
        %v3468 = vpack.c.b16 %v2740, %v2732
        %v3469 = vpack.c.b16 %v2741, %v2733
        %v3470 = vpack.c.b16 %v2742, %v2734
        %v3471 = vpack.c.b16 %v2743, %v2735
        %v3472 = vpack.c.b16 %v2752, %v2744
        %v3473 = vpack.c.b16 %v2753, %v2745
        %v3474 = vpack.c.b16 %v2754, %v2746
        %v3475 = vpack.c.b16 %v2755, %v2747
        %v3476 = vpack.c.b16 %v2756, %v2748
        %v3477 = vpack.c.b16 %v2757, %v2749
        %v3478 = vpack.c.b16 %v2758, %v2750
        %v3479 = vpack.c.b16 %v2759, %v2751
        %v3480 = vpack.c.b16 %v2768, %v2760
        %v3481 = vpack.c.b16 %v2769, %v2761
        %v3482 = vpack.c.b16 %v2770, %v2762
        %v3483 = vpack.c.b16 %v2771, %v2763
        %v3484 = vpack.c.b16 %v2772, %v2764
        %v3485 = vpack.c.b16 %v2773, %v2765
        %v3486 = vpack.c.b16 %v2774, %v2766
        %v3487 = vpack.c.b16 %v2775, %v2767
        %v3488 = vpack.c.b16 %v2784, %v2776
        %v3489 = vpack.c.b16 %v2785, %v2777
        %v3490 = vpack.c.b16 %v2786, %v2778
        %v3491 = vpack.c.b16 %v2787, %v2779
        %v3492 = vpack.c.b16 %v2788, %v2780
        %v3493 = vpack.c.b16 %v2789, %v2781
        %v3494 = vpack.c.b16 %v2790, %v2782
        %v3495 = vpack.c.b16 %v2791, %v2783
        %v3496 = vpack.c.b16 %v2800, %v2792
        %v3497 = vpack.c.b16 %v2801, %v2793
        %v3498 = vpack.c.b16 %v2802, %v2794
        %v3499 = vpack.c.b16 %v2803, %v2795
        %v3500 = vpack.c.b16 %v2804, %v2796
        %v3501 = vpack.c.b16 %v2805, %v2797
        %v3502 = vpack.c.b16 %v2806, %v2798
        %v3503 = vpack.c.b16 %v2807, %v2799
        %v3504 = vpack.c.b16 %v2816, %v2808
        %v3505 = vpack.c.b16 %v2817, %v2809
        %v3506 = vpack.c.b16 %v2818, %v2810
        %v3507 = vpack.c.b16 %v2819, %v2811
        %v3508 = vpack.c.b16 %v2820, %v2812
        %v3509 = vpack.c.b16 %v2821, %v2813
        %v3510 = vpack.c.b16 %v2822, %v2814
        %v3511 = vpack.c.b16 %v2823, %v2815
        %v3512 = vpack.c.b16 %v2832, %v2824
        %v3513 = vpack.c.b16 %v2833, %v2825
        %v3514 = vpack.c.b16 %v2834, %v2826
        %v3515 = vpack.c.b16 %v2835, %v2827
        %v3516 = vpack.c.b16 %v2836, %v2828
        %v3517 = vpack.c.b16 %v2837, %v2829
        %v3518 = vpack.c.b16 %v2838, %v2830
        %v3519 = vpack.c.b16 %v2839, %v2831
        %v3520 = vpack.c.b16 %v2848, %v2840
        %v3521 = vpack.c.b16 %v2849, %v2841
        %v3522 = vpack.c.b16 %v2850, %v2842
        %v3523 = vpack.c.b16 %v2851, %v2843
        %v3524 = vpack.c.b16 %v2852, %v2844
        %v3525 = vpack.c.b16 %v2853, %v2845
        %v3526 = vpack.c.b16 %v2854, %v2846
        %v3527 = vpack.c.b16 %v2855, %v2847
        %v3528 = vpack.c.b16 %v2864, %v2856
        %v3529 = vpack.c.b16 %v2865, %v2857
        %v3530 = vpack.c.b16 %v2866, %v2858
        %v3531 = vpack.c.b16 %v2867, %v2859
        %v3532 = vpack.c.b16 %v2868, %v2860
        %v3533 = vpack.c.b16 %v2869, %v2861
        %v3534 = vpack.c.b16 %v2870, %v2862
        %v3535 = vpack.c.b16 %v2871, %v2863
        %v3536 = vpack.c.b16 %v2880, %v2872
        %v3537 = vpack.c.b16 %v2881, %v2873
        %v3538 = vpack.c.b16 %v2882, %v2874
        %v3539 = vpack.c.b16 %v2883, %v2875
        %v3540 = vpack.c.b16 %v2884, %v2876
        %v3541 = vpack.c.b16 %v2885, %v2877
        %v3542 = vpack.c.b16 %v2886, %v2878
        %v3543 = vpack.c.b16 %v2887, %v2879
        %v3544 = vpack.c.b16 %v2896, %v2888
        %v3545 = vpack.c.b16 %v2897, %v2889
        %v3546 = vpack.c.b16 %v2898, %v2890
        %v3547 = vpack.c.b16 %v2899, %v2891
        %v3548 = vpack.c.b16 %v2900, %v2892
        %v3549 = vpack.c.b16 %v2901, %v2893
        %v3550 = vpack.c.b16 %v2902, %v2894
        %v3551 = vpack.c.b16 %v2903, %v2895
        %v3552 = vpack.c.b16 %v2912, %v2904
        %v3553 = vpack.c.b16 %v2913, %v2905
        %v3554 = vpack.c.b16 %v2914, %v2906
        %v3555 = vpack.c.b16 %v2915, %v2907
        %v3556 = vpack.c.b16 %v2916, %v2908
        %v3557 = vpack.c.b16 %v2917, %v2909
        %v3558 = vpack.c.b16 %v2918, %v2910
        %v3559 = vpack.c.b16 %v2919, %v2911
        %4200 = vmatprep.subr.bf16.mxu0 %v2921
        %4201 = vmatpush1.bf16.msra.mxu0 %v2920
        %4202 = vmatprep.subr.bf16.mxu0 %v2929
        %4203 = vmatpush1.bf16.msra.mxu0 %v2928
        %4204 = vmatprep.subr.bf16.mxu0 %v2937
        %4205 = vmatpush1.bf16.msra.mxu0 %v2936
        %4206 = vmatprep.subr.bf16.mxu0 %v2945
        %4207 = vmatpush1.bf16.msra.mxu0 %v2944
        %4208 = vmatprep.subr.bf16.mxu0 %v2953
        %4209 = vmatpush1.bf16.msra.mxu0 %v2952
        %4210 = vmatprep.subr.bf16.mxu0 %v2961
        %4211 = vmatpush1.bf16.msra.mxu0 %v2960
        %4212 = vmatprep.subr.bf16.mxu0 %v2969
        %4213 = vmatpush1.bf16.msra.mxu0 %v2968
        %4214 = vmatprep.subr.bf16.mxu0 %v2977
        %4215 = vmatpush1.bf16.msra.mxu0 %v2976
        %4216 = vmatprep.subr.bf16.mxu0 %v2985
        %4217 = vmatpush1.bf16.msra.mxu0 %v2984
        %4218 = vmatprep.subr.bf16.mxu0 %v2993
        %4219 = vmatpush1.bf16.msra.mxu0 %v2992
        %4220 = vmatprep.subr.bf16.mxu0 %v3001
        %4221 = vmatpush1.bf16.msra.mxu0 %v3000
        %4222 = vmatprep.subr.bf16.mxu0 %v3009
        %4223 = vmatpush1.bf16.msra.mxu0 %v3008
        %4224 = vmatprep.subr.bf16.mxu0 %v3017
        %4225 = vmatpush1.bf16.msra.mxu0 %v3016
        %4226 = vmatprep.subr.bf16.mxu0 %v3025
        %4227 = vmatpush1.bf16.msra.mxu0 %v3024
        %4228 = vmatprep.subr.bf16.mxu0 %v3033
        %4229 = vmatpush1.bf16.msra.mxu0 %v3032
        %4230 = vmatprep.subr.bf16.mxu0 %v3041
        %4231 = vmatpush1.bf16.msra.mxu0 %v3040
        %4232 = vmatprep.mubr.bf16.mxu0 %v981
        %4233 = vmatmul.mubr.bf16.gmra.mrb[0].mxu0 %v980
        %v4234 = vpop.f32.mrb[0].mxu0
        %v4235 = vadd.f32 %v928, %v4234
        %v4236 = vpop.f32.mrb[0].mxu0
        %v4237 = vadd.f32 %v932, %v4236
        %v4238 = vpop.f32.mrb[0].mxu0
        %v4239 = vpop.f32.mrb[0].mxu0
        %4240 = vdwg.mxu0
        %4241 = vmatprep.subr.bf16.mxu0 %v3049
        %4242 = vmatpush1.bf16.msra.mxu0 %v3048
        %4243 = vmatprep.subr.bf16.mxu0 %v3057
        %4244 = vmatpush1.bf16.msra.mxu0 %v3056
        %4245 = vmatprep.subr.bf16.mxu0 %v3065
        %4246 = vmatpush1.bf16.msra.mxu0 %v3064
        %4247 = vmatprep.subr.bf16.mxu0 %v3073
        %4248 = vmatpush1.bf16.msra.mxu0 %v3072
        %4249 = vmatprep.subr.bf16.mxu0 %v3081
        %4250 = vmatpush1.bf16.msra.mxu0 %v3080
        %4251 = vmatprep.subr.bf16.mxu0 %v3089
        %4252 = vmatpush1.bf16.msra.mxu0 %v3088
        %4253 = vmatprep.subr.bf16.mxu0 %v3097
        %4254 = vmatpush1.bf16.msra.mxu0 %v3096
        %4255 = vmatprep.subr.bf16.mxu0 %v3105
        %4256 = vmatpush1.bf16.msra.mxu0 %v3104
        %4257 = vmatprep.subr.bf16.mxu0 %v3113
        %4258 = vmatpush1.bf16.msra.mxu0 %v3112
        %4259 = vmatprep.subr.bf16.mxu0 %v3121
        %4260 = vmatpush1.bf16.msra.mxu0 %v3120
        %4261 = vmatprep.subr.bf16.mxu0 %v3129
        %4262 = vmatpush1.bf16.msra.mxu0 %v3128
        %4263 = vmatprep.subr.bf16.mxu0 %v3137
        %4264 = vmatpush1.bf16.msra.mxu0 %v3136
        %4265 = vmatprep.subr.bf16.mxu0 %v3145
        %4266 = vmatpush1.bf16.msra.mxu0 %v3144
        %4267 = vmatprep.subr.bf16.mxu0 %v3153
        %4268 = vmatpush1.bf16.msra.mxu0 %v3152
        %4269 = vmatprep.subr.bf16.mxu0 %v3161
        %4270 = vmatpush1.bf16.msra.mxu0 %v3160
        %4271 = vmatprep.subr.bf16.mxu0 %v3169
        %4272 = vmatpush1.bf16.msra.mxu0 %v3168
        %4273 = vmatprep.mubr.bf16.mxu0 %v983
        %4274 = vmatmul.mubr.bf16.gmra.mrb[0].mxu0 %v982
        %v4275 = vpop.f32.mrb[0].mxu0
        %v4276 = vadd.f32 %v4235, %v4275
        %v4277 = vpop.f32.mrb[0].mxu0
        %v4278 = vadd.f32 %v4237, %v4277
        %v4279 = vpop.f32.mrb[0].mxu0
        %v4280 = vpop.f32.mrb[0].mxu0
        %4281 = vdwg.mxu0
        %4282 = vmatprep.subr.bf16.mxu0 %v3177
        %4283 = vmatpush1.bf16.msra.mxu0 %v3176
        %4284 = vmatprep.subr.bf16.mxu0 %v3185
        %4285 = vmatpush1.bf16.msra.mxu0 %v3184
        %4286 = vmatprep.subr.bf16.mxu0 %v3193
        %4287 = vmatpush1.bf16.msra.mxu0 %v3192
        %4288 = vmatprep.subr.bf16.mxu0 %v3201
        %4289 = vmatpush1.bf16.msra.mxu0 %v3200
        %4290 = vmatprep.subr.bf16.mxu0 %v3209
        %4291 = vmatpush1.bf16.msra.mxu0 %v3208
        %4292 = vmatprep.subr.bf16.mxu0 %v3217
        %4293 = vmatpush1.bf16.msra.mxu0 %v3216
        %4294 = vmatprep.subr.bf16.mxu0 %v3225
        %4295 = vmatpush1.bf16.msra.mxu0 %v3224
        %4296 = vmatprep.subr.bf16.mxu0 %v3233
        %4297 = vmatpush1.bf16.msra.mxu0 %v3232
        %4298 = vmatprep.subr.bf16.mxu0 %v3241
        %4299 = vmatpush1.bf16.msra.mxu0 %v3240
        %4300 = vmatprep.subr.bf16.mxu0 %v3249
        %4301 = vmatpush1.bf16.msra.mxu0 %v3248
        %4302 = vmatprep.subr.bf16.mxu0 %v3257
        %4303 = vmatpush1.bf16.msra.mxu0 %v3256
        %4304 = vmatprep.subr.bf16.mxu0 %v3265
        %4305 = vmatpush1.bf16.msra.mxu0 %v3264
        %4306 = vmatprep.subr.bf16.mxu0 %v3273
        %4307 = vmatpush1.bf16.msra.mxu0 %v3272
        %4308 = vmatprep.subr.bf16.mxu0 %v3281
        %4309 = vmatpush1.bf16.msra.mxu0 %v3280
        %4310 = vmatprep.subr.bf16.mxu0 %v3289
        %4311 = vmatpush1.bf16.msra.mxu0 %v3288
        %4312 = vmatprep.subr.bf16.mxu0 %v3297
        %4313 = vmatpush1.bf16.msra.mxu0 %v3296
        %4314 = vmatprep.mubr.bf16.mxu0 %v985
        %4315 = vmatmul.mubr.bf16.gmra.mrb[0].mxu0 %v984
        %v4316 = vpop.f32.mrb[0].mxu0
        %v4317 = vadd.f32 %v4276, %v4316
        %v4318 = vpop.f32.mrb[0].mxu0
        %v4319 = vadd.f32 %v4278, %v4318
        %v4320 = vpop.f32.mrb[0].mxu0
        %v4321 = vpop.f32.mrb[0].mxu0
        %4322 = vdwg.mxu0
        %4323 = vmatprep.subr.bf16.mxu0 %v3305
        %4324 = vmatpush1.bf16.msra.mxu0 %v3304
        %4325 = vmatprep.subr.bf16.mxu0 %v3313
        %4326 = vmatpush1.bf16.msra.mxu0 %v3312
        %4327 = vmatprep.subr.bf16.mxu0 %v3321
        %4328 = vmatpush1.bf16.msra.mxu0 %v3320
        %4329 = vmatprep.subr.bf16.mxu0 %v3329
        %4330 = vmatpush1.bf16.msra.mxu0 %v3328
        %4331 = vmatprep.subr.bf16.mxu0 %v3337
        %4332 = vmatpush1.bf16.msra.mxu0 %v3336
        %4333 = vmatprep.subr.bf16.mxu0 %v3345
        %4334 = vmatpush1.bf16.msra.mxu0 %v3344
        %4335 = vmatprep.subr.bf16.mxu0 %v3353
        %4336 = vmatpush1.bf16.msra.mxu0 %v3352
        %4337 = vmatprep.subr.bf16.mxu0 %v3361
        %4338 = vmatpush1.bf16.msra.mxu0 %v3360
        %4339 = vmatprep.subr.bf16.mxu0 %v3369
        %4340 = vmatpush1.bf16.msra.mxu0 %v3368
        %4341 = vmatprep.subr.bf16.mxu0 %v3377
        %4342 = vmatpush1.bf16.msra.mxu0 %v3376
        %4343 = vmatprep.subr.bf16.mxu0 %v3385
        %4344 = vmatpush1.bf16.msra.mxu0 %v3384
        %4345 = vmatprep.subr.bf16.mxu0 %v3393
        %4346 = vmatpush1.bf16.msra.mxu0 %v3392
        %4347 = vmatprep.subr.bf16.mxu0 %v3401
        %4348 = vmatpush1.bf16.msra.mxu0 %v3400
        %4349 = vmatprep.subr.bf16.mxu0 %v3409
        %4350 = vmatpush1.bf16.msra.mxu0 %v3408
        %4351 = vmatprep.subr.bf16.mxu0 %v3417
        %4352 = vmatpush1.bf16.msra.mxu0 %v3416
        %4353 = vmatprep.subr.bf16.mxu0 %v3425
        %4354 = vmatpush1.bf16.msra.mxu0 %v3424
        %4355 = vmatprep.mubr.bf16.mxu0 %v987
        %4356 = vmatmul.mubr.bf16.gmra.mrb[0].mxu0 %v986
        %v4357 = vpop.f32.mrb[0].mxu0
        %v4358 = vadd.f32 %v4317, %v4357
        %v4359 = vpop.f32.mrb[0].mxu0
        %v4360 = vadd.f32 %v4319, %v4359
        %v4361 = vpop.f32.mrb[0].mxu0
        %v4362 = vpop.f32.mrb[0].mxu0
        %4363 = vdwg.mxu0
        %4364 = vmatprep.subr.bf16.mxu0 %v3433
        %4365 = vmatpush1.bf16.msra.mxu0 %v3432
        %4366 = vmatprep.subr.bf16.mxu0 %v3441
        %4367 = vmatpush1.bf16.msra.mxu0 %v3440
        %4368 = vmatprep.subr.bf16.mxu0 %v3449
        %4369 = vmatpush1.bf16.msra.mxu0 %v3448
        %4370 = vmatprep.subr.bf16.mxu0 %v3457
        %4371 = vmatpush1.bf16.msra.mxu0 %v3456
        %4372 = vmatprep.subr.bf16.mxu0 %v3465
        %4373 = vmatpush1.bf16.msra.mxu0 %v3464
        %4374 = vmatprep.subr.bf16.mxu0 %v3473
        %4375 = vmatpush1.bf16.msra.mxu0 %v3472
        %4376 = vmatprep.subr.bf16.mxu0 %v3481
        %4377 = vmatpush1.bf16.msra.mxu0 %v3480
        %4378 = vmatprep.subr.bf16.mxu0 %v3489
        %4379 = vmatpush1.bf16.msra.mxu0 %v3488
        %4380 = vmatprep.subr.bf16.mxu0 %v3497
        %4381 = vmatpush1.bf16.msra.mxu0 %v3496
        %4382 = vmatprep.subr.bf16.mxu0 %v3505
        %4383 = vmatpush1.bf16.msra.mxu0 %v3504
        %4384 = vmatprep.subr.bf16.mxu0 %v3513
        %4385 = vmatpush1.bf16.msra.mxu0 %v3512
        %4386 = vmatprep.subr.bf16.mxu0 %v3521
        %4387 = vmatpush1.bf16.msra.mxu0 %v3520
        %4388 = vmatprep.subr.bf16.mxu0 %v3529
        %4389 = vmatpush1.bf16.msra.mxu0 %v3528
        %4390 = vmatprep.subr.bf16.mxu0 %v3537
        %4391 = vmatpush1.bf16.msra.mxu0 %v3536
        %4392 = vmatprep.subr.bf16.mxu0 %v3545
        %4393 = vmatpush1.bf16.msra.mxu0 %v3544
        %4394 = vmatprep.subr.bf16.mxu0 %v3553
        %4395 = vmatpush1.bf16.msra.mxu0 %v3552
        %4396 = vmatprep.mubr.bf16.mxu0 %v989
        %4397 = vmatmul.mubr.bf16.gmra.mrb[0].mxu0 %v988
        %v4398 = vpop.f32.mrb[0].mxu0
        %v4399 = vadd.f32 %v4358, %v4398
        %v4400 = vpop.f32.mrb[0].mxu0
        %v4401 = vadd.f32 %v4360, %v4400
        %v4402 = vpop.f32.mrb[0].mxu0
        %v4403 = vpop.f32.mrb[0].mxu0
        %4404 = vdwg.mxu0
        %4405 = vmatprep.subr.bf16.mxu0 %v2923
        %4406 = vmatpush1.bf16.msra.mxu0 %v2922
        %4407 = vmatprep.subr.bf16.mxu0 %v2931
        %4408 = vmatpush1.bf16.msra.mxu0 %v2930
        %4409 = vmatprep.subr.bf16.mxu0 %v2939
        %4410 = vmatpush1.bf16.msra.mxu0 %v2938
        %4411 = vmatprep.subr.bf16.mxu0 %v2947
        %4412 = vmatpush1.bf16.msra.mxu0 %v2946
        %4413 = vmatprep.subr.bf16.mxu0 %v2955
        %4414 = vmatpush1.bf16.msra.mxu0 %v2954
        %4415 = vmatprep.subr.bf16.mxu0 %v2963
        %4416 = vmatpush1.bf16.msra.mxu0 %v2962
        %4417 = vmatprep.subr.bf16.mxu0 %v2971
        %4418 = vmatpush1.bf16.msra.mxu0 %v2970
        %4419 = vmatprep.subr.bf16.mxu0 %v2979
        %4420 = vmatpush1.bf16.msra.mxu0 %v2978
        %4421 = vmatprep.subr.bf16.mxu0 %v2987
        %4422 = vmatpush1.bf16.msra.mxu0 %v2986
        %4423 = vmatprep.subr.bf16.mxu0 %v2995
        %4424 = vmatpush1.bf16.msra.mxu0 %v2994
        %4425 = vmatprep.subr.bf16.mxu0 %v3003
        %4426 = vmatpush1.bf16.msra.mxu0 %v3002
        %4427 = vmatprep.subr.bf16.mxu0 %v3011
        %4428 = vmatpush1.bf16.msra.mxu0 %v3010
        %4429 = vmatprep.subr.bf16.mxu0 %v3019
        %4430 = vmatpush1.bf16.msra.mxu0 %v3018
        %4431 = vmatprep.subr.bf16.mxu0 %v3027
        %4432 = vmatpush1.bf16.msra.mxu0 %v3026
        %4433 = vmatprep.subr.bf16.mxu0 %v3035
        %4434 = vmatpush1.bf16.msra.mxu0 %v3034
        %4435 = vmatprep.subr.bf16.mxu0 %v3043
        %4436 = vmatpush1.bf16.msra.mxu0 %v3042
        %4437 = vmatprep.mubr.bf16.mxu0 %v981
        %4438 = vmatmul.mubr.bf16.gmra.mrb[0].mxu0 %v980
        %v4439 = vpop.f32.mrb[0].mxu0
        %v4440 = vadd.f32 %v936, %v4439
        %v4441 = vpop.f32.mrb[0].mxu0
        %v4442 = vadd.f32 %v940, %v4441
        %v4443 = vpop.f32.mrb[0].mxu0
        %v4444 = vpop.f32.mrb[0].mxu0
        %4445 = vdwg.mxu0
        %4446 = vmatprep.subr.bf16.mxu0 %v3051
        %4447 = vmatpush1.bf16.msra.mxu0 %v3050
        %4448 = vmatprep.subr.bf16.mxu0 %v3059
        %4449 = vmatpush1.bf16.msra.mxu0 %v3058
        %4450 = vmatprep.subr.bf16.mxu0 %v3067
        %4451 = vmatpush1.bf16.msra.mxu0 %v3066
        %4452 = vmatprep.subr.bf16.mxu0 %v3075
        %4453 = vmatpush1.bf16.msra.mxu0 %v3074
        %4454 = vmatprep.subr.bf16.mxu0 %v3083
        %4455 = vmatpush1.bf16.msra.mxu0 %v3082
        %4456 = vmatprep.subr.bf16.mxu0 %v3091
        %4457 = vmatpush1.bf16.msra.mxu0 %v3090
        %4458 = vmatprep.subr.bf16.mxu0 %v3099
        %4459 = vmatpush1.bf16.msra.mxu0 %v3098
        %4460 = vmatprep.subr.bf16.mxu0 %v3107
        %4461 = vmatpush1.bf16.msra.mxu0 %v3106
        %4462 = vmatprep.subr.bf16.mxu0 %v3115
        %4463 = vmatpush1.bf16.msra.mxu0 %v3114
        %4464 = vmatprep.subr.bf16.mxu0 %v3123
        %4465 = vmatpush1.bf16.msra.mxu0 %v3122
        %4466 = vmatprep.subr.bf16.mxu0 %v3131
        %4467 = vmatpush1.bf16.msra.mxu0 %v3130
        %4468 = vmatprep.subr.bf16.mxu0 %v3139
        %4469 = vmatpush1.bf16.msra.mxu0 %v3138
        %4470 = vmatprep.subr.bf16.mxu0 %v3147
        %4471 = vmatpush1.bf16.msra.mxu0 %v3146
        %4472 = vmatprep.subr.bf16.mxu0 %v3155
        %4473 = vmatpush1.bf16.msra.mxu0 %v3154
        %4474 = vmatprep.subr.bf16.mxu0 %v3163
        %4475 = vmatpush1.bf16.msra.mxu0 %v3162
        %4476 = vmatprep.subr.bf16.mxu0 %v3171
        %4477 = vmatpush1.bf16.msra.mxu0 %v3170
        %4478 = vmatprep.mubr.bf16.mxu0 %v983
        %4479 = vmatmul.mubr.bf16.gmra.mrb[0].mxu0 %v982
        %v4480 = vpop.f32.mrb[0].mxu0
        %v4481 = vadd.f32 %v4440, %v4480
        %v4482 = vpop.f32.mrb[0].mxu0
        %v4483 = vadd.f32 %v4442, %v4482
        %v4484 = vpop.f32.mrb[0].mxu0
        %v4485 = vpop.f32.mrb[0].mxu0
        %4486 = vdwg.mxu0
        %4487 = vmatprep.subr.bf16.mxu0 %v3179
        %4488 = vmatpush1.bf16.msra.mxu0 %v3178
        %4489 = vmatprep.subr.bf16.mxu0 %v3187
        %4490 = vmatpush1.bf16.msra.mxu0 %v3186
        %4491 = vmatprep.subr.bf16.mxu0 %v3195
        %4492 = vmatpush1.bf16.msra.mxu0 %v3194
        %4493 = vmatprep.subr.bf16.mxu0 %v3203
        %4494 = vmatpush1.bf16.msra.mxu0 %v3202
        %4495 = vmatprep.subr.bf16.mxu0 %v3211
        %4496 = vmatpush1.bf16.msra.mxu0 %v3210
        %4497 = vmatprep.subr.bf16.mxu0 %v3219
        %4498 = vmatpush1.bf16.msra.mxu0 %v3218
        %4499 = vmatprep.subr.bf16.mxu0 %v3227
        %4500 = vmatpush1.bf16.msra.mxu0 %v3226
        %4501 = vmatprep.subr.bf16.mxu0 %v3235
        %4502 = vmatpush1.bf16.msra.mxu0 %v3234
        %4503 = vmatprep.subr.bf16.mxu0 %v3243
        %4504 = vmatpush1.bf16.msra.mxu0 %v3242
        %4505 = vmatprep.subr.bf16.mxu0 %v3251
        %4506 = vmatpush1.bf16.msra.mxu0 %v3250
        %4507 = vmatprep.subr.bf16.mxu0 %v3259
        %4508 = vmatpush1.bf16.msra.mxu0 %v3258
        %4509 = vmatprep.subr.bf16.mxu0 %v3267
        %4510 = vmatpush1.bf16.msra.mxu0 %v3266
        %4511 = vmatprep.subr.bf16.mxu0 %v3275
        %4512 = vmatpush1.bf16.msra.mxu0 %v3274
        %4513 = vmatprep.subr.bf16.mxu0 %v3283
        %4514 = vmatpush1.bf16.msra.mxu0 %v3282
        %4515 = vmatprep.subr.bf16.mxu0 %v3291
        %4516 = vmatpush1.bf16.msra.mxu0 %v3290
        %4517 = vmatprep.subr.bf16.mxu0 %v3299
        %4518 = vmatpush1.bf16.msra.mxu0 %v3298
        %4519 = vmatprep.mubr.bf16.mxu0 %v985
        %4520 = vmatmul.mubr.bf16.gmra.mrb[0].mxu0 %v984
        %v4521 = vpop.f32.mrb[0].mxu0
        %v4522 = vadd.f32 %v4481, %v4521
        %v4523 = vpop.f32.mrb[0].mxu0
        %v4524 = vadd.f32 %v4483, %v4523
        %v4525 = vpop.f32.mrb[0].mxu0
        %v4526 = vpop.f32.mrb[0].mxu0
        %4527 = vdwg.mxu0
        %4528 = vmatprep.subr.bf16.mxu0 %v3307
        %4529 = vmatpush1.bf16.msra.mxu0 %v3306
        %4530 = vmatprep.subr.bf16.mxu0 %v3315
        %4531 = vmatpush1.bf16.msra.mxu0 %v3314
        %4532 = vmatprep.subr.bf16.mxu0 %v3323
        %4533 = vmatpush1.bf16.msra.mxu0 %v3322
        %4534 = vmatprep.subr.bf16.mxu0 %v3331
        %4535 = vmatpush1.bf16.msra.mxu0 %v3330
        %4536 = vmatprep.subr.bf16.mxu0 %v3339
        %4537 = vmatpush1.bf16.msra.mxu0 %v3338
        %4538 = vmatprep.subr.bf16.mxu0 %v3347
        %4539 = vmatpush1.bf16.msra.mxu0 %v3346
        %4540 = vmatprep.subr.bf16.mxu0 %v3355
        %4541 = vmatpush1.bf16.msra.mxu0 %v3354
        %4542 = vmatprep.subr.bf16.mxu0 %v3363
        %4543 = vmatpush1.bf16.msra.mxu0 %v3362
        %4544 = vmatprep.subr.bf16.mxu0 %v3371
        %4545 = vmatpush1.bf16.msra.mxu0 %v3370
        %4546 = vmatprep.subr.bf16.mxu0 %v3379
        %4547 = vmatpush1.bf16.msra.mxu0 %v3378
        %4548 = vmatprep.subr.bf16.mxu0 %v3387
        %4549 = vmatpush1.bf16.msra.mxu0 %v3386
        %4550 = vmatprep.subr.bf16.mxu0 %v3395
        %4551 = vmatpush1.bf16.msra.mxu0 %v3394
        %4552 = vmatprep.subr.bf16.mxu0 %v3403
        %4553 = vmatpush1.bf16.msra.mxu0 %v3402
        %4554 = vmatprep.subr.bf16.mxu0 %v3411
        %4555 = vmatpush1.bf16.msra.mxu0 %v3410
        %4556 = vmatprep.subr.bf16.mxu0 %v3419
        %4557 = vmatpush1.bf16.msra.mxu0 %v3418
        %4558 = vmatprep.subr.bf16.mxu0 %v3427
        %4559 = vmatpush1.bf16.msra.mxu0 %v3426
        %4560 = vmatprep.mubr.bf16.mxu0 %v987
        %4561 = vmatmul.mubr.bf16.gmra.mrb[0].mxu0 %v986
        %v4562 = vpop.f32.mrb[0].mxu0
        %v4563 = vadd.f32 %v4522, %v4562
        %v4564 = vpop.f32.mrb[0].mxu0
        %v4565 = vadd.f32 %v4524, %v4564
        %v4566 = vpop.f32.mrb[0].mxu0
        %v4567 = vpop.f32.mrb[0].mxu0
        %4568 = vdwg.mxu0
        %4569 = vmatprep.subr.bf16.mxu0 %v3435
        %4570 = vmatpush1.bf16.msra.mxu0 %v3434
        %4571 = vmatprep.subr.bf16.mxu0 %v3443
        %4572 = vmatpush1.bf16.msra.mxu0 %v3442
        %4573 = vmatprep.subr.bf16.mxu0 %v3451
        %4574 = vmatpush1.bf16.msra.mxu0 %v3450
        %4575 = vmatprep.subr.bf16.mxu0 %v3459
        %4576 = vmatpush1.bf16.msra.mxu0 %v3458
        %4577 = vmatprep.subr.bf16.mxu0 %v3467
        %4578 = vmatpush1.bf16.msra.mxu0 %v3466
        %4579 = vmatprep.subr.bf16.mxu0 %v3475
        %4580 = vmatpush1.bf16.msra.mxu0 %v3474
        %4581 = vmatprep.subr.bf16.mxu0 %v3483
        %4582 = vmatpush1.bf16.msra.mxu0 %v3482
        %4583 = vmatprep.subr.bf16.mxu0 %v3491
        %4584 = vmatpush1.bf16.msra.mxu0 %v3490
        %4585 = vmatprep.subr.bf16.mxu0 %v3499
        %4586 = vmatpush1.bf16.msra.mxu0 %v3498
        %4587 = vmatprep.subr.bf16.mxu0 %v3507
        %4588 = vmatpush1.bf16.msra.mxu0 %v3506
        %4589 = vmatprep.subr.bf16.mxu0 %v3515
        %4590 = vmatpush1.bf16.msra.mxu0 %v3514
        %4591 = vmatprep.subr.bf16.mxu0 %v3523
        %4592 = vmatpush1.bf16.msra.mxu0 %v3522
        %4593 = vmatprep.subr.bf16.mxu0 %v3531
        %4594 = vmatpush1.bf16.msra.mxu0 %v3530
        %4595 = vmatprep.subr.bf16.mxu0 %v3539
        %4596 = vmatpush1.bf16.msra.mxu0 %v3538
        %4597 = vmatprep.subr.bf16.mxu0 %v3547
        %4598 = vmatpush1.bf16.msra.mxu0 %v3546
        %4599 = vmatprep.subr.bf16.mxu0 %v3555
        %4600 = vmatpush1.bf16.msra.mxu0 %v3554
        %4601 = vmatprep.mubr.bf16.mxu0 %v989
        %4602 = vmatmul.mubr.bf16.gmra.mrb[0].mxu0 %v988
        %v4603 = vpop.f32.mrb[0].mxu0
        %v4604 = vadd.f32 %v4563, %v4603
        %v4605 = vpop.f32.mrb[0].mxu0
        %v4606 = vadd.f32 %v4565, %v4605
        %v4607 = vpop.f32.mrb[0].mxu0
        %v4608 = vpop.f32.mrb[0].mxu0
        %4609 = vdwg.mxu0
        %4610 = vmatprep.subr.bf16.mxu0 %v2925
        %4611 = vmatpush1.bf16.msra.mxu0 %v2924
        %4612 = vmatprep.subr.bf16.mxu0 %v2933
        %4613 = vmatpush1.bf16.msra.mxu0 %v2932
        %4614 = vmatprep.subr.bf16.mxu0 %v2941
        %4615 = vmatpush1.bf16.msra.mxu0 %v2940
        %4616 = vmatprep.subr.bf16.mxu0 %v2949
        %4617 = vmatpush1.bf16.msra.mxu0 %v2948
        %4618 = vmatprep.subr.bf16.mxu0 %v2957
        %4619 = vmatpush1.bf16.msra.mxu0 %v2956
        %4620 = vmatprep.subr.bf16.mxu0 %v2965
        %4621 = vmatpush1.bf16.msra.mxu0 %v2964
        %4622 = vmatprep.subr.bf16.mxu0 %v2973
        %4623 = vmatpush1.bf16.msra.mxu0 %v2972
        %4624 = vmatprep.subr.bf16.mxu0 %v2981
        %4625 = vmatpush1.bf16.msra.mxu0 %v2980
        %4626 = vmatprep.subr.bf16.mxu0 %v2989
        %4627 = vmatpush1.bf16.msra.mxu0 %v2988
        %4628 = vmatprep.subr.bf16.mxu0 %v2997
        %4629 = vmatpush1.bf16.msra.mxu0 %v2996
        %4630 = vmatprep.subr.bf16.mxu0 %v3005
        %4631 = vmatpush1.bf16.msra.mxu0 %v3004
        %4632 = vmatprep.subr.bf16.mxu0 %v3013
        %4633 = vmatpush1.bf16.msra.mxu0 %v3012
        %4634 = vmatprep.subr.bf16.mxu0 %v3021
        %4635 = vmatpush1.bf16.msra.mxu0 %v3020
        %4636 = vmatprep.subr.bf16.mxu0 %v3029
        %4637 = vmatpush1.bf16.msra.mxu0 %v3028
        %4638 = vmatprep.subr.bf16.mxu0 %v3037
        %4639 = vmatpush1.bf16.msra.mxu0 %v3036
        %4640 = vmatprep.subr.bf16.mxu0 %v3045
        %4641 = vmatpush1.bf16.msra.mxu0 %v3044
        %4642 = vmatprep.mubr.bf16.mxu0 %v981
        %4643 = vmatmul.mubr.bf16.gmra.mrb[0].mxu0 %v980
        %v4644 = vpop.f32.mrb[0].mxu0
        %v4645 = vadd.f32 %v944, %v4644
        %v4646 = vpop.f32.mrb[0].mxu0
        %v4647 = vadd.f32 %v948, %v4646
        %v4648 = vpop.f32.mrb[0].mxu0
        %v4649 = vpop.f32.mrb[0].mxu0
        %4650 = vdwg.mxu0
        %4651 = vmatprep.subr.bf16.mxu0 %v3053
        %4652 = vmatpush1.bf16.msra.mxu0 %v3052
        %4653 = vmatprep.subr.bf16.mxu0 %v3061
        %4654 = vmatpush1.bf16.msra.mxu0 %v3060
        %4655 = vmatprep.subr.bf16.mxu0 %v3069
        %4656 = vmatpush1.bf16.msra.mxu0 %v3068
        %4657 = vmatprep.subr.bf16.mxu0 %v3077
        %4658 = vmatpush1.bf16.msra.mxu0 %v3076
        %4659 = vmatprep.subr.bf16.mxu0 %v3085
        %4660 = vmatpush1.bf16.msra.mxu0 %v3084
        %4661 = vmatprep.subr.bf16.mxu0 %v3093
        %4662 = vmatpush1.bf16.msra.mxu0 %v3092
        %4663 = vmatprep.subr.bf16.mxu0 %v3101
        %4664 = vmatpush1.bf16.msra.mxu0 %v3100
        %4665 = vmatprep.subr.bf16.mxu0 %v3109
        %4666 = vmatpush1.bf16.msra.mxu0 %v3108
        %4667 = vmatprep.subr.bf16.mxu0 %v3117
        %4668 = vmatpush1.bf16.msra.mxu0 %v3116
        %4669 = vmatprep.subr.bf16.mxu0 %v3125
        %4670 = vmatpush1.bf16.msra.mxu0 %v3124
        %4671 = vmatprep.subr.bf16.mxu0 %v3133
        %4672 = vmatpush1.bf16.msra.mxu0 %v3132
        %4673 = vmatprep.subr.bf16.mxu0 %v3141
        %4674 = vmatpush1.bf16.msra.mxu0 %v3140
        %4675 = vmatprep.subr.bf16.mxu0 %v3149
        %4676 = vmatpush1.bf16.msra.mxu0 %v3148
        %4677 = vmatprep.subr.bf16.mxu0 %v3157
        %4678 = vmatpush1.bf16.msra.mxu0 %v3156
        %4679 = vmatprep.subr.bf16.mxu0 %v3165
        %4680 = vmatpush1.bf16.msra.mxu0 %v3164
        %4681 = vmatprep.subr.bf16.mxu0 %v3173
        %4682 = vmatpush1.bf16.msra.mxu0 %v3172
        %4683 = vmatprep.mubr.bf16.mxu0 %v983
        %4684 = vmatmul.mubr.bf16.gmra.mrb[0].mxu0 %v982
        %v4685 = vpop.f32.mrb[0].mxu0
        %v4686 = vadd.f32 %v4645, %v4685
        %v4687 = vpop.f32.mrb[0].mxu0
        %v4688 = vadd.f32 %v4647, %v4687
        %v4689 = vpop.f32.mrb[0].mxu0
        %v4690 = vpop.f32.mrb[0].mxu0
        %4691 = vdwg.mxu0
        %4692 = vmatprep.subr.bf16.mxu0 %v3181
        %4693 = vmatpush1.bf16.msra.mxu0 %v3180
        %4694 = vmatprep.subr.bf16.mxu0 %v3189
        %4695 = vmatpush1.bf16.msra.mxu0 %v3188
        %4696 = vmatprep.subr.bf16.mxu0 %v3197
        %4697 = vmatpush1.bf16.msra.mxu0 %v3196
        %4698 = vmatprep.subr.bf16.mxu0 %v3205
        %4699 = vmatpush1.bf16.msra.mxu0 %v3204
        %4700 = vmatprep.subr.bf16.mxu0 %v3213
        %4701 = vmatpush1.bf16.msra.mxu0 %v3212
        %4702 = vmatprep.subr.bf16.mxu0 %v3221
        %4703 = vmatpush1.bf16.msra.mxu0 %v3220
        %4704 = vmatprep.subr.bf16.mxu0 %v3229
        %4705 = vmatpush1.bf16.msra.mxu0 %v3228
        %4706 = vmatprep.subr.bf16.mxu0 %v3237
        %4707 = vmatpush1.bf16.msra.mxu0 %v3236
        %4708 = vmatprep.subr.bf16.mxu0 %v3245
        %4709 = vmatpush1.bf16.msra.mxu0 %v3244
        %4710 = vmatprep.subr.bf16.mxu0 %v3253
        %4711 = vmatpush1.bf16.msra.mxu0 %v3252
        %4712 = vmatprep.subr.bf16.mxu0 %v3261
        %4713 = vmatpush1.bf16.msra.mxu0 %v3260
        %4714 = vmatprep.subr.bf16.mxu0 %v3269
        %4715 = vmatpush1.bf16.msra.mxu0 %v3268
        %4716 = vmatprep.subr.bf16.mxu0 %v3277
        %4717 = vmatpush1.bf16.msra.mxu0 %v3276
        %4718 = vmatprep.subr.bf16.mxu0 %v3285
        %4719 = vmatpush1.bf16.msra.mxu0 %v3284
        %4720 = vmatprep.subr.bf16.mxu0 %v3293
        %4721 = vmatpush1.bf16.msra.mxu0 %v3292
        %4722 = vmatprep.subr.bf16.mxu0 %v3301
        %4723 = vmatpush1.bf16.msra.mxu0 %v3300
        %4724 = vmatprep.mubr.bf16.mxu0 %v985
        %4725 = vmatmul.mubr.bf16.gmra.mrb[0].mxu0 %v984
        %v4726 = vpop.f32.mrb[0].mxu0
        %v4727 = vadd.f32 %v4686, %v4726
        %v4728 = vpop.f32.mrb[0].mxu0
        %v4729 = vadd.f32 %v4688, %v4728
        %v4730 = vpop.f32.mrb[0].mxu0
        %v4731 = vpop.f32.mrb[0].mxu0
        %4732 = vdwg.mxu0
        %4733 = vmatprep.subr.bf16.mxu0 %v3309
        %4734 = vmatpush1.bf16.msra.mxu0 %v3308
        %4735 = vmatprep.subr.bf16.mxu0 %v3317
        %4736 = vmatpush1.bf16.msra.mxu0 %v3316
        %4737 = vmatprep.subr.bf16.mxu0 %v3325
        %4738 = vmatpush1.bf16.msra.mxu0 %v3324
        %4739 = vmatprep.subr.bf16.mxu0 %v3333
        %4740 = vmatpush1.bf16.msra.mxu0 %v3332
        %4741 = vmatprep.subr.bf16.mxu0 %v3341
        %4742 = vmatpush1.bf16.msra.mxu0 %v3340
        %4743 = vmatprep.subr.bf16.mxu0 %v3349
        %4744 = vmatpush1.bf16.msra.mxu0 %v3348
        %4745 = vmatprep.subr.bf16.mxu0 %v3357
        %4746 = vmatpush1.bf16.msra.mxu0 %v3356
        %4747 = vmatprep.subr.bf16.mxu0 %v3365
        %4748 = vmatpush1.bf16.msra.mxu0 %v3364
        %4749 = vmatprep.subr.bf16.mxu0 %v3373
        %4750 = vmatpush1.bf16.msra.mxu0 %v3372
        %4751 = vmatprep.subr.bf16.mxu0 %v3381
        %4752 = vmatpush1.bf16.msra.mxu0 %v3380
        %4753 = vmatprep.subr.bf16.mxu0 %v3389
        %4754 = vmatpush1.bf16.msra.mxu0 %v3388
        %4755 = vmatprep.subr.bf16.mxu0 %v3397
        %4756 = vmatpush1.bf16.msra.mxu0 %v3396
        %4757 = vmatprep.subr.bf16.mxu0 %v3405
        %4758 = vmatpush1.bf16.msra.mxu0 %v3404
        %4759 = vmatprep.subr.bf16.mxu0 %v3413
        %4760 = vmatpush1.bf16.msra.mxu0 %v3412
        %4761 = vmatprep.subr.bf16.mxu0 %v3421
        %4762 = vmatpush1.bf16.msra.mxu0 %v3420
        %4763 = vmatprep.subr.bf16.mxu0 %v3429
        %4764 = vmatpush1.bf16.msra.mxu0 %v3428
        %4765 = vmatprep.mubr.bf16.mxu0 %v987
        %4766 = vmatmul.mubr.bf16.gmra.mrb[0].mxu0 %v986
        %v4767 = vpop.f32.mrb[0].mxu0
        %v4768 = vadd.f32 %v4727, %v4767
        %v4769 = vpop.f32.mrb[0].mxu0
        %v4770 = vadd.f32 %v4729, %v4769
        %v4771 = vpop.f32.mrb[0].mxu0
        %v4772 = vpop.f32.mrb[0].mxu0
        %4773 = vdwg.mxu0
        %4774 = vmatprep.subr.bf16.mxu0 %v3437
        %4775 = vmatpush1.bf16.msra.mxu0 %v3436
        %4776 = vmatprep.subr.bf16.mxu0 %v3445
        %4777 = vmatpush1.bf16.msra.mxu0 %v3444
        %4778 = vmatprep.subr.bf16.mxu0 %v3453
        %4779 = vmatpush1.bf16.msra.mxu0 %v3452
        %4780 = vmatprep.subr.bf16.mxu0 %v3461
        %4781 = vmatpush1.bf16.msra.mxu0 %v3460
        %4782 = vmatprep.subr.bf16.mxu0 %v3469
        %4783 = vmatpush1.bf16.msra.mxu0 %v3468
        %4784 = vmatprep.subr.bf16.mxu0 %v3477
        %4785 = vmatpush1.bf16.msra.mxu0 %v3476
        %4786 = vmatprep.subr.bf16.mxu0 %v3485
        %4787 = vmatpush1.bf16.msra.mxu0 %v3484
        %4788 = vmatprep.subr.bf16.mxu0 %v3493
        %4789 = vmatpush1.bf16.msra.mxu0 %v3492
        %4790 = vmatprep.subr.bf16.mxu0 %v3501
        %4791 = vmatpush1.bf16.msra.mxu0 %v3500
        %4792 = vmatprep.subr.bf16.mxu0 %v3509
        %4793 = vmatpush1.bf16.msra.mxu0 %v3508
        %4794 = vmatprep.subr.bf16.mxu0 %v3517
        %4795 = vmatpush1.bf16.msra.mxu0 %v3516
        %4796 = vmatprep.subr.bf16.mxu0 %v3525
        %4797 = vmatpush1.bf16.msra.mxu0 %v3524
        %4798 = vmatprep.subr.bf16.mxu0 %v3533
        %4799 = vmatpush1.bf16.msra.mxu0 %v3532
        %4800 = vmatprep.subr.bf16.mxu0 %v3541
        %4801 = vmatpush1.bf16.msra.mxu0 %v3540
        %4802 = vmatprep.subr.bf16.mxu0 %v3549
        %4803 = vmatpush1.bf16.msra.mxu0 %v3548
        %4804 = vmatprep.subr.bf16.mxu0 %v3557
        %4805 = vmatpush1.bf16.msra.mxu0 %v3556
        %4806 = vmatprep.mubr.bf16.mxu0 %v989
        %4807 = vmatmul.mubr.bf16.gmra.mrb[0].mxu0 %v988
        %v4808 = vpop.f32.mrb[0].mxu0
        %v4809 = vadd.f32 %v4768, %v4808
        %v4810 = vpop.f32.mrb[0].mxu0
        %v4811 = vadd.f32 %v4770, %v4810
        %v4812 = vpop.f32.mrb[0].mxu0
        %v4813 = vpop.f32.mrb[0].mxu0
        %4814 = vdwg.mxu0
        %4815 = vmatprep.subr.bf16.mxu0 %v2927
        %4816 = vmatpush1.bf16.msra.mxu0 %v2926
        %4817 = vmatprep.subr.bf16.mxu0 %v2935
        %4818 = vmatpush1.bf16.msra.mxu0 %v2934
        %4819 = vmatprep.subr.bf16.mxu0 %v2943
        %4820 = vmatpush1.bf16.msra.mxu0 %v2942
        %4821 = vmatprep.subr.bf16.mxu0 %v2951
        %4822 = vmatpush1.bf16.msra.mxu0 %v2950
        %4823 = vmatprep.subr.bf16.mxu0 %v2959
        %4824 = vmatpush1.bf16.msra.mxu0 %v2958
        %4825 = vmatprep.subr.bf16.mxu0 %v2967
        %4826 = vmatpush1.bf16.msra.mxu0 %v2966
        %4827 = vmatprep.subr.bf16.mxu0 %v2975
        %4828 = vmatpush1.bf16.msra.mxu0 %v2974
        %4829 = vmatprep.subr.bf16.mxu0 %v2983
        %4830 = vmatpush1.bf16.msra.mxu0 %v2982
        %4831 = vmatprep.subr.bf16.mxu0 %v2991
        %4832 = vmatpush1.bf16.msra.mxu0 %v2990
        %4833 = vmatprep.subr.bf16.mxu0 %v2999
        %4834 = vmatpush1.bf16.msra.mxu0 %v2998
        %4835 = vmatprep.subr.bf16.mxu0 %v3007
        %4836 = vmatpush1.bf16.msra.mxu0 %v3006
        %4837 = vmatprep.subr.bf16.mxu0 %v3015
        %4838 = vmatpush1.bf16.msra.mxu0 %v3014
        %4839 = vmatprep.subr.bf16.mxu0 %v3023
        %4840 = vmatpush1.bf16.msra.mxu0 %v3022
        %4841 = vmatprep.subr.bf16.mxu0 %v3031
        %4842 = vmatpush1.bf16.msra.mxu0 %v3030
        %4843 = vmatprep.subr.bf16.mxu0 %v3039
        %4844 = vmatpush1.bf16.msra.mxu0 %v3038
        %4845 = vmatprep.subr.bf16.mxu0 %v3047
        %4846 = vmatpush1.bf16.msra.mxu0 %v3046
        %4847 = vmatprep.mubr.bf16.mxu0 %v981
        %4848 = vmatmul.mubr.bf16.gmra.mrb[0].mxu0 %v980
        %v4849 = vpop.f32.mrb[0].mxu0
        %v4850 = vadd.f32 %v952, %v4849
        %v4851 = vpop.f32.mrb[0].mxu0
        %v4852 = vadd.f32 %v956, %v4851
        %v4853 = vpop.f32.mrb[0].mxu0
        %v4854 = vpop.f32.mrb[0].mxu0
        %4855 = vdwg.mxu0
        %4856 = vmatprep.subr.bf16.mxu0 %v3055
        %4857 = vmatpush1.bf16.msra.mxu0 %v3054
        %4858 = vmatprep.subr.bf16.mxu0 %v3063
        %4859 = vmatpush1.bf16.msra.mxu0 %v3062
        %4860 = vmatprep.subr.bf16.mxu0 %v3071
        %4861 = vmatpush1.bf16.msra.mxu0 %v3070
        %4862 = vmatprep.subr.bf16.mxu0 %v3079
        %4863 = vmatpush1.bf16.msra.mxu0 %v3078
        %4864 = vmatprep.subr.bf16.mxu0 %v3087
        %4865 = vmatpush1.bf16.msra.mxu0 %v3086
        %4866 = vmatprep.subr.bf16.mxu0 %v3095
        %4867 = vmatpush1.bf16.msra.mxu0 %v3094
        %4868 = vmatprep.subr.bf16.mxu0 %v3103
        %4869 = vmatpush1.bf16.msra.mxu0 %v3102
        %4870 = vmatprep.subr.bf16.mxu0 %v3111
        %4871 = vmatpush1.bf16.msra.mxu0 %v3110
        %4872 = vmatprep.subr.bf16.mxu0 %v3119
        %4873 = vmatpush1.bf16.msra.mxu0 %v3118
        %4874 = vmatprep.subr.bf16.mxu0 %v3127
        %4875 = vmatpush1.bf16.msra.mxu0 %v3126
        %4876 = vmatprep.subr.bf16.mxu0 %v3135
        %4877 = vmatpush1.bf16.msra.mxu0 %v3134
        %4878 = vmatprep.subr.bf16.mxu0 %v3143
        %4879 = vmatpush1.bf16.msra.mxu0 %v3142
        %4880 = vmatprep.subr.bf16.mxu0 %v3151
        %4881 = vmatpush1.bf16.msra.mxu0 %v3150
        %4882 = vmatprep.subr.bf16.mxu0 %v3159
        %4883 = vmatpush1.bf16.msra.mxu0 %v3158
        %4884 = vmatprep.subr.bf16.mxu0 %v3167
        %4885 = vmatpush1.bf16.msra.mxu0 %v3166
        %4886 = vmatprep.subr.bf16.mxu0 %v3175
        %4887 = vmatpush1.bf16.msra.mxu0 %v3174
        %4888 = vmatprep.mubr.bf16.mxu0 %v983
        %4889 = vmatmul.mubr.bf16.gmra.mrb[0].mxu0 %v982
        %v4890 = vpop.f32.mrb[0].mxu0
        %v4891 = vadd.f32 %v4850, %v4890
        %v4892 = vpop.f32.mrb[0].mxu0
        %v4893 = vadd.f32 %v4852, %v4892
        %v4894 = vpop.f32.mrb[0].mxu0
        %v4895 = vpop.f32.mrb[0].mxu0
        %4896 = vdwg.mxu0
        %4897 = vmatprep.subr.bf16.mxu0 %v3183
        %4898 = vmatpush1.bf16.msra.mxu0 %v3182
        %4899 = vmatprep.subr.bf16.mxu0 %v3191
        %4900 = vmatpush1.bf16.msra.mxu0 %v3190
        %4901 = vmatprep.subr.bf16.mxu0 %v3199
        %4902 = vmatpush1.bf16.msra.mxu0 %v3198
        %4903 = vmatprep.subr.bf16.mxu0 %v3207
        %4904 = vmatpush1.bf16.msra.mxu0 %v3206
        %4905 = vmatprep.subr.bf16.mxu0 %v3215
        %4906 = vmatpush1.bf16.msra.mxu0 %v3214
        %4907 = vmatprep.subr.bf16.mxu0 %v3223
        %4908 = vmatpush1.bf16.msra.mxu0 %v3222
        %4909 = vmatprep.subr.bf16.mxu0 %v3231
        %4910 = vmatpush1.bf16.msra.mxu0 %v3230
        %4911 = vmatprep.subr.bf16.mxu0 %v3239
        %4912 = vmatpush1.bf16.msra.mxu0 %v3238
        %4913 = vmatprep.subr.bf16.mxu0 %v3247
        %4914 = vmatpush1.bf16.msra.mxu0 %v3246
        %4915 = vmatprep.subr.bf16.mxu0 %v3255
        %4916 = vmatpush1.bf16.msra.mxu0 %v3254
        %4917 = vmatprep.subr.bf16.mxu0 %v3263
        %4918 = vmatpush1.bf16.msra.mxu0 %v3262
        %4919 = vmatprep.subr.bf16.mxu0 %v3271
        %4920 = vmatpush1.bf16.msra.mxu0 %v3270
        %4921 = vmatprep.subr.bf16.mxu0 %v3279
        %4922 = vmatpush1.bf16.msra.mxu0 %v3278
        %4923 = vmatprep.subr.bf16.mxu0 %v3287
        %4924 = vmatpush1.bf16.msra.mxu0 %v3286
        %4925 = vmatprep.subr.bf16.mxu0 %v3295
        %4926 = vmatpush1.bf16.msra.mxu0 %v3294
        %4927 = vmatprep.subr.bf16.mxu0 %v3303
        %4928 = vmatpush1.bf16.msra.mxu0 %v3302
        %4929 = vmatprep.mubr.bf16.mxu0 %v985
        %4930 = vmatmul.mubr.bf16.gmra.mrb[0].mxu0 %v984
        %v4931 = vpop.f32.mrb[0].mxu0
        %v4932 = vadd.f32 %v4891, %v4931
        %v4933 = vpop.f32.mrb[0].mxu0
        %v4934 = vadd.f32 %v4893, %v4933
        %v4935 = vpop.f32.mrb[0].mxu0
        %v4936 = vpop.f32.mrb[0].mxu0
        %4937 = vdwg.mxu0
        %4938 = vmatprep.subr.bf16.mxu0 %v3311
        %4939 = vmatpush1.bf16.msra.mxu0 %v3310
        %4940 = vmatprep.subr.bf16.mxu0 %v3319
        %4941 = vmatpush1.bf16.msra.mxu0 %v3318
        %4942 = vmatprep.subr.bf16.mxu0 %v3327
        %4943 = vmatpush1.bf16.msra.mxu0 %v3326
        %4944 = vmatprep.subr.bf16.mxu0 %v3335
        %4945 = vmatpush1.bf16.msra.mxu0 %v3334
        %4946 = vmatprep.subr.bf16.mxu0 %v3343
        %4947 = vmatpush1.bf16.msra.mxu0 %v3342
        %4948 = vmatprep.subr.bf16.mxu0 %v3351
        %4949 = vmatpush1.bf16.msra.mxu0 %v3350
        %4950 = vmatprep.subr.bf16.mxu0 %v3359
        %4951 = vmatpush1.bf16.msra.mxu0 %v3358
        %4952 = vmatprep.subr.bf16.mxu0 %v3367
        %4953 = vmatpush1.bf16.msra.mxu0 %v3366
        %4954 = vmatprep.subr.bf16.mxu0 %v3375
        %4955 = vmatpush1.bf16.msra.mxu0 %v3374
        %4956 = vmatprep.subr.bf16.mxu0 %v3383
        %4957 = vmatpush1.bf16.msra.mxu0 %v3382
        %4958 = vmatprep.subr.bf16.mxu0 %v3391
        %4959 = vmatpush1.bf16.msra.mxu0 %v3390
        %4960 = vmatprep.subr.bf16.mxu0 %v3399
        %4961 = vmatpush1.bf16.msra.mxu0 %v3398
        %4962 = vmatprep.subr.bf16.mxu0 %v3407
        %4963 = vmatpush1.bf16.msra.mxu0 %v3406
        %4964 = vmatprep.subr.bf16.mxu0 %v3415
        %4965 = vmatpush1.bf16.msra.mxu0 %v3414
        %4966 = vmatprep.subr.bf16.mxu0 %v3423
        %4967 = vmatpush1.bf16.msra.mxu0 %v3422
        %4968 = vmatprep.subr.bf16.mxu0 %v3431
        %4969 = vmatpush1.bf16.msra.mxu0 %v3430
        %4970 = vmatprep.mubr.bf16.mxu0 %v987
        %4971 = vmatmul.mubr.bf16.gmra.mrb[0].mxu0 %v986
        %v4972 = vpop.f32.mrb[0].mxu0
        %v4973 = vadd.f32 %v4932, %v4972
        %v4974 = vpop.f32.mrb[0].mxu0
        %v4975 = vadd.f32 %v4934, %v4974
        %v4976 = vpop.f32.mrb[0].mxu0
        %v4977 = vpop.f32.mrb[0].mxu0
        %4978 = vdwg.mxu0
        %4979 = vmatprep.subr.bf16.mxu0 %v3439
        %4980 = vmatpush1.bf16.msra.mxu0 %v3438
        %4981 = vmatprep.subr.bf16.mxu0 %v3447
        %4982 = vmatpush1.bf16.msra.mxu0 %v3446
        %4983 = vmatprep.subr.bf16.mxu0 %v3455
        %4984 = vmatpush1.bf16.msra.mxu0 %v3454
        %4985 = vmatprep.subr.bf16.mxu0 %v3463
        %4986 = vmatpush1.bf16.msra.mxu0 %v3462
        %4987 = vmatprep.subr.bf16.mxu0 %v3471
        %4988 = vmatpush1.bf16.msra.mxu0 %v3470
        %4989 = vmatprep.subr.bf16.mxu0 %v3479
        %4990 = vmatpush1.bf16.msra.mxu0 %v3478
        %4991 = vmatprep.subr.bf16.mxu0 %v3487
        %4992 = vmatpush1.bf16.msra.mxu0 %v3486
        %4993 = vmatprep.subr.bf16.mxu0 %v3495
        %4994 = vmatpush1.bf16.msra.mxu0 %v3494
        %4995 = vmatprep.subr.bf16.mxu0 %v3503
        %4996 = vmatpush1.bf16.msra.mxu0 %v3502
        %4997 = vmatprep.subr.bf16.mxu0 %v3511
        %4998 = vmatpush1.bf16.msra.mxu0 %v3510
        %4999 = vmatprep.subr.bf16.mxu0 %v3519
        %5000 = vmatpush1.bf16.msra.mxu0 %v3518
        %5001 = vmatprep.subr.bf16.mxu0 %v3527
        %5002 = vmatpush1.bf16.msra.mxu0 %v3526
        %5003 = vmatprep.subr.bf16.mxu0 %v3535
        %5004 = vmatpush1.bf16.msra.mxu0 %v3534
        %5005 = vmatprep.subr.bf16.mxu0 %v3543
        %5006 = vmatpush1.bf16.msra.mxu0 %v3542
        %5007 = vmatprep.subr.bf16.mxu0 %v3551
        %5008 = vmatpush1.bf16.msra.mxu0 %v3550
        %5009 = vmatprep.subr.bf16.mxu0 %v3559
        %5010 = vmatpush1.bf16.msra.mxu0 %v3558
        %5011 = vmatprep.mubr.bf16.mxu0 %v989
        %5012 = vmatmul.mubr.bf16.gmra.mrb[0].mxu0 %v988
        %v5013 = vpop.f32.mrb[0].mxu0
        %v5014 = vadd.f32 %v4973, %v5013
        %v5015 = vpop.f32.mrb[0].mxu0
        %v5016 = vadd.f32 %v4975, %v5015
        %v5017 = vpop.f32.mrb[0].mxu0
        %v5018 = vpop.f32.mrb[0].mxu0
        %5019 = vdwg.mxu0
        %v5020 = vmax.f32 %v4399, 0.0
        %v5021 = vmax.f32 %v4401, 0.0
        %v5022 = vmax.f32 %v4604, 0.0
        %v5023 = vmax.f32 %v4606, 0.0
        %v5024 = vmax.f32 %v4809, 0.0
        %v5025 = vmax.f32 %v4811, 0.0
        %v5026 = vmax.f32 %v5014, 0.0
        %v5027 = vmax.f32 %v5016, 0.0
        %v5028 = vld [vmem:[%s272] sm:$0xff]
        %v5029 = vld [vmem:[%s272 + $0x8] sm:$0xff]
        %v5030 = vld [vmem:[%s272 + $0x10] sm:$0xff]
        %v5031 = vld [vmem:[%s272 + $0x18] sm:$0xff]
        %v5032 = vld [vmem:[%s272 + $0x20] sm:$0xff]
        %v5033 = vld [vmem:[%s272 + $0x28] sm:$0xff]
        %v5034 = vld [vmem:[%s272 + $0x30] sm:$0xff]
        %v5035 = vld [vmem:[%s272 + $0x38] sm:$0xff]
        %v5036 = vld [vmem:[%s272 + $0x40] sm:$0xff]
        %v5037 = vld [vmem:[%s272 + $0x48] sm:$0xff]
        %v5038 = vld [vmem:[%s272 + $0x50] sm:$0xff]
        %v5039 = vld [vmem:[%s272 + $0x58] sm:$0xff]
        %v5040 = vld [vmem:[%s272 + $0x60] sm:$0xff]
        %v5041 = vld [vmem:[%s272 + $0x68] sm:$0xff]
        %v5042 = vld [vmem:[%s272 + $0x70] sm:$0xff]
        %v5043 = vld [vmem:[%s272 + $0x78] sm:$0xff]
        %v5044 = vld [vmem:[%s272 + $0x80] sm:$0xff]
        %v5045 = vld [vmem:[%s272 + $0x88] sm:$0xff]
        %v5046 = vld [vmem:[%s272 + $0x90] sm:$0xff]
        %v5047 = vld [vmem:[%s272 + $0x98] sm:$0xff]
        %v5048 = vld [vmem:[%s272 + $0xa0] sm:$0xff]
        %v5049 = vld [vmem:[%s272 + $0xa8] sm:$0xff]
        %v5050 = vld [vmem:[%s272 + $0xb0] sm:$0xff]
        %v5051 = vld [vmem:[%s272 + $0xb8] sm:$0xff]
        %v5052 = vld [vmem:[%s272 + $0xc0] sm:$0xff]
        %v5053 = vld [vmem:[%s272 + $0xc8] sm:$0xff]
        %v5054 = vld [vmem:[%s272 + $0xd0] sm:$0xff]
        %v5055 = vld [vmem:[%s272 + $0xd8] sm:$0xff]
        %v5056 = vld [vmem:[%s272 + $0xe0] sm:$0xff]
        %v5057 = vld [vmem:[%s272 + $0xe8] sm:$0xff]
        %v5058 = vld [vmem:[%s272 + $0xf0] sm:$0xff]
        %v5059 = vld [vmem:[%s272 + $0xf8] sm:$0xff]
        %v5060 = vld [vmem:[%s272 + $0x100] sm:$0xff]
        %v5061 = vld [vmem:[%s272 + $0x108] sm:$0xff]
        %v5062 = vld [vmem:[%s272 + $0x110] sm:$0xff]
        %v5063 = vld [vmem:[%s272 + $0x118] sm:$0xff]
        %v5064 = vld [vmem:[%s272 + $0x120] sm:$0xff]
        %v5065 = vld [vmem:[%s272 + $0x128] sm:$0xff]
        %v5066 = vld [vmem:[%s272 + $0x130] sm:$0xff]
        %v5067 = vld [vmem:[%s272 + $0x138] sm:$0xff]
        %v5068 = vld [vmem:[%s272 + $0x140] sm:$0xff]
        %v5069 = vld [vmem:[%s272 + $0x148] sm:$0xff]
        %v5070 = vld [vmem:[%s272 + $0x150] sm:$0xff]
        %v5071 = vld [vmem:[%s272 + $0x158] sm:$0xff]
        %v5072 = vld [vmem:[%s272 + $0x160] sm:$0xff]
        %v5073 = vld [vmem:[%s272 + $0x168] sm:$0xff]
        %v5074 = vld [vmem:[%s272 + $0x170] sm:$0xff]
        %v5075 = vld [vmem:[%s272 + $0x178] sm:$0xff]
        %v5076 = vld [vmem:[%s272 + $0x180] sm:$0xff]
        %v5077 = vld [vmem:[%s272 + $0x188] sm:$0xff]
        %v5078 = vld [vmem:[%s272 + $0x190] sm:$0xff]
        %v5079 = vld [vmem:[%s272 + $0x198] sm:$0xff]
        %v5080 = vld [vmem:[%s272 + $0x1a0] sm:$0xff]
        %v5081 = vld [vmem:[%s272 + $0x1a8] sm:$0xff]
        %v5082 = vld [vmem:[%s272 + $0x1b0] sm:$0xff]
        %v5083 = vld [vmem:[%s272 + $0x1b8] sm:$0xff]
        %v5084 = vld [vmem:[%s272 + $0x1c0] sm:$0xff]
        %v5085 = vld [vmem:[%s272 + $0x1c8] sm:$0xff]
        %v5086 = vld [vmem:[%s272 + $0x1d0] sm:$0xff]
        %v5087 = vld [vmem:[%s272 + $0x1d8] sm:$0xff]
        %v5088 = vld [vmem:[%s272 + $0x1e0] sm:$0xff]
        %v5089 = vld [vmem:[%s272 + $0x1e8] sm:$0xff]
        %v5090 = vld [vmem:[%s272 + $0x1f0] sm:$0xff]
        %v5091 = vld [vmem:[%s272 + $0x1f8] sm:$0xff]
        %v5092 = vld [vmem:[%s272 + $0x200] sm:$0xff]
        %v5093 = vld [vmem:[%s272 + $0x208] sm:$0xff]
        %v5094 = vld [vmem:[%s272 + $0x210] sm:$0xff]
        %v5095 = vld [vmem:[%s272 + $0x218] sm:$0xff]
        %v5096 = vld [vmem:[%s272 + $0x220] sm:$0xff]
        %v5097 = vld [vmem:[%s272 + $0x228] sm:$0xff]
        %v5098 = vld [vmem:[%s272 + $0x230] sm:$0xff]
        %v5099 = vld [vmem:[%s272 + $0x238] sm:$0xff]
        %v5100 = vld [vmem:[%s272 + $0x240] sm:$0xff]
        %v5101 = vld [vmem:[%s272 + $0x248] sm:$0xff]
        %v5102 = vld [vmem:[%s272 + $0x250] sm:$0xff]
        %v5103 = vld [vmem:[%s272 + $0x258] sm:$0xff]
        %v5104 = vld [vmem:[%s272 + $0x260] sm:$0xff]
        %v5105 = vld [vmem:[%s272 + $0x268] sm:$0xff]
        %v5106 = vld [vmem:[%s272 + $0x270] sm:$0xff]
        %v5107 = vld [vmem:[%s272 + $0x278] sm:$0xff]
        %v5108 = vld [vmem:[%s272 + $0x280] sm:$0xff]
        %v5109 = vld [vmem:[%s272 + $0x288] sm:$0xff]
        %v5110 = vld [vmem:[%s272 + $0x290] sm:$0xff]
        %v5111 = vld [vmem:[%s272 + $0x298] sm:$0xff]
        %v5112 = vld [vmem:[%s272 + $0x2a0] sm:$0xff]
        %v5113 = vld [vmem:[%s272 + $0x2a8] sm:$0xff]
        %v5114 = vld [vmem:[%s272 + $0x2b0] sm:$0xff]
        %v5115 = vld [vmem:[%s272 + $0x2b8] sm:$0xff]
        %v5116 = vld [vmem:[%s272 + $0x2c0] sm:$0xff]
        %v5117 = vld [vmem:[%s272 + $0x2c8] sm:$0xff]
        %v5118 = vld [vmem:[%s272 + $0x2d0] sm:$0xff]
        %v5119 = vld [vmem:[%s272 + $0x2d8] sm:$0xff]
        %v5120 = vld [vmem:[%s272 + $0x2e0] sm:$0xff]
        %v5121 = vld [vmem:[%s272 + $0x2e8] sm:$0xff]
        %v5122 = vld [vmem:[%s272 + $0x2f0] sm:$0xff]
        %v5123 = vld [vmem:[%s272 + $0x2f8] sm:$0xff]
        %v5124 = vld [vmem:[%s272 + $0x300] sm:$0xff]
        %v5125 = vld [vmem:[%s272 + $0x308] sm:$0xff]
        %v5126 = vld [vmem:[%s272 + $0x310] sm:$0xff]
        %v5127 = vld [vmem:[%s272 + $0x318] sm:$0xff]
        %v5128 = vld [vmem:[%s272 + $0x320] sm:$0xff]
        %v5129 = vld [vmem:[%s272 + $0x328] sm:$0xff]
        %v5130 = vld [vmem:[%s272 + $0x330] sm:$0xff]
        %v5131 = vld [vmem:[%s272 + $0x338] sm:$0xff]
        %v5132 = vld [vmem:[%s272 + $0x340] sm:$0xff]
        %v5133 = vld [vmem:[%s272 + $0x348] sm:$0xff]
        %v5134 = vld [vmem:[%s272 + $0x350] sm:$0xff]
        %v5135 = vld [vmem:[%s272 + $0x358] sm:$0xff]
        %v5136 = vld [vmem:[%s272 + $0x360] sm:$0xff]
        %v5137 = vld [vmem:[%s272 + $0x368] sm:$0xff]
        %v5138 = vld [vmem:[%s272 + $0x370] sm:$0xff]
        %v5139 = vld [vmem:[%s272 + $0x378] sm:$0xff]
        %v5140 = vld [vmem:[%s272 + $0x380] sm:$0xff]
        %v5141 = vld [vmem:[%s272 + $0x388] sm:$0xff]
        %v5142 = vld [vmem:[%s272 + $0x390] sm:$0xff]
        %v5143 = vld [vmem:[%s272 + $0x398] sm:$0xff]
        %v5144 = vld [vmem:[%s272 + $0x3a0] sm:$0xff]
        %v5145 = vld [vmem:[%s272 + $0x3a8] sm:$0xff]
        %v5146 = vld [vmem:[%s272 + $0x3b0] sm:$0xff]
        %v5147 = vld [vmem:[%s272 + $0x3b8] sm:$0xff]
        %v5148 = vld [vmem:[%s272 + $0x3c0] sm:$0xff]
        %v5149 = vld [vmem:[%s272 + $0x3c8] sm:$0xff]
        %v5150 = vld [vmem:[%s272 + $0x3d0] sm:$0xff]
        %v5151 = vld [vmem:[%s272 + $0x3d8] sm:$0xff]
        %v5152 = vld [vmem:[%s272 + $0x3e0] sm:$0xff]
        %v5153 = vld [vmem:[%s272 + $0x3e8] sm:$0xff]
        %v5154 = vld [vmem:[%s272 + $0x3f0] sm:$0xff]
        %v5155 = vld [vmem:[%s272 + $0x3f8] sm:$0xff]
        %5156 = vmatprep.subr.mxu0 0.0
        %5157 = vmatpush1.msra.mxu0 %v5028
        %5158 = vmatprep.subr.mxu0 0.0
        %5159 = vmatpush1.msra.mxu0 %v5029
        %5160 = vmatprep.subr.mxu0 0.0
        %5161 = vmatpush1.msra.mxu0 %v5030
        %5162 = vmatprep.subr.mxu0 0.0
        %5163 = vmatpush1.msra.mxu0 %v5031
        %5164 = vmatprep.subr.mxu0 0.0
        %5165 = vmatpush1.msra.mxu0 %v5032
        %5166 = vmatprep.subr.mxu0 0.0
        %5167 = vmatpush1.msra.mxu0 %v5033
        %5168 = vmatprep.subr.mxu0 0.0
        %5169 = vmatpush1.msra.mxu0 %v5034
        %5170 = vmatprep.subr.mxu0 0.0
        %5171 = vmatpush1.msra.mxu0 %v5035
        %5172 = vmatprep.subr.mxu0 0.0
        %5173 = vmatpush1.msra.mxu0 %v5036
        %5174 = vmatprep.subr.mxu0 0.0
        %5175 = vmatpush1.msra.mxu0 %v5037
        %5176 = vmatprep.subr.mxu0 0.0
        %5177 = vmatpush1.msra.mxu0 %v5038
        %5178 = vmatprep.subr.mxu0 0.0
        %5179 = vmatpush1.msra.mxu0 %v5039
        %5180 = vmatprep.subr.mxu0 0.0
        %5181 = vmatpush1.msra.mxu0 %v5040
        %5182 = vmatprep.subr.mxu0 0.0
        %5183 = vmatpush1.msra.mxu0 %v5041
        %5184 = vmatprep.subr.mxu0 0.0
        %5185 = vmatpush1.msra.mxu0 %v5042
        %5186 = vmatprep.subr.mxu0 0.0
        %5187 = vmatpush1.msra.mxu0 %v5043
        %5188 = vmatprep.subr.mxu0 0.0
        %5189 = vmatpush1.msra.mxu0 %v5044
        %5190 = vmatprep.subr.mxu0 0.0
        %5191 = vmatpush1.msra.mxu0 %v5045
        %5192 = vmatprep.subr.mxu0 0.0
        %5193 = vmatpush1.msra.mxu0 %v5046
        %5194 = vmatprep.subr.mxu0 0.0
        %5195 = vmatpush1.msra.mxu0 %v5047
        %5196 = vmatprep.subr.mxu0 0.0
        %5197 = vmatpush1.msra.mxu0 %v5048
        %5198 = vmatprep.subr.mxu0 0.0
        %5199 = vmatpush1.msra.mxu0 %v5049
        %5200 = vmatprep.subr.mxu0 0.0
        %5201 = vmatpush1.msra.mxu0 %v5050
        %5202 = vmatprep.subr.mxu0 0.0
        %5203 = vmatpush1.msra.mxu0 %v5051
        %5204 = vmatprep.subr.mxu0 0.0
        %5205 = vmatpush1.msra.mxu0 %v5052
        %5206 = vmatprep.subr.mxu0 0.0
        %5207 = vmatpush1.msra.mxu0 %v5053
        %5208 = vmatprep.subr.mxu0 0.0
        %5209 = vmatpush1.msra.mxu0 %v5054
        %5210 = vmatprep.subr.mxu0 0.0
        %5211 = vmatpush1.msra.mxu0 %v5055
        %5212 = vmatprep.subr.mxu0 0.0
        %5213 = vmatpush1.msra.mxu0 %v5056
        %5214 = vmatprep.subr.mxu0 0.0
        %5215 = vmatpush1.msra.mxu0 %v5057
        %5216 = vmatprep.subr.mxu0 0.0
        %5217 = vmatpush1.msra.mxu0 %v5058
        %5218 = vmatprep.subr.mxu0 0.0
        %5219 = vmatpush1.msra.mxu0 %v5059
        %5220 = vmatprep.mubr.f32.mxu0 %v5021
        %5221 = vmatmul.mubr.f32.gmra.mrb[0].mxu0 %v5020
        %v5222 = vpop.f32.mrb[0].mxu0
        %v5223 = vadd.f32 0.0, %v5222
        %v5224 = vpop.f32.mrb[0].mxu0
        %5225 = vdwg.mxu0
        %5226 = vmatprep.subr.mxu0 0.0
        %5227 = vmatpush1.msra.mxu0 %v5060
        %5228 = vmatprep.subr.mxu0 0.0
        %5229 = vmatpush1.msra.mxu0 %v5061
        %5230 = vmatprep.subr.mxu0 0.0
        %5231 = vmatpush1.msra.mxu0 %v5062
        %5232 = vmatprep.subr.mxu0 0.0
        %5233 = vmatpush1.msra.mxu0 %v5063
        %5234 = vmatprep.subr.mxu0 0.0
        %5235 = vmatpush1.msra.mxu0 %v5064
        %5236 = vmatprep.subr.mxu0 0.0
        %5237 = vmatpush1.msra.mxu0 %v5065
        %5238 = vmatprep.subr.mxu0 0.0
        %5239 = vmatpush1.msra.mxu0 %v5066
        %5240 = vmatprep.subr.mxu0 0.0
        %5241 = vmatpush1.msra.mxu0 %v5067
        %5242 = vmatprep.subr.mxu0 0.0
        %5243 = vmatpush1.msra.mxu0 %v5068
        %5244 = vmatprep.subr.mxu0 0.0
        %5245 = vmatpush1.msra.mxu0 %v5069
        %5246 = vmatprep.subr.mxu0 0.0
        %5247 = vmatpush1.msra.mxu0 %v5070
        %5248 = vmatprep.subr.mxu0 0.0
        %5249 = vmatpush1.msra.mxu0 %v5071
        %5250 = vmatprep.subr.mxu0 0.0
        %5251 = vmatpush1.msra.mxu0 %v5072
        %5252 = vmatprep.subr.mxu0 0.0
        %5253 = vmatpush1.msra.mxu0 %v5073
        %5254 = vmatprep.subr.mxu0 0.0
        %5255 = vmatpush1.msra.mxu0 %v5074
        %5256 = vmatprep.subr.mxu0 0.0
        %5257 = vmatpush1.msra.mxu0 %v5075
        %5258 = vmatprep.subr.mxu0 0.0
        %5259 = vmatpush1.msra.mxu0 %v5076
        %5260 = vmatprep.subr.mxu0 0.0
        %5261 = vmatpush1.msra.mxu0 %v5077
        %5262 = vmatprep.subr.mxu0 0.0
        %5263 = vmatpush1.msra.mxu0 %v5078
        %5264 = vmatprep.subr.mxu0 0.0
        %5265 = vmatpush1.msra.mxu0 %v5079
        %5266 = vmatprep.subr.mxu0 0.0
        %5267 = vmatpush1.msra.mxu0 %v5080
        %5268 = vmatprep.subr.mxu0 0.0
        %5269 = vmatpush1.msra.mxu0 %v5081
        %5270 = vmatprep.subr.mxu0 0.0
        %5271 = vmatpush1.msra.mxu0 %v5082
        %5272 = vmatprep.subr.mxu0 0.0
        %5273 = vmatpush1.msra.mxu0 %v5083
        %5274 = vmatprep.subr.mxu0 0.0
        %5275 = vmatpush1.msra.mxu0 %v5084
        %5276 = vmatprep.subr.mxu0 0.0
        %5277 = vmatpush1.msra.mxu0 %v5085
        %5278 = vmatprep.subr.mxu0 0.0
        %5279 = vmatpush1.msra.mxu0 %v5086
        %5280 = vmatprep.subr.mxu0 0.0
        %5281 = vmatpush1.msra.mxu0 %v5087
        %5282 = vmatprep.subr.mxu0 0.0
        %5283 = vmatpush1.msra.mxu0 %v5088
        %5284 = vmatprep.subr.mxu0 0.0
        %5285 = vmatpush1.msra.mxu0 %v5089
        %5286 = vmatprep.subr.mxu0 0.0
        %5287 = vmatpush1.msra.mxu0 %v5090
        %5288 = vmatprep.subr.mxu0 0.0
        %5289 = vmatpush1.msra.mxu0 %v5091
        %5290 = vmatprep.mubr.f32.mxu0 %v5023
        %5291 = vmatmul.mubr.f32.gmra.mrb[0].mxu0 %v5022
        %v5292 = vpop.f32.mrb[0].mxu0
        %v5293 = vadd.f32 %v5223, %v5292
        %v5294 = vpop.f32.mrb[0].mxu0
        %5295 = vdwg.mxu0
        %5296 = vmatprep.subr.mxu0 0.0
        %5297 = vmatpush1.msra.mxu0 %v5092
        %5298 = vmatprep.subr.mxu0 0.0
        %5299 = vmatpush1.msra.mxu0 %v5093
        %5300 = vmatprep.subr.mxu0 0.0
        %5301 = vmatpush1.msra.mxu0 %v5094
        %5302 = vmatprep.subr.mxu0 0.0
        %5303 = vmatpush1.msra.mxu0 %v5095
        %5304 = vmatprep.subr.mxu0 0.0
        %5305 = vmatpush1.msra.mxu0 %v5096
        %5306 = vmatprep.subr.mxu0 0.0
        %5307 = vmatpush1.msra.mxu0 %v5097
        %5308 = vmatprep.subr.mxu0 0.0
        %5309 = vmatpush1.msra.mxu0 %v5098
        %5310 = vmatprep.subr.mxu0 0.0
        %5311 = vmatpush1.msra.mxu0 %v5099
        %5312 = vmatprep.subr.mxu0 0.0
        %5313 = vmatpush1.msra.mxu0 %v5100
        %5314 = vmatprep.subr.mxu0 0.0
        %5315 = vmatpush1.msra.mxu0 %v5101
        %5316 = vmatprep.subr.mxu0 0.0
        %5317 = vmatpush1.msra.mxu0 %v5102
        %5318 = vmatprep.subr.mxu0 0.0
        %5319 = vmatpush1.msra.mxu0 %v5103
        %5320 = vmatprep.subr.mxu0 0.0
        %5321 = vmatpush1.msra.mxu0 %v5104
        %5322 = vmatprep.subr.mxu0 0.0
        %5323 = vmatpush1.msra.mxu0 %v5105
        %5324 = vmatprep.subr.mxu0 0.0
        %5325 = vmatpush1.msra.mxu0 %v5106
        %5326 = vmatprep.subr.mxu0 0.0
        %5327 = vmatpush1.msra.mxu0 %v5107
        %5328 = vmatprep.subr.mxu0 0.0
        %5329 = vmatpush1.msra.mxu0 %v5108
        %5330 = vmatprep.subr.mxu0 0.0
        %5331 = vmatpush1.msra.mxu0 %v5109
        %5332 = vmatprep.subr.mxu0 0.0
        %5333 = vmatpush1.msra.mxu0 %v5110
        %5334 = vmatprep.subr.mxu0 0.0
        %5335 = vmatpush1.msra.mxu0 %v5111
        %5336 = vmatprep.subr.mxu0 0.0
        %5337 = vmatpush1.msra.mxu0 %v5112
        %5338 = vmatprep.subr.mxu0 0.0
        %5339 = vmatpush1.msra.mxu0 %v5113
        %5340 = vmatprep.subr.mxu0 0.0
        %5341 = vmatpush1.msra.mxu0 %v5114
        %5342 = vmatprep.subr.mxu0 0.0
        %5343 = vmatpush1.msra.mxu0 %v5115
        %5344 = vmatprep.subr.mxu0 0.0
        %5345 = vmatpush1.msra.mxu0 %v5116
        %5346 = vmatprep.subr.mxu0 0.0
        %5347 = vmatpush1.msra.mxu0 %v5117
        %5348 = vmatprep.subr.mxu0 0.0
        %5349 = vmatpush1.msra.mxu0 %v5118
        %5350 = vmatprep.subr.mxu0 0.0
        %5351 = vmatpush1.msra.mxu0 %v5119
        %5352 = vmatprep.subr.mxu0 0.0
        %5353 = vmatpush1.msra.mxu0 %v5120
        %5354 = vmatprep.subr.mxu0 0.0
        %5355 = vmatpush1.msra.mxu0 %v5121
        %5356 = vmatprep.subr.mxu0 0.0
        %5357 = vmatpush1.msra.mxu0 %v5122
        %5358 = vmatprep.subr.mxu0 0.0
        %5359 = vmatpush1.msra.mxu0 %v5123
        %5360 = vmatprep.mubr.f32.mxu0 %v5025
        %5361 = vmatmul.mubr.f32.gmra.mrb[0].mxu0 %v5024
        %v5362 = vpop.f32.mrb[0].mxu0
        %v5363 = vadd.f32 %v5293, %v5362
        %v5364 = vpop.f32.mrb[0].mxu0
        %5365 = vdwg.mxu0
        %5366 = vmatprep.subr.mxu0 0.0
        %5367 = vmatpush1.msra.mxu0 %v5124
        %5368 = vmatprep.subr.mxu0 0.0
        %5369 = vmatpush1.msra.mxu0 %v5125
        %5370 = vmatprep.subr.mxu0 0.0
        %5371 = vmatpush1.msra.mxu0 %v5126
        %5372 = vmatprep.subr.mxu0 0.0
        %5373 = vmatpush1.msra.mxu0 %v5127
        %5374 = vmatprep.subr.mxu0 0.0
        %5375 = vmatpush1.msra.mxu0 %v5128
        %5376 = vmatprep.subr.mxu0 0.0
        %5377 = vmatpush1.msra.mxu0 %v5129
        %5378 = vmatprep.subr.mxu0 0.0
        %5379 = vmatpush1.msra.mxu0 %v5130
        %5380 = vmatprep.subr.mxu0 0.0
        %5381 = vmatpush1.msra.mxu0 %v5131
        %5382 = vmatprep.subr.mxu0 0.0
        %5383 = vmatpush1.msra.mxu0 %v5132
        %5384 = vmatprep.subr.mxu0 0.0
        %5385 = vmatpush1.msra.mxu0 %v5133
        %5386 = vmatprep.subr.mxu0 0.0
        %5387 = vmatpush1.msra.mxu0 %v5134
        %5388 = vmatprep.subr.mxu0 0.0
        %5389 = vmatpush1.msra.mxu0 %v5135
        %5390 = vmatprep.subr.mxu0 0.0
        %5391 = vmatpush1.msra.mxu0 %v5136
        %5392 = vmatprep.subr.mxu0 0.0
        %5393 = vmatpush1.msra.mxu0 %v5137
        %5394 = vmatprep.subr.mxu0 0.0
        %5395 = vmatpush1.msra.mxu0 %v5138
        %5396 = vmatprep.subr.mxu0 0.0
        %5397 = vmatpush1.msra.mxu0 %v5139
        %5398 = vmatprep.subr.mxu0 0.0
        %5399 = vmatpush1.msra.mxu0 %v5140
        %5400 = vmatprep.subr.mxu0 0.0
        %5401 = vmatpush1.msra.mxu0 %v5141
        %5402 = vmatprep.subr.mxu0 0.0
        %5403 = vmatpush1.msra.mxu0 %v5142
        %5404 = vmatprep.subr.mxu0 0.0
        %5405 = vmatpush1.msra.mxu0 %v5143
        %5406 = vmatprep.subr.mxu0 0.0
        %5407 = vmatpush1.msra.mxu0 %v5144
        %5408 = vmatprep.subr.mxu0 0.0
        %5409 = vmatpush1.msra.mxu0 %v5145
        %5410 = vmatprep.subr.mxu0 0.0
        %5411 = vmatpush1.msra.mxu0 %v5146
        %5412 = vmatprep.subr.mxu0 0.0
        %5413 = vmatpush1.msra.mxu0 %v5147
        %5414 = vmatprep.subr.mxu0 0.0
        %5415 = vmatpush1.msra.mxu0 %v5148
        %5416 = vmatprep.subr.mxu0 0.0
        %5417 = vmatpush1.msra.mxu0 %v5149
        %5418 = vmatprep.subr.mxu0 0.0
        %5419 = vmatpush1.msra.mxu0 %v5150
        %5420 = vmatprep.subr.mxu0 0.0
        %5421 = vmatpush1.msra.mxu0 %v5151
        %5422 = vmatprep.subr.mxu0 0.0
        %5423 = vmatpush1.msra.mxu0 %v5152
        %5424 = vmatprep.subr.mxu0 0.0
        %5425 = vmatpush1.msra.mxu0 %v5153
        %5426 = vmatprep.subr.mxu0 0.0
        %5427 = vmatpush1.msra.mxu0 %v5154
        %5428 = vmatprep.subr.mxu0 0.0
        %5429 = vmatpush1.msra.mxu0 %v5155
        %5430 = vmatprep.mubr.f32.mxu0 %v5027
        %5431 = vmatmul.mubr.f32.gmra.mrb[0].mxu0 %v5026
        %v5432 = vpop.f32.mrb[0].mxu0
        %v5433 = vadd.f32 %v5363, %v5432
        %v5434 = vpop.f32.mrb[0].mxu0
        %5435 = vdwg.mxu0
        %vm5436 = vcmask 64512
        %5437 = vst.msk [vmem:[%s277] sm:$0xff] %vm5436, %v5433
        %p5438 = scmp.lt.s32.totalorder %s21, 1
        %s5439 = scalar_select %p5438, %s21, 1
        %s5440 = smul.addr %s5439, 8
        %s5441 = scalar_lea.vmem %s4, %s5440
        // Predicated region
        $region45: #{fc_forward.1} parent=35 // pred_check
          %p5442 = pneg %p138
        $region46: #{fc_forward.1} parent=35 // pred_check_branch
          %5444 = sbr.rel (%p5442) target = $region48
        $region47: #{fc_forward.1} parent=35 // pred_region
          _
        $region48: #{fc_forward.1} parent=35 // pred_fallthru
          _
      $region36: #{fc_forward.1} parent=5 // pred_fallthru
        _
      %p5445 = scmp.le.s32.totalorder 2, %s16
      // Predicated region
      $region49: #{fc_forward.1} parent=5 // pred_check
        %p5446 = pneg %p5445
      $region50: #{fc_forward.1} parent=5 // pred_check_branch
        %5448 = sbr.rel (%p5446) target = $region52
      $region51: #{fc_forward.1} parent=5 // pred_region
        %s5449 = ssub.s32 %s16, 2
        // Predicated region
        $region53: #{fc_forward.1} parent=51 // pred_check
          %p5450 = pneg %p144
        $region54: #{fc_forward.1} parent=51 // pred_check_branch
          %5452 = sbr.rel (%p5450) target = $region56
        $region55: #{fc_forward.1} parent=51 // pred_region
          %p5453 = scmp.lt.s32.totalorder %s22, 1
          %s5454 = scalar_select %p5453, %s22, 1
          %s5455 = smul.addr %s5454, 8
          %s5456 = scalar_lea.vmem %s4, %s5455
        $region56: #{fc_forward.1} parent=51 // pred_fallthru
          _
      $region52: #{fc_forward.1} parent=5 // pred_fallthru
        _
    $region6: #{fc_forward.1} parent=1 // loop_footer
      %s20 = sadd.s32 1, %s16
    $region7: #{fc_forward.1} parent=1 // loop_footer_branch
      %15 = sbr.rel target = $region3
    $region8: #{fc_forward.1} parent=1 // loop_exit
      _
    %5457 = vsyncpa [#allocation3], 1
    %s5458 = scalar_lea.sflag [#allocation3], 1
    %5459 = vsyncpa %s5458, 1
    %5460 = vsyncpa [#allocation5], 1
    %s5461 = scalar_lea.sflag [#allocation5], 1
    %5462 = vsyncpa %s5461, 1

</llo_original>
